<compile_context>
chip_gen: v5e
topology: v5e:2x2
jax: 0.10.0
libtpu: 0.0.40
codegen_flags: <defaults>
</compile_context>

<pallas_src>
import math
from functools import partial

import jax
import jax.numpy as jnp
from jax import lax
from jax.experimental import pallas as pl
from jax.experimental.pallas import tpu as pltpu


def _round_up(x, m):
    return ((x + m - 1) // m) * m


# ----------------------------------------------------------------------------- kernels

def _add_norm_kernel(x_ref, r_ref, g_ref, b_ref, y_ref, res_ref, *, eps):
    """residual = x + r ; y = LayerNorm(residual) over last dim (row-tiled)."""
    resid = x_ref[...].astype(jnp.float32) + r_ref[...].astype(jnp.float32)
    res_ref[...] = resid
    mu = jnp.mean(resid, axis=-1, keepdims=True)
    xc = resid - mu
    var = jnp.mean(xc * xc, axis=-1, keepdims=True)
    inv = lax.rsqrt(var + eps)
    y_ref[...] = (xc * inv * g_ref[...] + b_ref[...]).astype(y_ref.dtype)


def _matmul_kernel(x_ref, w_ref, o_ref, acc_ref):
    """Tiled matmul, bf16 operands, f32 accumulate over the K grid axis. No bias."""
    @pl.when(pl.program_id(2) == 0)
    def _():
        acc_ref[...] = jnp.zeros_like(acc_ref)

    acc_ref[...] += jnp.dot(x_ref[...], w_ref[...],
                            preferred_element_type=jnp.float32)

    @pl.when(pl.program_id(2) == pl.num_programs(2) - 1)
    def _():
        o_ref[...] = acc_ref[...].astype(o_ref.dtype)


def _causal_conv_silu_kernel(x_ref, prev_ref, w_ref, b_ref, o_ref, *, K):
    """Depthwise causal conv over time + SiLU.

    L is tiled; the (K-1)-row causal halo is read from the previous L-block (the index map
    clamps to block 0, which is then masked to zeros when program_id(1) == 0).
    """
    TB, TL, Din = o_ref.shape
    c = pl.program_id(1)
    x = x_ref[...].astype(jnp.float32)                        # (TB, TL, Din)
    w = w_ref[...].astype(jnp.float32)                        # (K, Din)
    if K > 1:
        halo = prev_ref[:, TL - (K - 1):, :].astype(jnp.float32)   # (TB, K-1, Din)
        halo = jnp.where(c == 0, jnp.zeros_like(halo), halo)
        xp = jnp.concatenate([halo, x], axis=1)                # (TB, TL+K-1, Din)
    else:
        xp = x
    acc = jnp.zeros((TB, TL, Din), jnp.float32)
    for k in range(K):                                         # static unroll (K small)
        acc = acc + w[k:k + 1, :] * xp[:, k:k + TL, :]
    acc = acc + b_ref[...].astype(jnp.float32)
    o_ref[...] = (acc * (1.0 / (1.0 + jnp.exp(-acc)))).astype(o_ref.dtype)


def _selective_scan_kernel(u_ref, z_ref, dbc_ref, A_ref, D_ref, dtb_ref, y_ref,
                           dA_scr, st_scr, carry_scr, *, Din, N):
    """Mamba selective scan, one (batch*var) row, L chunked along grid axis 1.

    Phase 1 (vectorized): stage per-step decay dA = exp(dt*A) and input dB*u for the chunk.
    Phase 2 (serial, elementwise only): state[t] = dA[t]*state[t-1] + dBu[t], states kept in
             a (T, N, Din) scratch; nothing else on the critical path.
    Phase 3 (vectorized): y[t] = sum_n C[t,n]*state[t,n,:] + D*u[t], gated by SiLU(z);
             one lane-dense (T, Din) store per chunk.
    """
    c = pl.program_id(1)

    @pl.when(c == 0)
    def _():
        carry_scr[...] = jnp.zeros_like(carry_scr)

    T = u_ref.shape[1]
    u = u_ref[0].astype(jnp.float32)                           # (T, Din)
    dbc = dbc_ref[0].astype(jnp.float32)                       # (T, Din + 2N)
    delta = dbc[:, :Din] + dtb_ref[...]                        # (T, Din)
    # numerically-safe softplus (threshold 20, matches torch)
    dt = jnp.where(delta > 20.0, delta,
                   jnp.log1p(jnp.exp(jnp.minimum(delta, 20.0))))
    Bm = dbc[:, Din:Din + N]                                   # (T, N)
    Cm = dbc[:, Din + N:Din + 2 * N]                           # (T, N)
    A = A_ref[...]                                             # (N, Din)

    # phase 1: per-chunk staging (bounded VMEM, Din on lanes). exp volume is the EUP hot spot.
    dA_scr[...] = jnp.exp(dt[:, None, :] * A[None, :, :])      # (T, N, Din)
    st_scr[...] = Bm[:, :, None] * (dt * u)[:, None, :]        # (T, N, Din) = dB*u

    # phase 2: serial recurrence (elementwise only), states materialized in st_scr.
    def body(t, state):
        state = dA_scr[pl.ds(t, 1), :, :] * state + st_scr[pl.ds(t, 1), :, :]
        st_scr[pl.ds(t, 1), :, :] = state
        return state

    carry_scr[...] = lax.fori_loop(0, T, body, carry_scr[...])

    # phase 3: vectorized readout + gate + single lane-dense store.
    y = jnp.sum(Cm[:, :, None] * st_scr[...], axis=1)          # (T, Din)
    z = z_ref[0].astype(jnp.float32)
    gate = z * (1.0 / (1.0 + jnp.exp(-z)))                     # silu(z)
    y = (y + u * D_ref[...]) * gate
    y_ref[0] = y.astype(y_ref.dtype)


# ----------------------------------------------------------------------------- wrappers

def add_layernorm(x2d, r2d, gamma, beta, eps, out_dtype):
    R, D = x2d.shape
    TR = min(R, 1024, max(8, ((4 * 1024 * 1024) // (D * 16)) // 8 * 8))
    row_spec = pl.BlockSpec((TR, D), lambda i: (i, 0))
    vec_spec = pl.BlockSpec((1, D), lambda i: (0, 0))
    y, res = pl.pallas_call(
        partial(_add_norm_kernel, eps=eps),
        out_shape=(jax.ShapeDtypeStruct((R, D), out_dtype),
                   jax.ShapeDtypeStruct((R, D), jnp.float32)),
        grid=(pl.cdiv(R, TR),),
        in_specs=[row_spec, row_spec, vec_spec, vec_spec],
        out_specs=(row_spec, row_spec),
        compiler_params=pltpu.CompilerParams(dimension_semantics=("parallel",)),
    )(x2d, r2d, gamma.reshape(1, D), beta.reshape(1, D))
    return y, res


def matmul_bf16(x, w, out_dtype=jnp.bfloat16):
    """x @ w with bf16 operands, f32 accumulation.

    K is tiled exactly (padded only if unavoidable); partial M/N edge blocks rely on Pallas
    masking (row/col independent outputs), so activations are never padded or sliced.
    """
    M, K = x.shape
    Kw, N = w.shape
    assert K == Kw
    xb = x if x.dtype == jnp.bfloat16 else x.astype(jnp.bfloat16)
    wb = w if w.dtype == jnp.bfloat16 else w.astype(jnp.bfloat16)

    if K <= 512:
        TK = K
    else:
        TK = next((t for t in (512, 256, 128) if K % t == 0), 0)
        if TK == 0:                                   # rare: pad K with zeros (exact result)
            TK = 512
            Kp = _round_up(K, TK)
            xb = jnp.pad(xb, ((0, 0), (0, Kp - K)))
            wb = jnp.pad(wb, ((0, Kp - K), (0, 0)))
            K = Kp

    TM = M if M <= 512 else 512
    if N <= 512:
        TN = N
    else:
        TN = next((t for t in (512, 256, 128) if N % t == 0), 512)

    return pl.pallas_call(
        _matmul_kernel,
        out_shape=jax.ShapeDtypeStruct((M, N), out_dtype),
        grid=(pl.cdiv(M, TM), pl.cdiv(N, TN), K // TK),
        in_specs=[pl.BlockSpec((TM, TK), lambda i, j, k: (i, k)),
                  pl.BlockSpec((TK, TN), lambda i, j, k: (k, j))],
        out_specs=pl.BlockSpec((TM, TN), lambda i, j, k: (i, j)),
        scratch_shapes=[pltpu.VMEM((TM, TN), jnp.float32)],
        compiler_params=pltpu.CompilerParams(
            dimension_semantics=("parallel", "parallel", "arbitrary")),
    )(xb, wb)


def causal_conv_silu(x_arr, x_col, conv_w, conv_b, d_inner):
    """Depthwise causal conv + SiLU. x_arr is (BC, L, d_inner) or (BC, L, 2*d_inner)
    (column block x_col selects the x half of the in_proj output)."""
    BC, L = x_arr.shape[0], x_arr.shape[1]
    K = conv_w.shape[0]
    TL = L if L <= 256 else 256
    assert TL >= K - 1, "sequence tile must cover the conv receptive field"
    per_block = TL * d_inner * 4
    TB = int(max(1, min(BC, 8, (4 * 1024 * 1024) // max(per_block * 8, 1))))
    blk = (TB, TL, d_inner)
    return pl.pallas_call(
        partial(_causal_conv_silu_kernel, K=K),
        out_shape=jax.ShapeDtypeStruct((BC, L, d_inner), jnp.bfloat16),
        grid=(pl.cdiv(BC, TB), pl.cdiv(L, TL)),
        in_specs=[
            pl.BlockSpec(blk, lambda i, c: (i, c, x_col)),
            pl.BlockSpec(blk, lambda i, c: (i, jnp.maximum(c - 1, 0), x_col)),  # halo source
            pl.BlockSpec((K, d_inner), lambda i, c: (0, 0)),
            pl.BlockSpec((1, d_inner), lambda i, c: (0, 0)),
        ],
        out_specs=pl.BlockSpec(blk, lambda i, c: (i, c, 0)),
        compiler_params=pltpu.CompilerParams(
            dimension_semantics=("parallel", "parallel"),
            vmem_limit_bytes=32 * 1024 * 1024),
    )(x_arr, x_arr, conv_w, conv_b)


def selective_scan(u, z_arr, z_col, dbc, A_t, Dskip, dt_bias, out_dtype=jnp.bfloat16):
    """u: (BC, L, Din) conv output; z_arr holds the gate half (column block z_col);
    dbc: (BC, L, Din+2N) = [delta | B | C] from the combined projection."""
    BC, L, Din = u.shape
    N = A_t.shape[0]
    # chunk length from an ~8 MiB f32 scratch budget (dA + states), VMEM-safe on v5e/v6e/v7x
    t_budget = min(512, max(8, (8 * 1024 * 1024) // (8 * N * Din)))
    T = L if L <= t_budget else (t_budget // 8) * 8
    nC = pl.cdiv(L, T)

    seq_spec = pl.BlockSpec((1, T, Din), lambda i, c: (i, c, 0))
    z_spec = pl.BlockSpec((1, T, Din), lambda i, c: (i, c, z_col))
    dbc_spec = pl.BlockSpec((1, T, Din + 2 * N), lambda i, c: (i, c, 0))

    return pl.pallas_call(
        partial(_selective_scan_kernel, Din=Din, N=N),
        out_shape=jax.ShapeDtypeStruct((BC, L, Din), out_dtype),
        grid=(BC, nC),
        in_specs=[
            seq_spec,                                      # u (conv output)
            z_spec,                                        # z (gate), column block of in_proj out
            dbc_spec,                                      # [delta | B | C]
            pl.BlockSpec((N, Din), lambda i, c: (0, 0)),   # A (transposed: N x Din)
            pl.BlockSpec((1, Din), lambda i, c: (0, 0)),   # D skip
            pl.BlockSpec((1, Din), lambda i, c: (0, 0)),   # dt bias
        ],
        out_specs=seq_spec,
        scratch_shapes=[pltpu.VMEM((T, N, Din), jnp.float32),   # dA (per chunk)
                        pltpu.VMEM((T, N, Din), jnp.float32),   # dB*u -> states (per chunk)
                        pltpu.VMEM((1, N, Din), jnp.float32)],  # carried state
        compiler_params=pltpu.CompilerParams(
            dimension_semantics=("parallel", "arbitrary"),
            vmem_limit_bytes=32 * 1024 * 1024),
    )(u, z_arr, dbc, A_t, Dskip, dt_bias)


# ----------------------------------------------------------------------------- model glue

def mamba_mixer(normed2d, p, BC, L):
    """One Mamba mixer forward; normed2d: (BC*L, d_model) bf16."""
    Dm = normed2d.shape[-1]
    N, Din = p["A_t"].shape

    xz = matmul_bf16(normed2d, p["in_proj_w"], out_dtype=jnp.bfloat16)   # (BC*L, 2*Din)
    xz3 = xz.reshape(BC, L, 2 * Din)

    lane_ok = (Din % 128 == 0)
    if lane_ok:                                   # read x / z halves via column-block index maps
        conv_src, x_col = xz3, 0
        z_src, z_col = xz3, 1
    else:                                         # fallback for non-128-aligned d_inner
        conv_src, x_col = xz3[:, :, :Din], 0
        z_src, z_col = xz3[:, :, Din:], 0

    xconv = causal_conv_silu(conv_src, x_col, p["conv_w"], p["conv_b"], Din)   # (BC,L,Din) bf16

    # combined x_proj + dt_proj (folded at init) -> [delta | B | C], read whole by the scan
    dbc = matmul_bf16(xconv.reshape(BC * L, Din), p["w_comb"], out_dtype=jnp.bfloat16)
    dbc3 = dbc.reshape(BC, L, Din + 2 * N)

    y = selective_scan(xconv, z_src, z_col, dbc3, p["A_t"], p["D"], p["dt_bias"])

    out = matmul_bf16(y.reshape(BC * L, Din), p["out_proj_w"], out_dtype=jnp.float32)
    return out                                                            # (BC*L, Dm)


def mixer_ts_forward(x, params, n_vars, eps=1e-5):
    """MixerTSModelV1.forward: x (b, n_vars*l, d_model) -> (b, n_vars*l, d_model)."""
    b, cl, d = x.shape
    assert cl % n_vars == 0
    l = cl // n_vars
    BC = b * n_vars
    hidden2d = x.reshape(BC, l, d).reshape(BC * l, d).astype(jnp.float32)   # 'b (c l) d -> (b c) l d'
    residual2d = jnp.zeros_like(hidden2d)                                   # residual=None -> 0

    for lp in params["layers"]:
        normed, residual2d = add_layernorm(hidden2d, residual2d,
                                           lp["norm_w"], lp["norm_b"], eps,
                                           out_dtype=jnp.bfloat16)
        hidden2d = mamba_mixer(normed, lp, BC, l)

    normed, _ = add_layernorm(hidden2d, residual2d,
                              params["norm_f_w"], params["norm_f_b"], eps,
                              out_dtype=jnp.float32)
    return normed.reshape(b, n_vars, l, d).reshape(b, n_vars * l, d)
    # TODO(synk): inference_params decoding cache and the fused Triton layer_norm_fn path are
    #             not modeled (eval-mode, non-fused semantics); dropout is identity.


# ----------------------------------------------------------------------------- params

def init_params(key, d_model, n_layer, d_state=16, d_conv=4, expand=2):
    """Build parameters with all weight prep hoisted out of the forward pass:
    dt_proj folded into x_proj (w_comb), matmul weights pre-cast to bf16, biases reshaped."""
    d_inner = expand * d_model
    dt_rank = math.ceil(d_model / 16)
    layer_keys = jax.random.split(key, n_layer)
    layers = []
    for i in range(n_layer):
        k = jax.random.split(layer_keys[i], 5)
        in_proj_w = jax.random.normal(k[0], (d_model, 2 * d_inner), jnp.float32) / math.sqrt(d_model)
        conv_w = jax.random.normal(k[1], (d_conv, d_inner), jnp.float32) / math.sqrt(d_conv)
        conv_b = jnp.zeros((1, d_inner), jnp.float32)
        x_proj_w = jax.random.normal(k[2], (d_inner, dt_rank + 2 * d_state), jnp.float32) / math.sqrt(d_inner)
        dt_proj_w = jax.random.normal(k[3], (dt_rank, d_inner), jnp.float32) / math.sqrt(dt_rank)
        # dt bias: inverse-softplus of values in [1e-3, 1e-1] (Mamba-style init)
        dt = jnp.exp(jnp.linspace(math.log(1e-3), math.log(1e-1), d_inner)).astype(jnp.float32)
        dt_bias = (dt + jnp.log(-jnp.expm1(-dt))).reshape(1, d_inner)
        A = -jnp.tile(jnp.arange(1, d_state + 1, dtype=jnp.float32)[None, :], (d_inner, 1))
        Dskip = jnp.ones((1, d_inner), jnp.float32)
        # out_proj rescaled by 1/sqrt(n_layer) (rescale_prenorm_residual)
        out_proj_w = (jax.random.normal(k[4], (d_inner, d_model), jnp.float32)
                      / math.sqrt(d_inner)) / math.sqrt(n_layer)
        # fold dt_proj into x_proj once: combined projection emits [delta | B | C]
        w_delta = x_proj_w[:, :dt_rank] @ dt_proj_w                       # (Din, Din)
        w_comb = jnp.concatenate([w_delta, x_proj_w[:, dt_rank:]], axis=1)
        layers.append(dict(
            norm_w=jnp.ones((d_model,), jnp.float32),
            norm_b=jnp.zeros((d_model,), jnp.float32),
            in_proj_w=in_proj_w.astype(jnp.bfloat16),
            conv_w=conv_w, conv_b=conv_b,
            w_comb=w_comb.astype(jnp.bfloat16),
            dt_bias=dt_bias,
            A_t=A.T,                      # (N, Din): d_inner on lanes inside the scan
            D=Dskip,
            out_proj_w=out_proj_w.astype(jnp.bfloat16),
        ))
    return dict(layers=layers,
                norm_f_w=jnp.ones((d_model,), jnp.float32),
                norm_f_b=jnp.zeros((d_model,), jnp.float32))


# ----------------------------------------------------------------------------- main

if __name__ == "__main__":
    d_model, n_layer, n_vars = 64, 2, 4        # d_inner = 128 -> lane-dense blocks
    b, l = 2, 8                                # input seq = n_vars * l = 32
    key = jax.random.PRNGKey(0)
    pkey, xkey = jax.random.split(key)
    params = init_params(pkey, d_model, n_layer)
    x = jax.random.normal(xkey, (b, n_vars * l, d_model), jnp.float32)

    fwd = jax.jit(partial(mixer_ts_forward, n_vars=n_vars))
    out = jax.block_until_ready(fwd(x, params))
    assert out.shape == (b, n_vars * l, d_model)
    assert bool(jnp.all(jnp.isfinite(out)))
    print("KERNEL_OK")
</pallas_src>

<mosaic_0001>
module attributes {stable_mosaic.version = 11 : i64} {
  func.func @_matmul_kernel(%arg0: i32, %arg1: i32, %arg2: i32, %arg3: memref<64x64xbf16, #tpu.memory_space<vmem>>, %arg4: memref<64x256xbf16, #tpu.memory_space<vmem>>, %arg5: memref<64x256xbf16, #tpu.memory_space<vmem>>, %arg6: memref<64x256xf32, #tpu.memory_space<vmem>>) attributes {dimension_semantics = [#tpu.dimension_semantics<parallel>, #tpu.dimension_semantics<parallel>, #tpu.dimension_semantics<arbitrary>], iteration_bounds = array<i64: 1, 1, 1>, scalar_prefetch = 0 : i64, scratch_operands = 1 : i64, tpu.core_type = #tpu.core_type<tc>, window_params = [{transform_indices = @transform_0, window_bounds = array<i64: 64, 64>}, {transform_indices = @transform_1, window_bounds = array<i64: 64, 256>}, {transform_indices = @transform_2, window_bounds = array<i64: 64, 256>}]} {
    %c0_i32 = arith.constant 0 : i32
    %0 = arith.cmpi eq, %arg2, %c0_i32 : i32
    %1 = arith.extui %0 : i1 to i32
    %c0_i32_0 = arith.constant 0 : i32
    %2 = arith.cmpi ne, %1, %c0_i32_0 : i32
    scf.if %2 {
      %cst_10 = arith.constant 0.000000e+00 : f32
      %12 = vector.broadcast %cst_10 : f32 to vector<64x256xf32>
      %c0_11 = arith.constant 0 : index
      %c0_12 = arith.constant 0 : index
      %13 = vector.load %arg6[%c0_11, %c0_12] : memref<64x256xf32, #tpu.memory_space<vmem>>, vector<64x256xf32>
      tpu.vector_store %arg6[%c0_11, %c0_12], %12 {strides = array<i32>} : memref<64x256xf32, #tpu.memory_space<vmem>>, vector<64x256xf32>,
    } else {
    }
    %c0 = arith.constant 0 : index
    %c0_1 = arith.constant 0 : index
    %3 = vector.load %arg6[%c0, %c0_1] : memref<64x256xf32, #tpu.memory_space<vmem>>, vector<64x256xf32>
    %c0_2 = arith.constant 0 : index
    %c0_3 = arith.constant 0 : index
    %4 = vector.load %arg3[%c0_2, %c0_3] : memref<64x64xbf16, #tpu.memory_space<vmem>>, vector<64x64xbf16>
    %c0_4 = arith.constant 0 : index
    %c0_5 = arith.constant 0 : index
    %5 = vector.load %arg4[%c0_4, %c0_5] : memref<64x256xbf16, #tpu.memory_space<vmem>>, vector<64x256xbf16>
    %cst = arith.constant dense<0.000000e+00> : vector<64x256xf32>
    %6 = tpu.matmul %4, %5, %cst {dimension_numbers = #tpu.dot_dimension_numbers<[1], [0], [0], [1], [0, 0, 1, 1], [], []>} : vector<64x64xbf16>, vector<64x256xbf16>, vector<64x256xf32> -> vector<64x256xf32>
    %7 = arith.addf %3, %6 : vector<64x256xf32>
    %c0_6 = arith.constant 0 : index
    %c0_7 = arith.constant 0 : index
    %8 = vector.load %arg6[%c0_6, %c0_7] : memref<64x256xf32, #tpu.memory_space<vmem>>, vector<64x256xf32>
    tpu.vector_store %arg6[%c0_6, %c0_7], %7 {strides = array<i32>} : memref<64x256xf32, #tpu.memory_space<vmem>>, vector<64x256xf32>,
    %c0_i32_8 = arith.constant 0 : i32
    %9 = arith.cmpi eq, %arg2, %c0_i32_8 : i32
    %10 = arith.extui %9 : i1 to i32
    %c0_i32_9 = arith.constant 0 : i32
    %11 = arith.cmpi ne, %10, %c0_i32_9 : i32
    scf.if %11 {
      %c0_10 = arith.constant 0 : index
      %c0_11 = arith.constant 0 : index
      %12 = vector.load %arg6[%c0_10, %c0_11] : memref<64x256xf32, #tpu.memory_space<vmem>>, vector<64x256xf32>
      %13 = arith.truncf %12 : vector<64x256xf32> to vector<64x256xbf16>
      %c0_12 = arith.constant 0 : index
      %c0_13 = arith.constant 0 : index
      %14 = vector.load %arg5[%c0_12, %c0_13] : memref<64x256xbf16, #tpu.memory_space<vmem>>, vector<64x256xbf16>
      tpu.vector_store %arg5[%c0_12, %c0_13], %13 {strides = array<i32>} : memref<64x256xbf16, #tpu.memory_space<vmem>>, vector<64x256xbf16>,
    } else {
    }
    return
  }
  func.func @transform_0(%arg0: i32, %arg1: i32, %arg2: i32) -> (i32, i32) {
    %c0_i32 = arith.constant 0 : i32
    return %arg0, %arg2 : i32, i32
  }
  func.func @transform_1(%arg0: i32, %arg1: i32, %arg2: i32) -> (i32, i32) {
    %c0_i32 = arith.constant 0 : i32
    return %arg2, %arg1 : i32, i32
  }
  func.func @transform_2(%arg0: i32, %arg1: i32, %arg2: i32) -> (i32, i32) {
    %c0_i32 = arith.constant 0 : i32
    return %arg0, %arg1 : i32, i32
  }
}

module attributes {stable_mosaic.version = 11 : i64} {
  func.func @_add_norm_kernel(%arg0: i32, %arg1: memref<64x64xf32, #tpu.memory_space<vmem>>, %arg2: memref<64x64xf32, #tpu.memory_space<vmem>>, %arg3: memref<1x64xf32, #tpu.memory_space<vmem>>, %arg4: memref<1x64xf32, #tpu.memory_space<vmem>>, %arg5: memref<64x64xbf16, #tpu.memory_space<vmem>>, %arg6: memref<64x64xf32, #tpu.memory_space<vmem>>) attributes {dimension_semantics = [#tpu.dimension_semantics<parallel>], iteration_bounds = array<i64: 1>, scalar_prefetch = 0 : i64, scratch_operands = 0 : i64, tpu.core_type = #tpu.core_type<tc>, window_params = [{transform_indices = @transform_0, window_bounds = array<i64: 64, 64>}, {transform_indices = @transform_1, window_bounds = array<i64: 64, 64>}, {pipeline_mode = #tpu.pipeline_mode<synchronous>, transform_indices = @transform_2, window_bounds = array<i64: 1, 64>}, {pipeline_mode = #tpu.pipeline_mode<synchronous>, transform_indices = @transform_3, window_bounds = array<i64: 1, 64>}, {transform_indices = @transform_4, window_bounds = array<i64: 64, 64>}, {transform_indices = @transform_5, window_bounds = array<i64: 64, 64>}]} {
    %c0 = arith.constant 0 : index
    %c0_0 = arith.constant 0 : index
    %0 = vector.load %arg1[%c0, %c0_0] : memref<64x64xf32, #tpu.memory_space<vmem>>, vector<64x64xf32>
    %c0_1 = arith.constant 0 : index
    %c0_2 = arith.constant 0 : index
    %1 = vector.load %arg2[%c0_1, %c0_2] : memref<64x64xf32, #tpu.memory_space<vmem>>, vector<64x64xf32>
    %2 = arith.addf %0, %1 : vector<64x64xf32>
    %c0_3 = arith.constant 0 : index
    %c0_4 = arith.constant 0 : index
    %3 = vector.load %arg6[%c0_3, %c0_4] : memref<64x64xf32, #tpu.memory_space<vmem>>, vector<64x64xf32>
    tpu.vector_store %arg6[%c0_3, %c0_4], %2 {strides = array<i32>} : memref<64x64xf32, #tpu.memory_space<vmem>>, vector<64x64xf32>,
    %cst = arith.constant dense<0.000000e+00> : vector<64xf32>
    %4 = vector.multi_reduction <add>, %2, %cst [1] : vector<64x64xf32> to vector<64xf32>
    %5 = vector.shape_cast %4 : vector<64xf32> to vector<64x1xf32>
    %cst_5 = arith.constant 6.400000e+01 : f32
    %6 = vector.broadcast %cst_5 : f32 to vector<64x1xf32>
    %7 = arith.divf %5, %6 : vector<64x1xf32>
    %8 = vector.broadcast %7 : vector<64x1xf32> to vector<64x64xf32>
    %9 = arith.subf %2, %8 : vector<64x64xf32>
    %10 = arith.mulf %9, %9 : vector<64x64xf32>
    %cst_6 = arith.constant dense<0.000000e+00> : vector<64xf32>
    %11 = vector.multi_reduction <add>, %10, %cst_6 [1] : vector<64x64xf32> to vector<64xf32>
    %12 = vector.shape_cast %11 : vector<64xf32> to vector<64x1xf32>
    %cst_7 = arith.constant 6.400000e+01 : f32
    %13 = vector.broadcast %cst_7 : f32 to vector<64x1xf32>
    %14 = arith.divf %12, %13 : vector<64x1xf32>
    %cst_8 = arith.constant 9.99999974E-6 : f32
    %15 = vector.broadcast %cst_8 : f32 to vector<64x1xf32>
    %16 = arith.addf %14, %15 : vector<64x1xf32>
    %17 = math.rsqrt %16 : vector<64x1xf32>
    %18 = vector.broadcast %17 : vector<64x1xf32> to vector<64x64xf32>
    %19 = arith.mulf %9, %18 : vector<64x64xf32>
    %c0_9 = arith.constant 0 : index
    %c0_10 = arith.constant 0 : index
    %20 = vector.load %arg3[%c0_9, %c0_10] : memref<1x64xf32, #tpu.memory_space<vmem>>, vector<1x64xf32>
    %21 = vector.broadcast %20 : vector<1x64xf32> to vector<64x64xf32>
    %22 = arith.mulf %19, %21 : vector<64x64xf32>
    %c0_11 = arith.constant 0 : index
    %c0_12 = arith.constant 0 : index
    %23 = vector.load %arg4[%c0_11, %c0_12] : memref<1x64xf32, #tpu.memory_space<vmem>>, vector<1x64xf32>
    %24 = vector.broadcast %23 : vector<1x64xf32> to vector<64x64xf32>
    %25 = arith.addf %22, %24 : vector<64x64xf32>
    %26 = arith.truncf %25 : vector<64x64xf32> to vector<64x64xbf16>
    %c0_13 = arith.constant 0 : index
    %c0_14 = arith.constant 0 : index
    %27 = vector.load %arg5[%c0_13, %c0_14] : memref<64x64xbf16, #tpu.memory_space<vmem>>, vector<64x64xbf16>
    tpu.vector_store %arg5[%c0_13, %c0_14], %26 {strides = array<i32>} : memref<64x64xbf16, #tpu.memory_space<vmem>>, vector<64x64xbf16>,
    return
  }
  func.func @transform_0(%arg0: i32) -> (i32, i32) {
    %c0_i32 = arith.constant 0 : i32
    %c0_i32_0 = arith.constant 0 : i32
    return %arg0, %c0_i32 : i32, i32
  }
  func.func @transform_1(%arg0: i32) -> (i32, i32) {
    %c0_i32 = arith.constant 0 : i32
    %c0_i32_0 = arith.constant 0 : i32
    return %arg0, %c0_i32 : i32, i32
  }
  func.func @transform_2(%arg0: i32) -> (i32, i32) {
    %c0_i32 = arith.constant 0 : i32
    %c0_i32_0 = arith.constant 0 : i32
    %c0_i32_1 = arith.constant 0 : i32
    return %c0_i32, %c0_i32_0 : i32, i32
  }
  func.func @transform_3(%arg0: i32) -> (i32, i32) {
    %c0_i32 = arith.constant 0 : i32
    %c0_i32_0 = arith.constant 0 : i32
    %c0_i32_1 = arith.constant 0 : i32
    return %c0_i32, %c0_i32_0 : i32, i32
  }
  func.func @transform_4(%arg0: i32) -> (i32, i32) {
    %c0_i32 = arith.constant 0 : i32
    %c0_i32_0 = arith.constant 0 : i32
    return %arg0, %c0_i32 : i32, i32
  }
  func.func @transform_5(%arg0: i32) -> (i32, i32) {
    %c0_i32 = arith.constant 0 : i32
    %c0_i32_0 = arith.constant 0 : i32
    return %arg0, %c0_i32 : i32, i32
  }
}

module attributes {stable_mosaic.version = 11 : i64} {
  func.func @_causal_conv_silu_kernel(%arg0: i32, %arg1: i32, %arg2: memref<8x8x128xbf16, #tpu.memory_space<vmem>>, %arg3: memref<8x8x128xbf16, #tpu.memory_space<vmem>>, %arg4: memref<4x128xf32, #tpu.memory_space<vmem>>, %arg5: memref<1x128xf32, #tpu.memory_space<vmem>>, %arg6: memref<8x8x128xbf16, #tpu.memory_space<vmem>>) attributes {dimension_semantics = [#tpu.dimension_semantics<parallel>, #tpu.dimension_semantics<parallel>], iteration_bounds = array<i64: 1, 1>, scalar_prefetch = 0 : i64, scratch_operands = 0 : i64, tpu.core_type = #tpu.core_type<tc>, window_params = [{transform_indices = @transform_0, window_bounds = array<i64: 8, 8, 128>}, {transform_indices = @transform_1, window_bounds = array<i64: 8, 8, 128>}, {pipeline_mode = #tpu.pipeline_mode<synchronous>, transform_indices = @transform_2, window_bounds = array<i64: 4, 128>}, {pipeline_mode = #tpu.pipeline_mode<synchronous>, transform_indices = @transform_3, window_bounds = array<i64: 1, 128>}, {transform_indices = @transform_4, window_bounds = array<i64: 8, 8, 128>}]} {
    %c0 = arith.constant 0 : index
    %c0_0 = arith.constant 0 : index
    %c0_1 = arith.constant 0 : index
    %0 = vector.load %arg2[%c0, %c0_0, %c0_1] : memref<8x8x128xbf16, #tpu.memory_space<vmem>>, vector<8x8x128xbf16>
    %1 = arith.extf %0 : vector<8x8x128xbf16> to vector<8x8x128xf32>
    %c0_2 = arith.constant 0 : index
    %c0_3 = arith.constant 0 : index
    %2 = vector.load %arg4[%c0_2, %c0_3] : memref<4x128xf32, #tpu.memory_space<vmem>>, vector<4x128xf32>
    %c0_4 = arith.constant 0 : index
    %c5 = arith.constant 5 : index
    %c0_5 = arith.constant 0 : index
    %3 = vector.load %arg3[%c0_4, %c5, %c0_5] : memref<8x8x128xbf16, #tpu.memory_space<vmem>>, vector<8x3x128xbf16>
    %4 = arith.extf %3 : vector<8x3x128xbf16> to vector<8x3x128xf32>
    %c0_i32 = arith.constant 0 : i32
    %5 = arith.cmpi eq, %arg1, %c0_i32 : i32
    %cst = arith.constant 0.000000e+00 : f32
    %6 = vector.broadcast %cst : f32 to vector<8x3x128xf32>
    %7 = arith.select %5, %6, %4 : vector<8x3x128xf32>
    %8 = tpu.concatenate %7, %1 in 1 : vector<8x3x128xf32>, vector<8x8x128xf32> -> vector<8x11x128xf32>
    %cst_6 = arith.constant 0.000000e+00 : f32
    %9 = vector.broadcast %cst_6 : f32 to vector<8x8x128xf32>
    %10 = vector.extract_strided_slice %2 {offsets = [0, 0], sizes = [1, 128], strides = [1, 1]} : vector<4x128xf32> to vector<1x128xf32>
    %11 = vector.extract_strided_slice %8 {offsets = [0, 0, 0], sizes = [8, 8, 128], strides = [1, 1, 1]} : vector<8x11x128xf32> to vector<8x8x128xf32>
    %12 = vector.shape_cast %10 : vector<1x128xf32> to vector<1x1x128xf32>
    %13 = vector.broadcast %12 : vector<1x1x128xf32> to vector<8x8x128xf32>
    %14 = arith.mulf %13, %11 : vector<8x8x128xf32>
    %15 = arith.addf %9, %14 : vector<8x8x128xf32>
    %16 = vector.extract_strided_slice %2 {offsets = [1, 0], sizes = [1, 128], strides = [1, 1]} : vector<4x128xf32> to vector<1x128xf32>
    %17 = vector.extract_strided_slice %8 {offsets = [0, 1, 0], sizes = [8, 8, 128], strides = [1, 1, 1]} : vector<8x11x128xf32> to vector<8x8x128xf32>
    %18 = vector.shape_cast %16 : vector<1x128xf32> to vector<1x1x128xf32>
    %19 = vector.broadcast %18 : vector<1x1x128xf32> to vector<8x8x128xf32>
    %20 = arith.mulf %19, %17 : vector<8x8x128xf32>
    %21 = arith.addf %15, %20 : vector<8x8x128xf32>
    %22 = vector.extract_strided_slice %2 {offsets = [2, 0], sizes = [1, 128], strides = [1, 1]} : vector<4x128xf32> to vector<1x128xf32>
    %23 = vector.extract_strided_slice %8 {offsets = [0, 2, 0], sizes = [8, 8, 128], strides = [1, 1, 1]} : vector<8x11x128xf32> to vector<8x8x128xf32>
    %24 = vector.shape_cast %22 : vector<1x128xf32> to vector<1x1x128xf32>
    %25 = vector.broadcast %24 : vector<1x1x128xf32> to vector<8x8x128xf32>
    %26 = arith.mulf %25, %23 : vector<8x8x128xf32>
    %27 = arith.addf %21, %26 : vector<8x8x128xf32>
    %28 = vector.extract_strided_slice %2 {offsets = [3, 0], sizes = [1, 128], strides = [1, 1]} : vector<4x128xf32> to vector<1x128xf32>
    %29 = vector.extract_strided_slice %8 {offsets = [0, 3, 0], sizes = [8, 8, 128], strides = [1, 1, 1]} : vector<8x11x128xf32> to vector<8x8x128xf32>
    %30 = vector.shape_cast %28 : vector<1x128xf32> to vector<1x1x128xf32>
    %31 = vector.broadcast %30 : vector<1x1x128xf32> to vector<8x8x128xf32>
    %32 = arith.mulf %31, %29 : vector<8x8x128xf32>
    %33 = arith.addf %27, %32 : vector<8x8x128xf32>
    %c0_7 = arith.constant 0 : index
    %c0_8 = arith.constant 0 : index
    %34 = vector.load %arg5[%c0_7, %c0_8] : memref<1x128xf32, #tpu.memory_space<vmem>>, vector<1x128xf32>
    %35 = vector.shape_cast %34 : vector<1x128xf32> to vector<1x1x128xf32>
    %36 = vector.broadcast %35 : vector<1x1x128xf32> to vector<8x8x128xf32>
    %37 = arith.addf %33, %36 : vector<8x8x128xf32>
    %cst_9 = arith.constant 0.000000e+00 : f32
    %38 = vector.broadcast %cst_9 : f32 to vector<8x8x128xf32>
    %39 = arith.subf %38, %37 : vector<8x8x128xf32>
    %40 = math.exp %39 : vector<8x8x128xf32>
    %cst_10 = arith.constant 1.000000e+00 : f32
    %41 = vector.broadcast %cst_10 : f32 to vector<8x8x128xf32>
    %42 = arith.addf %41, %40 : vector<8x8x128xf32>
    %cst_11 = arith.constant 1.000000e+00 : f32
    %43 = vector.broadcast %cst_11 : f32 to vector<8x8x128xf32>
    %44 = arith.divf %43, %42 : vector<8x8x128xf32>
    %45 = arith.mulf %37, %44 : vector<8x8x128xf32>
    %46 = arith.truncf %45 : vector<8x8x128xf32> to vector<8x8x128xbf16>
    %c0_12 = arith.constant 0 : index
    %c0_13 = arith.constant 0 : index
    %c0_14 = arith.constant 0 : index
    %47 = vector.load %arg6[%c0_12, %c0_13, %c0_14] : memref<8x8x128xbf16, #tpu.memory_space<vmem>>, vector<8x8x128xbf16>
    tpu.vector_store %arg6[%c0_12, %c0_13, %c0_14], %46 {strides = array<i32>} : memref<8x8x128xbf16, #tpu.memory_space<vmem>>, vector<8x8x128xbf16>,
    return
  }
  func.func @transform_0(%arg0: i32, %arg1: i32) -> (i32, i32, i32) {
    %c0_i32 = arith.constant 0 : i32
    %c0_i32_0 = arith.constant 0 : i32
    return %arg0, %arg1, %c0_i32 : i32, i32, i32
  }
  func.func @transform_1(%arg0: i32, %arg1: i32) -> (i32, i32, i32) {
    %c1_i32 = arith.constant 1 : i32
    %0 = arith.subi %arg1, %c1_i32 : i32
    %c0_i32 = arith.constant 0 : i32
    %1 = arith.maxsi %0, %c0_i32 : i32
    %c0_i32_0 = arith.constant 0 : i32
    %c0_i32_1 = arith.constant 0 : i32
    return %arg0, %1, %c0_i32_0 : i32, i32, i32
  }
  func.func @transform_2(%arg0: i32, %arg1: i32) -> (i32, i32) {
    %c0_i32 = arith.constant 0 : i32
    %c0_i32_0 = arith.constant 0 : i32
    %c0_i32_1 = arith.constant 0 : i32
    return %c0_i32, %c0_i32_0 : i32, i32
  }
  func.func @transform_3(%arg0: i32, %arg1: i32) -> (i32, i32) {
    %c0_i32 = arith.constant 0 : i32
    %c0_i32_0 = arith.constant 0 : i32
    %c0_i32_1 = arith.constant 0 : i32
    return %c0_i32, %c0_i32_0 : i32, i32
  }
  func.func @transform_4(%arg0: i32, %arg1: i32) -> (i32, i32, i32) {
    %c0_i32 = arith.constant 0 : i32
    %c0_i32_0 = arith.constant 0 : i32
    return %arg0, %arg1, %c0_i32 : i32, i32, i32
  }
}

module attributes {stable_mosaic.version = 11 : i64} {
  func.func @_matmul_kernel(%arg0: i32, %arg1: i32, %arg2: i32, %arg3: memref<64x128xbf16, #tpu.memory_space<vmem>>, %arg4: memref<128x160xbf16, #tpu.memory_space<vmem>>, %arg5: memref<64x160xbf16, #tpu.memory_space<vmem>>, %arg6: memref<64x160xf32, #tpu.memory_space<vmem>>) attributes {dimension_semantics = [#tpu.dimension_semantics<parallel>, #tpu.dimension_semantics<parallel>, #tpu.dimension_semantics<arbitrary>], iteration_bounds = array<i64: 1, 1, 1>, scalar_prefetch = 0 : i64, scratch_operands = 1 : i64, tpu.core_type = #tpu.core_type<tc>, window_params = [{transform_indices = @transform_0, window_bounds = array<i64: 64, 128>}, {transform_indices = @transform_1, window_bounds = array<i64: 128, 160>}, {transform_indices = @transform_2, window_bounds = array<i64: 64, 160>}]} {
    %c0_i32 = arith.constant 0 : i32
    %0 = arith.cmpi eq, %arg2, %c0_i32 : i32
    %1 = arith.extui %0 : i1 to i32
    %c0_i32_0 = arith.constant 0 : i32
    %2 = arith.cmpi ne, %1, %c0_i32_0 : i32
    scf.if %2 {
      %cst_10 = arith.constant 0.000000e+00 : f32
      %12 = vector.broadcast %cst_10 : f32 to vector<64x160xf32>
      %c0_11 = arith.constant 0 : index
      %c0_12 = arith.constant 0 : index
      %13 = vector.load %arg6[%c0_11, %c0_12] : memref<64x160xf32, #tpu.memory_space<vmem>>, vector<64x160xf32>
      tpu.vector_store %arg6[%c0_11, %c0_12], %12 {strides = array<i32>} : memref<64x160xf32, #tpu.memory_space<vmem>>, vector<64x160xf32>,
    } else {
    }
    %c0 = arith.constant 0 : index
    %c0_1 = arith.constant 0 : index
    %3 = vector.load %arg6[%c0, %c0_1] : memref<64x160xf32, #tpu.memory_space<vmem>>, vector<64x160xf32>
    %c0_2 = arith.constant 0 : index
    %c0_3 = arith.constant 0 : index
    %4 = vector.load %arg3[%c0_2, %c0_3] : memref<64x128xbf16, #tpu.memory_space<vmem>>, vector<64x128xbf16>
    %c0_4 = arith.constant 0 : index
    %c0_5 = arith.constant 0 : index
    %5 = vector.load %arg4[%c0_4, %c0_5] : memref<128x160xbf16, #tpu.memory_space<vmem>>, vector<128x160xbf16>
    %cst = arith.constant dense<0.000000e+00> : vector<64x160xf32>
    %6 = tpu.matmul %4, %5, %cst {dimension_numbers = #tpu.dot_dimension_numbers<[1], [0], [0], [1], [0, 0, 1, 1], [], []>} : vector<64x128xbf16>, vector<128x160xbf16>, vector<64x160xf32> -> vector<64x160xf32>
    %7 = arith.addf %3, %6 : vector<64x160xf32>
    %c0_6 = arith.constant 0 : index
    %c0_7 = arith.constant 0 : index
    %8 = vector.load %arg6[%c0_6, %c0_7] : memref<64x160xf32, #tpu.memory_space<vmem>>, vector<64x160xf32>
    tpu.vector_store %arg6[%c0_6, %c0_7], %7 {strides = array<i32>} : memref<64x160xf32, #tpu.memory_space<vmem>>, vector<64x160xf32>,
    %c0_i32_8 = arith.constant 0 : i32
    %9 = arith.cmpi eq, %arg2, %c0_i32_8 : i32
    %10 = arith.extui %9 : i1 to i32
    %c0_i32_9 = arith.constant 0 : i32
    %11 = arith.cmpi ne, %10, %c0_i32_9 : i32
    scf.if %11 {
      %c0_10 = arith.constant 0 : index
      %c0_11 = arith.constant 0 : index
      %12 = vector.load %arg6[%c0_10, %c0_11] : memref<64x160xf32, #tpu.memory_space<vmem>>, vector<64x160xf32>
      %13 = arith.truncf %12 : vector<64x160xf32> to vector<64x160xbf16>
      %c0_12 = arith.constant 0 : index
      %c0_13 = arith.constant 0 : index
      %14 = vector.load %arg5[%c0_12, %c0_13] : memref<64x160xbf16, #tpu.memory_space<vmem>>, vector<64x160xbf16>
      tpu.vector_store %arg5[%c0_12, %c0_13], %13 {strides = array<i32>} : memref<64x160xbf16, #tpu.memory_space<vmem>>, vector<64x160xbf16>,
    } else {
    }
    return
  }
  func.func @transform_0(%arg0: i32, %arg1: i32, %arg2: i32) -> (i32, i32) {
    %c0_i32 = arith.constant 0 : i32
    return %arg0, %arg2 : i32, i32
  }
  func.func @transform_1(%arg0: i32, %arg1: i32, %arg2: i32) -> (i32, i32) {
    %c0_i32 = arith.constant 0 : i32
    return %arg2, %arg1 : i32, i32
  }
  func.func @transform_2(%arg0: i32, %arg1: i32, %arg2: i32) -> (i32, i32) {
    %c0_i32 = arith.constant 0 : i32
    return %arg0, %arg1 : i32, i32
  }
}

module attributes {stable_mosaic.version = 11 : i64} {
  func.func @_selective_scan_kernel(%arg0: i32, %arg1: i32, %arg2: memref<1x8x128xbf16, #tpu.memory_space<vmem>>, %arg3: memref<1x8x128xbf16, #tpu.memory_space<vmem>>, %arg4: memref<1x8x160xbf16, #tpu.memory_space<vmem>>, %arg5: memref<16x128xf32, #tpu.memory_space<vmem>>, %arg6: memref<1x128xf32, #tpu.memory_space<vmem>>, %arg7: memref<1x128xf32, #tpu.memory_space<vmem>>, %arg8: memref<1x8x128xbf16, #tpu.memory_space<vmem>>, %arg9: memref<8x16x128xf32, #tpu.memory_space<vmem>>, %arg10: memref<8x16x128xf32, #tpu.memory_space<vmem>>, %arg11: memref<1x16x128xf32, #tpu.memory_space<vmem>>) attributes {dimension_semantics = [#tpu.dimension_semantics<parallel>, #tpu.dimension_semantics<arbitrary>], iteration_bounds = array<i64: 8, 1>, scalar_prefetch = 0 : i64, scratch_operands = 3 : i64, tpu.core_type = #tpu.core_type<tc>, window_params = [{transform_indices = @transform_0, window_bounds = array<i64: 1, 8, 128>}, {transform_indices = @transform_1, window_bounds = array<i64: 1, 8, 128>}, {transform_indices = @transform_2, window_bounds = array<i64: 1, 8, 160>}, {pipeline_mode = #tpu.pipeline_mode<synchronous>, transform_indices = @transform_3, window_bounds = array<i64: 16, 128>}, {pipeline_mode = #tpu.pipeline_mode<synchronous>, transform_indices = @transform_4, window_bounds = array<i64: 1, 128>}, {pipeline_mode = #tpu.pipeline_mode<synchronous>, transform_indices = @transform_5, window_bounds = array<i64: 1, 128>}, {transform_indices = @transform_6, window_bounds = array<i64: 1, 8, 128>}]} {
    %c0_i32 = arith.constant 0 : i32
    %0 = arith.cmpi eq, %arg1, %c0_i32 : i32
    %1 = arith.extui %0 : i1 to i32
    %c0_i32_0 = arith.constant 0 : i32
    %2 = arith.cmpi ne, %1, %c0_i32_0 : i32
    scf.if %2 {
      %cst_40 = arith.constant 0.000000e+00 : f32
      %66 = vector.broadcast %cst_40 : f32 to vector<1x16x128xf32>
      %c0_41 = arith.constant 0 : index
      %c0_42 = arith.constant 0 : index
      %c0_43 = arith.constant 0 : index
      %67 = vector.load %arg11[%c0_41, %c0_42, %c0_43] : memref<1x16x128xf32, #tpu.memory_space<vmem>>, vector<1x16x128xf32>
      tpu.vector_store %arg11[%c0_41, %c0_42, %c0_43], %66 {strides = array<i32>} : memref<1x16x128xf32, #tpu.memory_space<vmem>>, vector<1x16x128xf32>,
    } else {
    }
    %c0 = arith.constant 0 : index
    %c0_1 = arith.constant 0 : index
    %c0_2 = arith.constant 0 : index
    %3 = vector.load %arg2[%c0, %c0_1, %c0_2] : memref<1x8x128xbf16, #tpu.memory_space<vmem>>, vector<1x8x128xbf16>
    %4 = vector.shape_cast %3 : vector<1x8x128xbf16> to vector<8x128xbf16>
    %5 = arith.extf %4 : vector<8x128xbf16> to vector<8x128xf32>
    %c0_3 = arith.constant 0 : index
    %c0_4 = arith.constant 0 : index
    %c0_5 = arith.constant 0 : index
    %6 = vector.load %arg4[%c0_3, %c0_4, %c0_5] : memref<1x8x160xbf16, #tpu.memory_space<vmem>>, vector<1x8x160xbf16>
    %7 = vector.shape_cast %6 : vector<1x8x160xbf16> to vector<8x160xbf16>
    %8 = arith.extf %7 : vector<8x160xbf16> to vector<8x160xf32>
    %9 = vector.extract_strided_slice %8 {offsets = [0, 0], sizes = [8, 128], strides = [1, 1]} : vector<8x160xf32> to vector<8x128xf32>
    %c0_6 = arith.constant 0 : index
    %c0_7 = arith.constant 0 : index
    %10 = vector.load %arg7[%c0_6, %c0_7] : memref<1x128xf32, #tpu.memory_space<vmem>>, vector<1x128xf32>
    %11 = vector.broadcast %10 : vector<1x128xf32> to vector<8x128xf32>
    %12 = arith.addf %9, %11 : vector<8x128xf32>
    %cst = arith.constant 2.000000e+01 : f32
    %13 = vector.broadcast %cst : f32 to vector<8x128xf32>
    %14 = arith.cmpf ogt, %12, %13 : vector<8x128xf32>
    %cst_8 = arith.constant 2.000000e+01 : f32
    %15 = vector.broadcast %cst_8 : f32 to vector<8x128xf32>
    %16 = arith.minimumf %12, %15 : vector<8x128xf32>
    %17 = math.exp %16 : vector<8x128xf32>
    %18 = math.log1p %17 : vector<8x128xf32>
    %19 = arith.select %14, %12, %18 : vector<8x128xi1>, vector<8x128xf32>
    %20 = vector.extract_strided_slice %8 {offsets = [0, 128], sizes = [8, 16], strides = [1, 1]} : vector<8x160xf32> to vector<8x16xf32>
    %21 = vector.extract_strided_slice %8 {offsets = [0, 144], sizes = [8, 16], strides = [1, 1]} : vector<8x160xf32> to vector<8x16xf32>
    %c0_9 = arith.constant 0 : index
    %c0_10 = arith.constant 0 : index
    %22 = vector.load %arg5[%c0_9, %c0_10] : memref<16x128xf32, #tpu.memory_space<vmem>>, vector<16x128xf32>
    %23 = vector.shape_cast %19 : vector<8x128xf32> to vector<8x1x128xf32>
    %24 = vector.shape_cast %22 : vector<16x128xf32> to vector<1x16x128xf32>
    %25 = vector.broadcast %23 : vector<8x1x128xf32> to vector<8x16x128xf32>
    %26 = vector.broadcast %24 : vector<1x16x128xf32> to vector<8x16x128xf32>
    %27 = arith.mulf %25, %26 : vector<8x16x128xf32>
    %28 = math.exp %27 : vector<8x16x128xf32>
    %c0_11 = arith.constant 0 : index
    %c0_12 = arith.constant 0 : index
    %c0_13 = arith.constant 0 : index
    %29 = vector.load %arg9[%c0_11, %c0_12, %c0_13] : memref<8x16x128xf32, #tpu.memory_space<vmem>>, vector<8x16x128xf32>
    tpu.vector_store %arg9[%c0_11, %c0_12, %c0_13], %28 {strides = array<i32>} : memref<8x16x128xf32, #tpu.memory_space<vmem>>, vector<8x16x128xf32>,
    %30 = vector.shape_cast %20 : vector<8x16xf32> to vector<8x16x1xf32>
    %31 = arith.mulf %19, %5 : vector<8x128xf32>
    %32 = vector.shape_cast %31 : vector<8x128xf32> to vector<8x1x128xf32>
    %33 = vector.broadcast %30 : vector<8x16x1xf32> to vector<8x16x128xf32>
    %34 = vector.broadcast %32 : vector<8x1x128xf32> to vector<8x16x128xf32>
    %35 = arith.mulf %33, %34 : vector<8x16x128xf32>
    %c0_14 = arith.constant 0 : index
    %c0_15 = arith.constant 0 : index
    %c0_16 = arith.constant 0 : index
    %36 = vector.load %arg10[%c0_14, %c0_15, %c0_16] : memref<8x16x128xf32, #tpu.memory_space<vmem>>, vector<8x16x128xf32>
    tpu.vector_store %arg10[%c0_14, %c0_15, %c0_16], %35 {strides = array<i32>} : memref<8x16x128xf32, #tpu.memory_space<vmem>>, vector<8x16x128xf32>,
    %c0_17 = arith.constant 0 : index
    %c0_18 = arith.constant 0 : index
    %c0_19 = arith.constant 0 : index
    %37 = vector.load %arg11[%c0_17, %c0_18, %c0_19] : memref<1x16x128xf32, #tpu.memory_space<vmem>>, vector<1x16x128xf32>
    %c0_i32_20 = arith.constant 0 : i32
    %c8_i32 = arith.constant 8 : i32
    %38 = arith.addi %c0_i32_20, %c8_i32 : i32
    %c1_i32 = arith.constant 1 : i32
    %39 = scf.for %arg12 = %c0_i32_20 to %38 step %c1_i32 iter_args(%arg13 = %37) -> (vector<1x16x128xf32>)  : i32 {
      %66 = arith.index_cast %arg12 : i32 to index
      %c0_40 = arith.constant 0 : index
      %c0_41 = arith.constant 0 : index
      %67 = vector.load %arg9[%66, %c0_40, %c0_41] : memref<8x16x128xf32, #tpu.memory_space<vmem>>, vector<1x16x128xf32>
      %68 = arith.mulf %67, %arg13 : vector<1x16x128xf32>
      %69 = arith.index_cast %arg12 : i32 to index
      %c0_42 = arith.constant 0 : index
      %c0_43 = arith.constant 0 : index
      %70 = vector.load %arg10[%69, %c0_42, %c0_43] : memref<8x16x128xf32, #tpu.memory_space<vmem>>, vector<1x16x128xf32>
      %71 = arith.addf %68, %70 : vector<1x16x128xf32>
      %72 = arith.index_cast %arg12 : i32 to index
      %c0_44 = arith.constant 0 : index
      %c0_45 = arith.constant 0 : index
      %73 = vector.load %arg10[%72, %c0_44, %c0_45] : memref<8x16x128xf32, #tpu.memory_space<vmem>>, vector<1x16x128xf32>
      tpu.vector_store %arg10[%72, %c0_44, %c0_45], %71 {strides = array<i32>} : memref<8x16x128xf32, #tpu.memory_space<vmem>>, vector<1x16x128xf32>,
      scf.yield %71 : vector<1x16x128xf32>
    }
    %c8_i32_21 = arith.constant 8 : i32
    %c0_22 = arith.constant 0 : index
    %c0_23 = arith.constant 0 : index
    %c0_24 = arith.constant 0 : index
    %40 = vector.load %arg11[%c0_22, %c0_23, %c0_24] : memref<1x16x128xf32, #tpu.memory_space<vmem>>, vector<1x16x128xf32>
    tpu.vector_store %arg11[%c0_22, %c0_23, %c0_24], %39 {strides = array<i32>} : memref<1x16x128xf32, #tpu.memory_space<vmem>>, vector<1x16x128xf32>,
    %41 = vector.shape_cast %21 : vector<8x16xf32> to vector<8x16x1xf32>
    %c0_25 = arith.constant 0 : index
    %c0_26 = arith.constant 0 : index
    %c0_27 = arith.constant 0 : index
    %42 = vector.load %arg10[%c0_25, %c0_26, %c0_27] : memref<8x16x128xf32, #tpu.memory_space<vmem>>, vector<8x16x128xf32>
    %43 = vector.broadcast %41 : vector<8x16x1xf32> to vector<8x16x128xf32>
    %44 = arith.mulf %43, %42 : vector<8x16x128xf32>
    %cst_28 = arith.constant dense<0.000000e+00> : vector<8x128xf32>
    %45 = vector.multi_reduction <add>, %44, %cst_28 [1] : vector<8x16x128xf32> to vector<8x128xf32>
    %c0_29 = arith.constant 0 : index
    %c0_30 = arith.constant 0 : index
    %c0_31 = arith.constant 0 : index
    %46 = vector.load %arg3[%c0_29, %c0_30, %c0_31] : memref<1x8x128xbf16, #tpu.memory_space<vmem>>, vector<1x8x128xbf16>
    %47 = vector.shape_cast %46 : vector<1x8x128xbf16> to vector<8x128xbf16>
    %48 = arith.extf %47 : vector<8x128xbf16> to vector<8x128xf32>
    %cst_32 = arith.constant 0.000000e+00 : f32
    %49 = vector.broadcast %cst_32 : f32 to vector<8x128xf32>
    %50 = arith.subf %49, %48 : vector<8x128xf32>
    %51 = math.exp %50 : vector<8x128xf32>
    %cst_33 = arith.constant 1.000000e+00 : f32
    %52 = vector.broadcast %cst_33 : f32 to vector<8x128xf32>
    %53 = arith.addf %52, %51 : vector<8x128xf32>
    %cst_34 = arith.constant 1.000000e+00 : f32
    %54 = vector.broadcast %cst_34 : f32 to vector<8x128xf32>
    %55 = arith.divf %54, %53 : vector<8x128xf32>
    %56 = arith.mulf %48, %55 : vector<8x128xf32>
    %c0_35 = arith.constant 0 : index
    %c0_36 = arith.constant 0 : index
    %57 = vector.load %arg6[%c0_35, %c0_36] : memref<1x128xf32, #tpu.memory_space<vmem>>, vector<1x128xf32>
    %58 = vector.broadcast %57 : vector<1x128xf32> to vector<8x128xf32>
    %59 = arith.mulf %5, %58 : vector<8x128xf32>
    %60 = arith.addf %45, %59 : vector<8x128xf32>
    %61 = arith.mulf %60, %56 : vector<8x128xf32>
    %62 = arith.truncf %61 : vector<8x128xf32> to vector<8x128xbf16>
    %c0_37 = arith.constant 0 : index
    %c0_38 = arith.constant 0 : index
    %c0_39 = arith.constant 0 : index
    %63 = vector.load %arg8[%c0_37, %c0_38, %c0_39] : memref<1x8x128xbf16, #tpu.memory_space<vmem>>, vector<1x8x128xbf16>
    %64 = vector.shape_cast %63 : vector<1x8x128xbf16> to vector<8x128xbf16>
    %65 = vector.shape_cast %62 : vector<8x128xbf16> to vector<1x8x128xbf16>
    tpu.vector_store %arg8[%c0_37, %c0_38, %c0_39], %65 {strides = array<i32>} : memref<1x8x128xbf16, #tpu.memory_space<vmem>>, vector<1x8x128xbf16>,
    return
  }
  func.func @transform_0(%arg0: i32, %arg1: i32) -> (i32, i32, i32) {
    %c0_i32 = arith.constant 0 : i32
    %c0_i32_0 = arith.constant 0 : i32
    return %arg0, %arg1, %c0_i32 : i32, i32, i32
  }
  func.func @transform_1(%arg0: i32, %arg1: i32) -> (i32, i32, i32) {
    %c1_i32 = arith.constant 1 : i32
    %c0_i32 = arith.constant 0 : i32
    return %arg0, %arg1, %c1_i32 : i32, i32, i32
  }
  func.func @transform_2(%arg0: i32, %arg1: i32) -> (i32, i32, i32) {
    %c0_i32 = arith.constant 0 : i32
    %c0_i32_0 = arith.constant 0 : i32
    return %arg0, %arg1, %c0_i32 : i32, i32, i32
  }
  func.func @transform_3(%arg0: i32, %arg1: i32) -> (i32, i32) {
    %c0_i32 = arith.constant 0 : i32
    %c0_i32_0 = arith.constant 0 : i32
    %c0_i32_1 = arith.constant 0 : i32
    return %c0_i32, %c0_i32_0 : i32, i32
  }
  func.func @transform_4(%arg0: i32, %arg1: i32) -> (i32, i32) {
    %c0_i32 = arith.constant 0 : i32
    %c0_i32_0 = arith.constant 0 : i32
    %c0_i32_1 = arith.constant 0 : i32
    return %c0_i32, %c0_i32_0 : i32, i32
  }
  func.func @transform_5(%arg0: i32, %arg1: i32) -> (i32, i32) {
    %c0_i32 = arith.constant 0 : i32
    %c0_i32_0 = arith.constant 0 : i32
    %c0_i32_1 = arith.constant 0 : i32
    return %c0_i32, %c0_i32_0 : i32, i32
  }
  func.func @transform_6(%arg0: i32, %arg1: i32) -> (i32, i32, i32) {
    %c0_i32 = arith.constant 0 : i32
    %c0_i32_0 = arith.constant 0 : i32
    return %arg0, %arg1, %c0_i32 : i32, i32, i32
  }
}

module attributes {stable_mosaic.version = 11 : i64} {
  func.func @_add_norm_kernel(%arg0: i32, %arg1: memref<64x64xf32, #tpu.memory_space<vmem>>, %arg2: memref<64x64xf32, #tpu.memory_space<vmem>>, %arg3: memref<1x64xf32, #tpu.memory_space<vmem>>, %arg4: memref<1x64xf32, #tpu.memory_space<vmem>>, %arg5: memref<64x64xbf16, #tpu.memory_space<vmem>>, %arg6: memref<64x64xf32, #tpu.memory_space<vmem>>) attributes {dimension_semantics = [#tpu.dimension_semantics<parallel>], iteration_bounds = array<i64: 1>, scalar_prefetch = 0 : i64, scratch_operands = 0 : i64, tpu.core_type = #tpu.core_type<tc>, window_params = [{transform_indices = @transform_0, window_bounds = array<i64: 64, 64>}, {transform_indices = @transform_1, window_bounds = array<i64: 64, 64>}, {pipeline_mode = #tpu.pipeline_mode<synchronous>, transform_indices = @transform_2, window_bounds = array<i64: 1, 64>}, {pipeline_mode = #tpu.pipeline_mode<synchronous>, transform_indices = @transform_3, window_bounds = array<i64: 1, 64>}, {transform_indices = @transform_4, window_bounds = array<i64: 64, 64>}, {transform_indices = @transform_5, window_bounds = array<i64: 64, 64>}]} {
    %c0 = arith.constant 0 : index
    %c0_0 = arith.constant 0 : index
    %0 = vector.load %arg1[%c0, %c0_0] : memref<64x64xf32, #tpu.memory_space<vmem>>, vector<64x64xf32>
    %c0_1 = arith.constant 0 : index
    %c0_2 = arith.constant 0 : index
    %1 = vector.load %arg2[%c0_1, %c0_2] : memref<64x64xf32, #tpu.memory_space<vmem>>, vector<64x64xf32>
    %2 = arith.addf %0, %1 : vector<64x64xf32>
    %c0_3 = arith.constant 0 : index
    %c0_4 = arith.constant 0 : index
    %3 = vector.load %arg6[%c0_3, %c0_4] : memref<64x64xf32, #tpu.memory_space<vmem>>, vector<64x64xf32>
    tpu.vector_store %arg6[%c0_3, %c0_4], %2 {strides = array<i32>} : memref<64x64xf32, #tpu.memory_space<vmem>>, vector<64x64xf32>,
    %cst = arith.constant dense<0.000000e+00> : vector<64xf32>
    %4 = vector.multi_reduction <add>, %2, %cst [1] : vector<64x64xf32> to vector<64xf32>
    %5 = vector.shape_cast %4 : vector<64xf32> to vector<64x1xf32>
    %cst_5 = arith.constant 6.400000e+01 : f32
    %6 = vector.broadcast %cst_5 : f32 to vector<64x1xf32>
    %7 = arith.divf %5, %6 : vector<64x1xf32>
    %8 = vector.broadcast %7 : vector<64x1xf32> to vector<64x64xf32>
    %9 = arith.subf %2, %8 : vector<64x64xf32>
    %10 = arith.mulf %9, %9 : vector<64x64xf32>
    %cst_6 = arith.constant dense<0.000000e+00> : vector<64xf32>
    %11 = vector.multi_reduction <add>, %10, %cst_6 [1] : vector<64x64xf32> to vector<64xf32>
    %12 = vector.shape_cast %11 : vector<64xf32> to vector<64x1xf32>
    %cst_7 = arith.constant 6.400000e+01 : f32
    %13 = vector.broadcast %cst_7 : f32 to vector<64x1xf32>
    %14 = arith.divf %12, %13 : vector<64x1xf32>
    %cst_8 = arith.constant 9.99999974E-6 : f32
    %15 = vector.broadcast %cst_8 : f32 to vector<64x1xf32>
    %16 = arith.addf %14, %15 : vector<64x1xf32>
    %17 = math.rsqrt %16 : vector<64x1xf32>
    %18 = vector.broadcast %17 : vector<64x1xf32> to vector<64x64xf32>
    %19 = arith.mulf %9, %18 : vector<64x64xf32>
    %c0_9 = arith.constant 0 : index
    %c0_10 = arith.constant 0 : index
    %20 = vector.load %arg3[%c0_9, %c0_10] : memref<1x64xf32, #tpu.memory_space<vmem>>, vector<1x64xf32>
    %21 = vector.broadcast %20 : vector<1x64xf32> to vector<64x64xf32>
    %22 = arith.mulf %19, %21 : vector<64x64xf32>
    %c0_11 = arith.constant 0 : index
    %c0_12 = arith.constant 0 : index
    %23 = vector.load %arg4[%c0_11, %c0_12] : memref<1x64xf32, #tpu.memory_space<vmem>>, vector<1x64xf32>
    %24 = vector.broadcast %23 : vector<1x64xf32> to vector<64x64xf32>
    %25 = arith.addf %22, %24 : vector<64x64xf32>
    %26 = arith.truncf %25 : vector<64x64xf32> to vector<64x64xbf16>
    %c0_13 = arith.constant 0 : index
    %c0_14 = arith.constant 0 : index
    %27 = vector.load %arg5[%c0_13, %c0_14] : memref<64x64xbf16, #tpu.memory_space<vmem>>, vector<64x64xbf16>
    tpu.vector_store %arg5[%c0_13, %c0_14], %26 {strides = array<i32>} : memref<64x64xbf16, #tpu.memory_space<vmem>>, vector<64x64xbf16>,
    return
  }
  func.func @transform_0(%arg0: i32) -> (i32, i32) {
    %c0_i32 = arith.constant 0 : i32
    %c0_i32_0 = arith.constant 0 : i32
    return %arg0, %c0_i32 : i32, i32
  }
  func.func @transform_1(%arg0: i32) -> (i32, i32) {
    %c0_i32 = arith.constant 0 : i32
    %c0_i32_0 = arith.constant 0 : i32
    return %arg0, %c0_i32 : i32, i32
  }
  func.func @transform_2(%arg0: i32) -> (i32, i32) {
    %c0_i32 = arith.constant 0 : i32
    %c0_i32_0 = arith.constant 0 : i32
    %c0_i32_1 = arith.constant 0 : i32
    return %c0_i32, %c0_i32_0 : i32, i32
  }
  func.func @transform_3(%arg0: i32) -> (i32, i32) {
    %c0_i32 = arith.constant 0 : i32
    %c0_i32_0 = arith.constant 0 : i32
    %c0_i32_1 = arith.constant 0 : i32
    return %c0_i32, %c0_i32_0 : i32, i32
  }
  func.func @transform_4(%arg0: i32) -> (i32, i32) {
    %c0_i32 = arith.constant 0 : i32
    %c0_i32_0 = arith.constant 0 : i32
    return %arg0, %c0_i32 : i32, i32
  }
  func.func @transform_5(%arg0: i32) -> (i32, i32) {
    %c0_i32 = arith.constant 0 : i32
    %c0_i32_0 = arith.constant 0 : i32
    return %arg0, %c0_i32 : i32, i32
  }
}

module attributes {stable_mosaic.version = 11 : i64} {
  func.func @_matmul_kernel(%arg0: i32, %arg1: i32, %arg2: i32, %arg3: memref<64x128xbf16, #tpu.memory_space<vmem>>, %arg4: memref<128x64xbf16, #tpu.memory_space<vmem>>, %arg5: memref<64x64xf32, #tpu.memory_space<vmem>>, %arg6: memref<64x64xf32, #tpu.memory_space<vmem>>) attributes {dimension_semantics = [#tpu.dimension_semantics<parallel>, #tpu.dimension_semantics<parallel>, #tpu.dimension_semantics<arbitrary>], iteration_bounds = array<i64: 1, 1, 1>, scalar_prefetch = 0 : i64, scratch_operands = 1 : i64, tpu.core_type = #tpu.core_type<tc>, window_params = [{transform_indices = @transform_0, window_bounds = array<i64: 64, 128>}, {transform_indices = @transform_1, window_bounds = array<i64: 128, 64>}, {transform_indices = @transform_2, window_bounds = array<i64: 64, 64>}]} {
    %c0_i32 = arith.constant 0 : i32
    %0 = arith.cmpi eq, %arg2, %c0_i32 : i32
    %1 = arith.extui %0 : i1 to i32
    %c0_i32_0 = arith.constant 0 : i32
    %2 = arith.cmpi ne, %1, %c0_i32_0 : i32
    scf.if %2 {
      %cst_10 = arith.constant 0.000000e+00 : f32
      %12 = vector.broadcast %cst_10 : f32 to vector<64x64xf32>
      %c0_11 = arith.constant 0 : index
      %c0_12 = arith.constant 0 : index
      %13 = vector.load %arg6[%c0_11, %c0_12] : memref<64x64xf32, #tpu.memory_space<vmem>>, vector<64x64xf32>
      tpu.vector_store %arg6[%c0_11, %c0_12], %12 {strides = array<i32>} : memref<64x64xf32, #tpu.memory_space<vmem>>, vector<64x64xf32>,
    } else {
    }
    %c0 = arith.constant 0 : index
    %c0_1 = arith.constant 0 : index
    %3 = vector.load %arg6[%c0, %c0_1] : memref<64x64xf32, #tpu.memory_space<vmem>>, vector<64x64xf32>
    %c0_2 = arith.constant 0 : index
    %c0_3 = arith.constant 0 : index
    %4 = vector.load %arg3[%c0_2, %c0_3] : memref<64x128xbf16, #tpu.memory_space<vmem>>, vector<64x128xbf16>
    %c0_4 = arith.constant 0 : index
    %c0_5 = arith.constant 0 : index
    %5 = vector.load %arg4[%c0_4, %c0_5] : memref<128x64xbf16, #tpu.memory_space<vmem>>, vector<128x64xbf16>
    %cst = arith.constant dense<0.000000e+00> : vector<64x64xf32>
    %6 = tpu.matmul %4, %5, %cst {dimension_numbers = #tpu.dot_dimension_numbers<[1], [0], [0], [1], [0, 0, 1, 1], [], []>} : vector<64x128xbf16>, vector<128x64xbf16>, vector<64x64xf32> -> vector<64x64xf32>
    %7 = arith.addf %3, %6 : vector<64x64xf32>
    %c0_6 = arith.constant 0 : index
    %c0_7 = arith.constant 0 : index
    %8 = vector.load %arg6[%c0_6, %c0_7] : memref<64x64xf32, #tpu.memory_space<vmem>>, vector<64x64xf32>
    tpu.vector_store %arg6[%c0_6, %c0_7], %7 {strides = array<i32>} : memref<64x64xf32, #tpu.memory_space<vmem>>, vector<64x64xf32>,
    %c0_i32_8 = arith.constant 0 : i32
    %9 = arith.cmpi eq, %arg2, %c0_i32_8 : i32
    %10 = arith.extui %9 : i1 to i32
    %c0_i32_9 = arith.constant 0 : i32
    %11 = arith.cmpi ne, %10, %c0_i32_9 : i32
    scf.if %11 {
      %c0_10 = arith.constant 0 : index
      %c0_11 = arith.constant 0 : index
      %12 = vector.load %arg6[%c0_10, %c0_11] : memref<64x64xf32, #tpu.memory_space<vmem>>, vector<64x64xf32>
      %c0_12 = arith.constant 0 : index
      %c0_13 = arith.constant 0 : index
      %13 = vector.load %arg5[%c0_12, %c0_13] : memref<64x64xf32, #tpu.memory_space<vmem>>, vector<64x64xf32>
      tpu.vector_store %arg5[%c0_12, %c0_13], %12 {strides = array<i32>} : memref<64x64xf32, #tpu.memory_space<vmem>>, vector<64x64xf32>,
    } else {
    }
    return
  }
  func.func @transform_0(%arg0: i32, %arg1: i32, %arg2: i32) -> (i32, i32) {
    %c0_i32 = arith.constant 0 : i32
    return %arg0, %arg2 : i32, i32
  }
  func.func @transform_1(%arg0: i32, %arg1: i32, %arg2: i32) -> (i32, i32) {
    %c0_i32 = arith.constant 0 : i32
    return %arg2, %arg1 : i32, i32
  }
  func.func @transform_2(%arg0: i32, %arg1: i32, %arg2: i32) -> (i32, i32) {
    %c0_i32 = arith.constant 0 : i32
    return %arg0, %arg1 : i32, i32
  }
}

module attributes {stable_mosaic.version = 11 : i64} {
  func.func @_matmul_kernel(%arg0: i32, %arg1: i32, %arg2: i32, %arg3: memref<64x64xbf16, #tpu.memory_space<vmem>>, %arg4: memref<64x256xbf16, #tpu.memory_space<vmem>>, %arg5: memref<64x256xbf16, #tpu.memory_space<vmem>>, %arg6: memref<64x256xf32, #tpu.memory_space<vmem>>) attributes {dimension_semantics = [#tpu.dimension_semantics<parallel>, #tpu.dimension_semantics<parallel>, #tpu.dimension_semantics<arbitrary>], iteration_bounds = array<i64: 1, 1, 1>, scalar_prefetch = 0 : i64, scratch_operands = 1 : i64, tpu.core_type = #tpu.core_type<tc>, window_params = [{transform_indices = @transform_0, window_bounds = array<i64: 64, 64>}, {transform_indices = @transform_1, window_bounds = array<i64: 64, 256>}, {transform_indices = @transform_2, window_bounds = array<i64: 64, 256>}]} {
    %c0_i32 = arith.constant 0 : i32
    %0 = arith.cmpi eq, %arg2, %c0_i32 : i32
    %1 = arith.extui %0 : i1 to i32
    %c0_i32_0 = arith.constant 0 : i32
    %2 = arith.cmpi ne, %1, %c0_i32_0 : i32
    scf.if %2 {
      %cst_10 = arith.constant 0.000000e+00 : f32
      %12 = vector.broadcast %cst_10 : f32 to vector<64x256xf32>
      %c0_11 = arith.constant 0 : index
      %c0_12 = arith.constant 0 : index
      %13 = vector.load %arg6[%c0_11, %c0_12] : memref<64x256xf32, #tpu.memory_space<vmem>>, vector<64x256xf32>
      tpu.vector_store %arg6[%c0_11, %c0_12], %12 {strides = array<i32>} : memref<64x256xf32, #tpu.memory_space<vmem>>, vector<64x256xf32>,
    } else {
    }
    %c0 = arith.constant 0 : index
    %c0_1 = arith.constant 0 : index
    %3 = vector.load %arg6[%c0, %c0_1] : memref<64x256xf32, #tpu.memory_space<vmem>>, vector<64x256xf32>
    %c0_2 = arith.constant 0 : index
    %c0_3 = arith.constant 0 : index
    %4 = vector.load %arg3[%c0_2, %c0_3] : memref<64x64xbf16, #tpu.memory_space<vmem>>, vector<64x64xbf16>
    %c0_4 = arith.constant 0 : index
    %c0_5 = arith.constant 0 : index
    %5 = vector.load %arg4[%c0_4, %c0_5] : memref<64x256xbf16, #tpu.memory_space<vmem>>, vector<64x256xbf16>
    %cst = arith.constant dense<0.000000e+00> : vector<64x256xf32>
    %6 = tpu.matmul %4, %5, %cst {dimension_numbers = #tpu.dot_dimension_numbers<[1], [0], [0], [1], [0, 0, 1, 1], [], []>} : vector<64x64xbf16>, vector<64x256xbf16>, vector<64x256xf32> -> vector<64x256xf32>
    %7 = arith.addf %3, %6 : vector<64x256xf32>
    %c0_6 = arith.constant 0 : index
    %c0_7 = arith.constant 0 : index
    %8 = vector.load %arg6[%c0_6, %c0_7] : memref<64x256xf32, #tpu.memory_space<vmem>>, vector<64x256xf32>
    tpu.vector_store %arg6[%c0_6, %c0_7], %7 {strides = array<i32>} : memref<64x256xf32, #tpu.memory_space<vmem>>, vector<64x256xf32>,
    %c0_i32_8 = arith.constant 0 : i32
    %9 = arith.cmpi eq, %arg2, %c0_i32_8 : i32
    %10 = arith.extui %9 : i1 to i32
    %c0_i32_9 = arith.constant 0 : i32
    %11 = arith.cmpi ne, %10, %c0_i32_9 : i32
    scf.if %11 {
      %c0_10 = arith.constant 0 : index
      %c0_11 = arith.constant 0 : index
      %12 = vector.load %arg6[%c0_10, %c0_11] : memref<64x256xf32, #tpu.memory_space<vmem>>, vector<64x256xf32>
      %13 = arith.truncf %12 : vector<64x256xf32> to vector<64x256xbf16>
      %c0_12 = arith.constant 0 : index
      %c0_13 = arith.constant 0 : index
      %14 = vector.load %arg5[%c0_12, %c0_13] : memref<64x256xbf16, #tpu.memory_space<vmem>>, vector<64x256xbf16>
      tpu.vector_store %arg5[%c0_12, %c0_13], %13 {strides = array<i32>} : memref<64x256xbf16, #tpu.memory_space<vmem>>, vector<64x256xbf16>,
    } else {
    }
    return
  }
  func.func @transform_0(%arg0: i32, %arg1: i32, %arg2: i32) -> (i32, i32) {
    %c0_i32 = arith.constant 0 : i32
    return %arg0, %arg2 : i32, i32
  }
  func.func @transform_1(%arg0: i32, %arg1: i32, %arg2: i32) -> (i32, i32) {
    %c0_i32 = arith.constant 0 : i32
    return %arg2, %arg1 : i32, i32
  }
  func.func @transform_2(%arg0: i32, %arg1: i32, %arg2: i32) -> (i32, i32) {
    %c0_i32 = arith.constant 0 : i32
    return %arg0, %arg1 : i32, i32
  }
}

module attributes {stable_mosaic.version = 11 : i64} {
  func.func @_add_norm_kernel(%arg0: i32, %arg1: memref<64x64xf32, #tpu.memory_space<vmem>>, %arg2: memref<64x64xf32, #tpu.memory_space<vmem>>, %arg3: memref<1x64xf32, #tpu.memory_space<vmem>>, %arg4: memref<1x64xf32, #tpu.memory_space<vmem>>, %arg5: memref<64x64xf32, #tpu.memory_space<vmem>>, %arg6: memref<64x64xf32, #tpu.memory_space<vmem>>) attributes {dimension_semantics = [#tpu.dimension_semantics<parallel>], iteration_bounds = array<i64: 1>, scalar_prefetch = 0 : i64, scratch_operands = 0 : i64, tpu.core_type = #tpu.core_type<tc>, window_params = [{transform_indices = @transform_0, window_bounds = array<i64: 64, 64>}, {transform_indices = @transform_1, window_bounds = array<i64: 64, 64>}, {pipeline_mode = #tpu.pipeline_mode<synchronous>, transform_indices = @transform_2, window_bounds = array<i64: 1, 64>}, {pipeline_mode = #tpu.pipeline_mode<synchronous>, transform_indices = @transform_3, window_bounds = array<i64: 1, 64>}, {transform_indices = @transform_4, window_bounds = array<i64: 64, 64>}, {transform_indices = @transform_5, window_bounds = array<i64: 64, 64>}]} {
    %c0 = arith.constant 0 : index
    %c0_0 = arith.constant 0 : index
    %0 = vector.load %arg1[%c0, %c0_0] : memref<64x64xf32, #tpu.memory_space<vmem>>, vector<64x64xf32>
    %c0_1 = arith.constant 0 : index
    %c0_2 = arith.constant 0 : index
    %1 = vector.load %arg2[%c0_1, %c0_2] : memref<64x64xf32, #tpu.memory_space<vmem>>, vector<64x64xf32>
    %2 = arith.addf %0, %1 : vector<64x64xf32>
    %c0_3 = arith.constant 0 : index
    %c0_4 = arith.constant 0 : index
    %3 = vector.load %arg6[%c0_3, %c0_4] : memref<64x64xf32, #tpu.memory_space<vmem>>, vector<64x64xf32>
    tpu.vector_store %arg6[%c0_3, %c0_4], %2 {strides = array<i32>} : memref<64x64xf32, #tpu.memory_space<vmem>>, vector<64x64xf32>,
    %cst = arith.constant dense<0.000000e+00> : vector<64xf32>
    %4 = vector.multi_reduction <add>, %2, %cst [1] : vector<64x64xf32> to vector<64xf32>
    %5 = vector.shape_cast %4 : vector<64xf32> to vector<64x1xf32>
    %cst_5 = arith.constant 6.400000e+01 : f32
    %6 = vector.broadcast %cst_5 : f32 to vector<64x1xf32>
    %7 = arith.divf %5, %6 : vector<64x1xf32>
    %8 = vector.broadcast %7 : vector<64x1xf32> to vector<64x64xf32>
    %9 = arith.subf %2, %8 : vector<64x64xf32>
    %10 = arith.mulf %9, %9 : vector<64x64xf32>
    %cst_6 = arith.constant dense<0.000000e+00> : vector<64xf32>
    %11 = vector.multi_reduction <add>, %10, %cst_6 [1] : vector<64x64xf32> to vector<64xf32>
    %12 = vector.shape_cast %11 : vector<64xf32> to vector<64x1xf32>
    %cst_7 = arith.constant 6.400000e+01 : f32
    %13 = vector.broadcast %cst_7 : f32 to vector<64x1xf32>
    %14 = arith.divf %12, %13 : vector<64x1xf32>
    %cst_8 = arith.constant 9.99999974E-6 : f32
    %15 = vector.broadcast %cst_8 : f32 to vector<64x1xf32>
    %16 = arith.addf %14, %15 : vector<64x1xf32>
    %17 = math.rsqrt %16 : vector<64x1xf32>
    %18 = vector.broadcast %17 : vector<64x1xf32> to vector<64x64xf32>
    %19 = arith.mulf %9, %18 : vector<64x64xf32>
    %c0_9 = arith.constant 0 : index
    %c0_10 = arith.constant 0 : index
    %20 = vector.load %arg3[%c0_9, %c0_10] : memref<1x64xf32, #tpu.memory_space<vmem>>, vector<1x64xf32>
    %21 = vector.broadcast %20 : vector<1x64xf32> to vector<64x64xf32>
    %22 = arith.mulf %19, %21 : vector<64x64xf32>
    %c0_11 = arith.constant 0 : index
    %c0_12 = arith.constant 0 : index
    %23 = vector.load %arg4[%c0_11, %c0_12] : memref<1x64xf32, #tpu.memory_space<vmem>>, vector<1x64xf32>
    %24 = vector.broadcast %23 : vector<1x64xf32> to vector<64x64xf32>
    %25 = arith.addf %22, %24 : vector<64x64xf32>
    %c0_13 = arith.constant 0 : index
    %c0_14 = arith.constant 0 : index
    %26 = vector.load %arg5[%c0_13, %c0_14] : memref<64x64xf32, #tpu.memory_space<vmem>>, vector<64x64xf32>
    tpu.vector_store %arg5[%c0_13, %c0_14], %25 {strides = array<i32>} : memref<64x64xf32, #tpu.memory_space<vmem>>, vector<64x64xf32>,
    return
  }
  func.func @transform_0(%arg0: i32) -> (i32, i32) {
    %c0_i32 = arith.constant 0 : i32
    %c0_i32_0 = arith.constant 0 : i32
    return %arg0, %c0_i32 : i32, i32
  }
  func.func @transform_1(%arg0: i32) -> (i32, i32) {
    %c0_i32 = arith.constant 0 : i32
    %c0_i32_0 = arith.constant 0 : i32
    return %arg0, %c0_i32 : i32, i32
  }
  func.func @transform_2(%arg0: i32) -> (i32, i32) {
    %c0_i32 = arith.constant 0 : i32
    %c0_i32_0 = arith.constant 0 : i32
    %c0_i32_1 = arith.constant 0 : i32
    return %c0_i32, %c0_i32_0 : i32, i32
  }
  func.func @transform_3(%arg0: i32) -> (i32, i32) {
    %c0_i32 = arith.constant 0 : i32
    %c0_i32_0 = arith.constant 0 : i32
    %c0_i32_1 = arith.constant 0 : i32
    return %c0_i32, %c0_i32_0 : i32, i32
  }
  func.func @transform_4(%arg0: i32) -> (i32, i32) {
    %c0_i32 = arith.constant 0 : i32
    %c0_i32_0 = arith.constant 0 : i32
    return %arg0, %c0_i32 : i32, i32
  }
  func.func @transform_5(%arg0: i32) -> (i32, i32) {
    %c0_i32 = arith.constant 0 : i32
    %c0_i32_0 = arith.constant 0 : i32
    return %arg0, %c0_i32 : i32, i32
  }
}

</mosaic_0001>

<llo_original>
// kernel: mixer_ts_forward.13
$region0: #{mixer_ts_forward.13}
  #allocation0 [shape = 'u32[]', space=smem, size = 0x4, offset = 0x4, fixed_abs, tag = 'smem constant byte address 0x4 - core index']
  #allocation1 [shape = 'u32[72,128]{1,0:T(1,128)}', space=vmem, size = 0x9000, scoped, tag = 'internal scratch']
  %s0 = inlined_call_operand.hbm [shape: f32[64,64], index: 0, kind: input, shape index: {}]
  %s1 = inlined_call_operand.vmem [shape: f32[64,64], index: 1, kind: input, shape index: {}]
  %s2 = inlined_call_operand.vmem [shape: f32[1,64], index: 2, kind: input, shape index: {}]
  %s3 = inlined_call_operand.vmem [shape: f32[1,64], index: 3, kind: input, shape index: {}]
  %s4 = inlined_call_operand.vmem [shape: bf16[64,64], index: 4, kind: output, shape index: {0}]
  %s5 = inlined_call_operand.vmem [shape: f32[64,64], index: 5, kind: output, shape index: {1}]
  %6 = xla_tuple %s4, %s5
  %s7 = sld [smem:[#allocation0]]
  $region38: #{mixer_ts_forward.13} parent=0
    _
  %s9 = ssub.s32 1, %s7
  %s10 = scalar_select 0, %s9, %s7
  $region1: #{mixer_ts_forward.13} parent=0
    #allocation2 [shape = 'u8[32768]{0}', space=vmem, size = 0x8000, scoped, tag = 'input window, operand 0, single buffered']
    #allocation3 [shape = 's32[1]{0}', space=sflag, size = 0x4, scoped, tag = 'scoped memory for mixer_ts_forward.13']
    %11 = vsyncpa [#allocation3], 0
    // Predicated region
    $region2: #{mixer_ts_forward.13} parent=1 // pred_check
      _
    $region3: #{mixer_ts_forward.13} parent=1 // pred_check_branch
      %13 = sbr.rel (0) target = $region5
    $region4: #{mixer_ts_forward.13} parent=1 // pred_region
      %15 = vsyncadd [#allocation3], 0
      %s16 = sshll.u32 %s0, 4
      %s17 = int_to_ptr.hbm [resolvable:$true] %s16
      %s18 = sshll.u32 [#allocation2], 4
      %s19 = int_to_ptr.vmem [resolvable:$true] %s18
      %24 = dma.hbm_to_vmem [thread:$0]  %s17, 1024, %s19, [#allocation3], 128, 128, 8
    $region5: #{mixer_ts_forward.13} parent=1 // pred_fallthru
      _
    // Predicated region
    $region6: #{mixer_ts_forward.13} parent=1 // pred_check
      _
    $region7: #{mixer_ts_forward.13} parent=1 // pred_check_branch
      %26 = sbr.rel (0) target = $region9
    $region8: #{mixer_ts_forward.13} parent=1 // pred_region
      _
    $region9: #{mixer_ts_forward.13} parent=1 // pred_fallthru
      _
    // Predicated region
    $region10: #{mixer_ts_forward.13} parent=1 // pred_check
      _
    $region11: #{mixer_ts_forward.13} parent=1 // pred_check_branch
      %28 = sbr.rel (0) target = $region13
    $region12: #{mixer_ts_forward.13} parent=1 // pred_region
      _
    $region13: #{mixer_ts_forward.13} parent=1 // pred_fallthru
      _
    // Predicated region
    $region14: #{mixer_ts_forward.13} parent=1 // pred_check
      _
    $region15: #{mixer_ts_forward.13} parent=1 // pred_check_branch
      %30 = sbr.rel (0) target = $region17
    $region16: #{mixer_ts_forward.13} parent=1 // pred_region
      _
    $region17: #{mixer_ts_forward.13} parent=1 // pred_fallthru
      _
    // Predicated region
    $region18: #{mixer_ts_forward.13} parent=1 // pred_check
      _
    $region19: #{mixer_ts_forward.13} parent=1 // pred_check_branch
      %32 = sbr.rel (0) target = $region21
    $region20: #{mixer_ts_forward.13} parent=1 // pred_region
      %34 = dma.done [#allocation3], 1024
    $region21: #{mixer_ts_forward.13} parent=1 // pred_fallthru
      _
    %v35 = vld [vmem:[#allocation2] sm:$0xff]
    %v36 = vld [vmem:[#allocation2 + $0x8] sm:$0xff]
    %v37 = vld [vmem:[#allocation2 + $0x10] sm:$0xff]
    %v38 = vld [vmem:[#allocation2 + $0x18] sm:$0xff]
    %v39 = vld [vmem:[#allocation2 + $0x20] sm:$0xff]
    %v40 = vld [vmem:[#allocation2 + $0x28] sm:$0xff]
    %v41 = vld [vmem:[#allocation2 + $0x30] sm:$0xff]
    %v42 = vld [vmem:[#allocation2 + $0x38] sm:$0xff]
    %v43 = vld [vmem:[%s1] sm:$0xff]
    %v44 = vld [vmem:[%s1 + $0x8] sm:$0xff]
    %v45 = vld [vmem:[%s1 + $0x10] sm:$0xff]
    %v46 = vld [vmem:[%s1 + $0x18] sm:$0xff]
    %v47 = vld [vmem:[%s1 + $0x20] sm:$0xff]
    %v48 = vld [vmem:[%s1 + $0x28] sm:$0xff]
    %v49 = vld [vmem:[%s1 + $0x30] sm:$0xff]
    %v50 = vld [vmem:[%s1 + $0x38] sm:$0xff]
    %v51 = vadd.f32 %v35, %v43
    %v52 = vadd.f32 %v36, %v44
    %v53 = vadd.f32 %v37, %v45
    %v54 = vadd.f32 %v38, %v46
    %v55 = vadd.f32 %v39, %v47
    %v56 = vadd.f32 %v40, %v48
    %v57 = vadd.f32 %v41, %v49
    %v58 = vadd.f32 %v42, %v50
    %vm59 = vcmask 523264
    %60 = vst.msk [vmem:[%s5] sm:$0xff] %vm59, %v51
    %61 = vst.msk [vmem:[%s5 + $0x8] sm:$0xff] %vm59, %v52
    %62 = vst.msk [vmem:[%s5 + $0x10] sm:$0xff] %vm59, %v53
    %63 = vst.msk [vmem:[%s5 + $0x18] sm:$0xff] %vm59, %v54
    %64 = vst.msk [vmem:[%s5 + $0x20] sm:$0xff] %vm59, %v55
    %65 = vst.msk [vmem:[%s5 + $0x28] sm:$0xff] %vm59, %v56
    %66 = vst.msk [vmem:[%s5 + $0x30] sm:$0xff] %vm59, %v57
    %67 = vst.msk [vmem:[%s5 + $0x38] sm:$0xff] %vm59, %v58
    %v68 = vsel %vm59, %v51, 0.0
    %69 = vadd.xlane.f32.xlu0 %v68
    %v70 = vpop.xlane.xlu0 %69
    %v71 = vsel %vm59, %v52, 0.0
    %72 = vadd.xlane.f32.xlu0 %v71
    %v73 = vpop.xlane.xlu0 %72
    %v74 = vsel %vm59, %v53, 0.0
    %75 = vadd.xlane.f32.xlu0 %v74
    %v76 = vpop.xlane.xlu0 %75
    %v77 = vsel %vm59, %v54, 0.0
    %78 = vadd.xlane.f32.xlu0 %v77
    %v79 = vpop.xlane.xlu0 %78
    %v80 = vsel %vm59, %v55, 0.0
    %81 = vadd.xlane.f32.xlu0 %v80
    %v82 = vpop.xlane.xlu0 %81
    %v83 = vsel %vm59, %v56, 0.0
    %84 = vadd.xlane.f32.xlu0 %v83
    %v85 = vpop.xlane.xlu0 %84
    %v86 = vsel %vm59, %v57, 0.0
    %87 = vadd.xlane.f32.xlu0 %v86
    %v88 = vpop.xlane.xlu0 %87
    %v89 = vsel %vm59, %v58, 0.0
    %90 = vadd.xlane.f32.xlu0 %v89
    %v91 = vpop.xlane.xlu0 %90
    %v92 = vrcp.pop 64.0
    %v93 = vmul.f32 64.0, %v92
    %v94 = vsub.f32 1.0, %v93
    %v95 = vmul.f32 %v92, %v94
    %v96 = vadd.f32 %v92, %v95
    %vm97 = vweird.f32 %v92
    %v98 = vsel %vm97, %v92, %v96
    %v99 = vmul.f32 %v70, %v98
    %v100 = vmul.f32 %v73, %v98
    %v101 = vmul.f32 %v76, %v98
    %v102 = vmul.f32 %v79, %v98
    %v103 = vmul.f32 %v82, %v98
    %v104 = vmul.f32 %v85, %v98
    %v105 = vmul.f32 %v88, %v98
    %v106 = vmul.f32 %v91, %v98
    %v107 = vsub.f32 %v51, %v99
    %v108 = vsub.f32 %v52, %v100
    %v109 = vsub.f32 %v53, %v101
    %v110 = vsub.f32 %v54, %v102
    %v111 = vsub.f32 %v55, %v103
    %v112 = vsub.f32 %v56, %v104
    %v113 = vsub.f32 %v57, %v105
    %v114 = vsub.f32 %v58, %v106
    %v115 = vmul.f32 %v107, %v107
    %v116 = vmul.f32 %v108, %v108
    %v117 = vmul.f32 %v109, %v109
    %v118 = vmul.f32 %v110, %v110
    %v119 = vmul.f32 %v111, %v111
    %v120 = vmul.f32 %v112, %v112
    %v121 = vmul.f32 %v113, %v113
    %v122 = vmul.f32 %v114, %v114
    %v123 = vsel %vm59, %v115, 0.0
    %124 = vadd.xlane.f32.xlu0 %v123
    %v125 = vpop.xlane.xlu0 %124
    %v126 = vsel %vm59, %v116, 0.0
    %127 = vadd.xlane.f32.xlu0 %v126
    %v128 = vpop.xlane.xlu0 %127
    %v129 = vsel %vm59, %v117, 0.0
    %130 = vadd.xlane.f32.xlu0 %v129
    %v131 = vpop.xlane.xlu0 %130
    %v132 = vsel %vm59, %v118, 0.0
    %133 = vadd.xlane.f32.xlu0 %v132
    %v134 = vpop.xlane.xlu0 %133
    %v135 = vsel %vm59, %v119, 0.0
    %136 = vadd.xlane.f32.xlu0 %v135
    %v137 = vpop.xlane.xlu0 %136
    %v138 = vsel %vm59, %v120, 0.0
    %139 = vadd.xlane.f32.xlu0 %v138
    %v140 = vpop.xlane.xlu0 %139
    %v141 = vsel %vm59, %v121, 0.0
    %142 = vadd.xlane.f32.xlu0 %v141
    %v143 = vpop.xlane.xlu0 %142
    %v144 = vsel %vm59, %v122, 0.0
    %145 = vadd.xlane.f32.xlu0 %v144
    %v146 = vpop.xlane.xlu0 %145
    %v147 = vmul.f32 %v125, %v98
    %v148 = vmul.f32 %v128, %v98
    %v149 = vmul.f32 %v131, %v98
    %v150 = vmul.f32 %v134, %v98
    %v151 = vmul.f32 %v137, %v98
    %v152 = vmul.f32 %v140, %v98
    %v153 = vmul.f32 %v143, %v98
    %v154 = vmul.f32 %v146, %v98
    %v155 = vadd.f32 %v147, 1e-05
    %v156 = vadd.f32 %v148, 1e-05
    %v157 = vadd.f32 %v149, 1e-05
    %v158 = vadd.f32 %v150, 1e-05
    %v159 = vadd.f32 %v151, 1e-05
    %v160 = vadd.f32 %v152, 1e-05
    %v161 = vadd.f32 %v153, 1e-05
    %v162 = vadd.f32 %v154, 1e-05
    %v163 = vrsqrt.pop %v155
    %v164 = vmul.f32 %v163, %v155
    %v165 = vmul.f32 %v164, %v163
    %v166 = vmul.f32 0.5, %v165
    %v167 = vsub.f32 1.5, %v166
    %v168 = vmul.f32 %v163, %v167
    %vm169 = vweird.f32 %v155
    %vm170 = vweird.f32 %v163
    %vm171 = vmor %vm169, %vm170
    %v172 = vsel %vm171, %v163, %v168
    %v173 = vrsqrt.pop %v156
    %v174 = vmul.f32 %v173, %v156
    %v175 = vmul.f32 %v174, %v173
    %v176 = vmul.f32 0.5, %v175
    %v177 = vsub.f32 1.5, %v176
    %v178 = vmul.f32 %v173, %v177
    %vm179 = vweird.f32 %v156
    %vm180 = vweird.f32 %v173
    %vm181 = vmor %vm179, %vm180
    %v182 = vsel %vm181, %v173, %v178
    %v183 = vrsqrt.pop %v157
    %v184 = vmul.f32 %v183, %v157
    %v185 = vmul.f32 %v184, %v183
    %v186 = vmul.f32 0.5, %v185
    %v187 = vsub.f32 1.5, %v186
    %v188 = vmul.f32 %v183, %v187
    %vm189 = vweird.f32 %v157
    %vm190 = vweird.f32 %v183
    %vm191 = vmor %vm189, %vm190
    %v192 = vsel %vm191, %v183, %v188
    %v193 = vrsqrt.pop %v158
    %v194 = vmul.f32 %v193, %v158
    %v195 = vmul.f32 %v194, %v193
    %v196 = vmul.f32 0.5, %v195
    %v197 = vsub.f32 1.5, %v196
    %v198 = vmul.f32 %v193, %v197
    %vm199 = vweird.f32 %v158
    %vm200 = vweird.f32 %v193
    %vm201 = vmor %vm199, %vm200
    %v202 = vsel %vm201, %v193, %v198
    %v203 = vrsqrt.pop %v159
    %v204 = vmul.f32 %v203, %v159
    %v205 = vmul.f32 %v204, %v203
    %v206 = vmul.f32 0.5, %v205
    %v207 = vsub.f32 1.5, %v206
    %v208 = vmul.f32 %v203, %v207
    %vm209 = vweird.f32 %v159
    %vm210 = vweird.f32 %v203
    %vm211 = vmor %vm209, %vm210
    %v212 = vsel %vm211, %v203, %v208
    %v213 = vrsqrt.pop %v160
    %v214 = vmul.f32 %v213, %v160
    %v215 = vmul.f32 %v214, %v213
    %v216 = vmul.f32 0.5, %v215
    %v217 = vsub.f32 1.5, %v216
    %v218 = vmul.f32 %v213, %v217
    %vm219 = vweird.f32 %v160
    %vm220 = vweird.f32 %v213
    %vm221 = vmor %vm219, %vm220
    %v222 = vsel %vm221, %v213, %v218
    %v223 = vrsqrt.pop %v161
    %v224 = vmul.f32 %v223, %v161
    %v225 = vmul.f32 %v224, %v223
    %v226 = vmul.f32 0.5, %v225
    %v227 = vsub.f32 1.5, %v226
    %v228 = vmul.f32 %v223, %v227
    %vm229 = vweird.f32 %v161
    %vm230 = vweird.f32 %v223
    %vm231 = vmor %vm229, %vm230
    %v232 = vsel %vm231, %v223, %v228
    %v233 = vrsqrt.pop %v162
    %v234 = vmul.f32 %v233, %v162
    %v235 = vmul.f32 %v234, %v233
    %v236 = vmul.f32 0.5, %v235
    %v237 = vsub.f32 1.5, %v236
    %v238 = vmul.f32 %v233, %v237
    %vm239 = vweird.f32 %v162
    %vm240 = vweird.f32 %v233
    %vm241 = vmor %vm239, %vm240
    %v242 = vsel %vm241, %v233, %v238
    %v243 = vmul.f32 %v107, %v172
    %v244 = vmul.f32 %v108, %v182
    %v245 = vmul.f32 %v109, %v192
    %v246 = vmul.f32 %v110, %v202
    %v247 = vmul.f32 %v111, %v212
    %v248 = vmul.f32 %v112, %v222
    %v249 = vmul.f32 %v113, %v232
    %v250 = vmul.f32 %v114, %v242
    %v251 = vld [vmem:[%s2] sm:$0x1]
    %v253 = vperm.slane %v251, 0
    %v255 = vmul.f32 %v243, %v253
    %v256 = vmul.f32 %v244, %v253
    %v257 = vmul.f32 %v245, %v253
    %v258 = vmul.f32 %v246, %v253
    %v259 = vmul.f32 %v247, %v253
    %v260 = vmul.f32 %v248, %v253
    %v261 = vmul.f32 %v249, %v253
    %v262 = vmul.f32 %v250, %v253
    %v263 = vld [vmem:[%s3] sm:$0x1]
    %v265 = vperm.slane %v263, 0
    %v267 = vadd.f32 %v255, %v265
    %v268 = vadd.f32 %v256, %v265
    %v269 = vadd.f32 %v257, %v265
    %v270 = vadd.f32 %v258, %v265
    %v271 = vadd.f32 %v259, %v265
    %v272 = vadd.f32 %v260, %v265
    %v273 = vadd.f32 %v261, %v265
    %v274 = vadd.f32 %v262, %v265
    %v275 = vpack.c.bf16 %v267, %v267
    %v276 = vpack.c.bf16 %v268, %v268
    %v277 = vpack.c.bf16 %v269, %v269
    %v278 = vpack.c.bf16 %v270, %v270
    %v279 = vpack.c.bf16 %v271, %v271
    %v280 = vpack.c.bf16 %v272, %v272
    %v281 = vpack.c.bf16 %v273, %v273
    %v282 = vpack.c.bf16 %v274, %v274
    %vm283 = vcmask 519168
    %284 = vst.msk [vmem:[%s4] sm:$0xf] %vm283, %v275
    %285 = vst.msk [vmem:[%s4 + $0x4] sm:$0xf] %vm283, %v276
    %286 = vst.msk [vmem:[%s4 + $0x8] sm:$0xf] %vm283, %v277
    %287 = vst.msk [vmem:[%s4 + $0xc] sm:$0xf] %vm283, %v278
    %288 = vst.msk [vmem:[%s4 + $0x10] sm:$0xf] %vm283, %v279
    %289 = vst.msk [vmem:[%s4 + $0x14] sm:$0xf] %vm283, %v280
    %290 = vst.msk [vmem:[%s4 + $0x18] sm:$0xf] %vm283, %v281
    %291 = vst.msk [vmem:[%s4 + $0x1c] sm:$0xf] %vm283, %v282
    // Predicated region
    $region22: #{mixer_ts_forward.13} parent=1 // pred_check
      _
    $region23: #{mixer_ts_forward.13} parent=1 // pred_check_branch
      %293 = sbr.rel (0) target = $region25
    $region24: #{mixer_ts_forward.13} parent=1 // pred_region
      _
    $region25: #{mixer_ts_forward.13} parent=1 // pred_fallthru
      _
    // Predicated region
    $region26: #{mixer_ts_forward.13} parent=1 // pred_check
      _
    $region27: #{mixer_ts_forward.13} parent=1 // pred_check_branch
      %295 = sbr.rel (0) target = $region29
    $region28: #{mixer_ts_forward.13} parent=1 // pred_region
      _
    $region29: #{mixer_ts_forward.13} parent=1 // pred_fallthru
      _
    // Predicated region
    $region30: #{mixer_ts_forward.13} parent=1 // pred_check
      _
    $region31: #{mixer_ts_forward.13} parent=1 // pred_check_branch
      %297 = sbr.rel (0) target = $region33
    $region32: #{mixer_ts_forward.13} parent=1 // pred_region
      _
    $region33: #{mixer_ts_forward.13} parent=1 // pred_fallthru
      _
    // Predicated region
    $region34: #{mixer_ts_forward.13} parent=1 // pred_check
      _
    $region35: #{mixer_ts_forward.13} parent=1 // pred_check_branch
      %299 = sbr.rel (0) target = $region37
    $region36: #{mixer_ts_forward.13} parent=1 // pred_region
      _
    $region37: #{mixer_ts_forward.13} parent=1 // pred_fallthru
      _
    %300 = vsyncpa [#allocation3], 1

// kernel: mixer_ts_forward.15
$region0: #{mixer_ts_forward.15}
  #allocation0 [shape = 'u32[]', space=smem, size = 0x4, offset = 0x4, fixed_abs, tag = 'smem constant byte address 0x4 - core index']
  #allocation1 [shape = 'u32[72,128]{1,0:T(1,128)}', space=vmem, size = 0x9000, scoped, tag = 'internal scratch']
  %s0 = inlined_call_operand.vmem [shape: bf16[8,8,256], index: 0, kind: input, shape index: {}, may-alias: {0,1}]
  %s1 = inlined_call_operand.vmem [shape: bf16[8,8,256], index: 1, kind: input, shape index: {}, may-alias: {0,1}]
  %s2 = inlined_call_operand.vmem [shape: f32[4,128], index: 2, kind: input, shape index: {}]
  %s3 = inlined_call_operand.vmem [shape: f32[1,128], index: 3, kind: input, shape index: {}]
  %s4 = inlined_call_operand.vmem [shape: bf16[8,8,128], index: 4, kind: output, shape index: {}]
  %s5 = sld [smem:[#allocation0]]
  $region108: #{mixer_ts_forward.15} parent=0
    _
  %s7 = ssub.s32 1, %s5
  %s8 = scalar_select 0, %s7, %s5
  $region1: #{mixer_ts_forward.15} parent=0
    #allocation2 [shape = 'u8[16384]{0}', space=vmem, size = 0x4000, scoped, tag = 'input window, operand 0, single buffered']
    #allocation3 [shape = 'u8[16384]{0}', space=vmem, size = 0x4000, scoped, tag = 'input window, operand 1, single buffered']
    // Predicated region
    $region2: #{mixer_ts_forward.15} parent=1 // pred_check
      _
    $region3: #{mixer_ts_forward.15} parent=1 // pred_check_branch
      %10 = sbr.rel (0) target = $region5
    $region4: #{mixer_ts_forward.15} parent=1 // pred_region
      // Predicated region
      $region6: #{mixer_ts_forward.15} parent=4 // pred_check
        _
      $region7: #{mixer_ts_forward.15} parent=4 // pred_check_branch
        %12 = sbr.rel (0) target = $region9
      $region8: #{mixer_ts_forward.15} parent=4 // pred_region
        // Predicated region
        $region10: #{mixer_ts_forward.15} parent=8 // pred_check
          _
        $region11: #{mixer_ts_forward.15} parent=8 // pred_check_branch
          %14 = sbr.rel target = $region13
        $region12: #{mixer_ts_forward.15} parent=8 // pred_region
          // Predicated region
          $region25: #{mixer_ts_forward.15} parent=12 // pred_check
            _
          $region26: #{mixer_ts_forward.15} parent=12 // pred_check_branch
            %44 = sbr.rel (0) target = $region28
          $region27: #{mixer_ts_forward.15} parent=12 // pred_region
            loop: start=0, step=1, limit=1
            $region29: #{mixer_ts_forward.15} parent=27 // loop_pre_header
              _
            $region30: #{mixer_ts_forward.15} parent=27 // loop_header
              %s46 = sphi 0, %s50
              %p47 = scmp.ge.s32.totalorder %s46, 1
              %s51 = sphi %s0, %s0
              %s52 = sphi [#allocation2], [#allocation2]
            $region31: #{mixer_ts_forward.15} parent=27 // loop_header_branch
              %49 = sbr.rel (%p47) target = $region35
            $region32: #{mixer_ts_forward.15} parent=27 // loop_body
              _
            $region33: #{mixer_ts_forward.15} parent=27 // loop_footer
              %s50 = sadd.s32 1, %s46
            $region34: #{mixer_ts_forward.15} parent=27 // loop_footer_branch
              %45 = sbr.rel target = $region30
            $region35: #{mixer_ts_forward.15} parent=27 // loop_exit
              _
            %s54 = ssub.s32 16, 1
            loop: start=0, step=1, limit=1
            $region36: #{mixer_ts_forward.15} parent=27 // loop_pre_header
              _
            $region37: #{mixer_ts_forward.15} parent=27 // loop_header
              %s56 = sphi 0, %s60
              %p57 = scmp.ge.s32.totalorder %s56, 1
              %s61 = sphi %s0, %s0
              %s62 = sphi [#allocation2], [#allocation2]
            $region38: #{mixer_ts_forward.15} parent=27 // loop_header_branch
              %59 = sbr.rel (%p57) target = $region42
            $region39: #{mixer_ts_forward.15} parent=27 // loop_body
              %v63 = vld [vmem:[%s61] sm:%s54]
              %64 = vst [vmem:[%s62] sm:%s54] %v63
              %v65 = vld [vmem:[%s61 + $0x8] sm:%s54]
              %66 = vst [vmem:[%s62 + $0x4] sm:%s54] %v65
              %v67 = vld [vmem:[%s61 + $0x10] sm:%s54]
              %68 = vst [vmem:[%s62 + $0x8] sm:%s54] %v67
              %v69 = vld [vmem:[%s61 + $0x18] sm:%s54]
              %70 = vst [vmem:[%s62 + $0xc] sm:%s54] %v69
              %v71 = vld [vmem:[%s61 + $0x20] sm:%s54]
              %72 = vst [vmem:[%s62 + $0x10] sm:%s54] %v71
              %v73 = vld [vmem:[%s61 + $0x28] sm:%s54]
              %74 = vst [vmem:[%s62 + $0x14] sm:%s54] %v73
              %v75 = vld [vmem:[%s61 + $0x30] sm:%s54]
              %76 = vst [vmem:[%s62 + $0x18] sm:%s54] %v75
              %v77 = vld [vmem:[%s61 + $0x38] sm:%s54]
              %78 = vst [vmem:[%s62 + $0x1c] sm:%s54] %v77
            $region40: #{mixer_ts_forward.15} parent=27 // loop_footer
              %s60 = sadd.s32 1, %s56
            $region41: #{mixer_ts_forward.15} parent=27 // loop_footer_branch
              %55 = sbr.rel target = $region37
            $region42: #{mixer_ts_forward.15} parent=27 // loop_exit
              _
          $region28: #{mixer_ts_forward.15} parent=12 // pred_fallthru
            _
        $region13: #{mixer_ts_forward.15} parent=8 // pred_fallthru
          _
        // Predicated region
        $region14: #{mixer_ts_forward.15} parent=8 // pred_check
          _
        $region15: #{mixer_ts_forward.15} parent=8 // pred_check_branch
          %16 = sbr.rel (0) target = $region17
        $region16: #{mixer_ts_forward.15} parent=8 // pred_region
          %s18 = ssub.s32 16, 1
          loop: start=0, step=1, limit=1
          $region18: #{mixer_ts_forward.15} parent=16 // loop_pre_header
            _
          $region19: #{mixer_ts_forward.15} parent=16 // loop_header
            %s20 = sphi 0, %s24
            %p21 = scmp.ge.s32.totalorder %s20, 1
            %s25 = sphi %s0, %s0
            %s26 = sphi [#allocation2], [#allocation2]
          $region20: #{mixer_ts_forward.15} parent=16 // loop_header_branch
            %23 = sbr.rel (%p21) target = $region24
          $region21: #{mixer_ts_forward.15} parent=16 // loop_body
            %v27 = vld [vmem:[%s25] sm:%s18]
            %28 = vst [vmem:[%s26] sm:%s18] %v27
            %v29 = vld [vmem:[%s25 + $0x8] sm:%s18]
            %30 = vst [vmem:[%s26 + $0x4] sm:%s18] %v29
            %v31 = vld [vmem:[%s25 + $0x10] sm:%s18]
            %32 = vst [vmem:[%s26 + $0x8] sm:%s18] %v31
            %v33 = vld [vmem:[%s25 + $0x18] sm:%s18]
            %34 = vst [vmem:[%s26 + $0xc] sm:%s18] %v33
            %v35 = vld [vmem:[%s25 + $0x20] sm:%s18]
            %36 = vst [vmem:[%s26 + $0x10] sm:%s18] %v35
            %v37 = vld [vmem:[%s25 + $0x28] sm:%s18]
            %38 = vst [vmem:[%s26 + $0x14] sm:%s18] %v37
            %v39 = vld [vmem:[%s25 + $0x30] sm:%s18]
            %40 = vst [vmem:[%s26 + $0x18] sm:%s18] %v39
            %v41 = vld [vmem:[%s25 + $0x38] sm:%s18]
            %42 = vst [vmem:[%s26 + $0x1c] sm:%s18] %v41
          $region22: #{mixer_ts_forward.15} parent=16 // loop_footer
            %s24 = sadd.s32 1, %s20
          $region23: #{mixer_ts_forward.15} parent=16 // loop_footer_branch
            %19 = sbr.rel target = $region19
          $region24: #{mixer_ts_forward.15} parent=16 // loop_exit
            _
        $region17: #{mixer_ts_forward.15} parent=8 // pred_fallthru
          _
      $region9: #{mixer_ts_forward.15} parent=4 // pred_fallthru
        _
      %79 = vnop
    $region5: #{mixer_ts_forward.15} parent=1 // pred_fallthru
      _
    // Predicated region
    $region43: #{mixer_ts_forward.15} parent=1 // pred_check
      _
    $region44: #{mixer_ts_forward.15} parent=1 // pred_check_branch
      %81 = sbr.rel (0) target = $region46
    $region45: #{mixer_ts_forward.15} parent=1 // pred_region
      %s82 = ssub.s32 0, 1
      %p83 = scmp.gt.s32.totalorder %s82, 0
      %s84 = scalar_select %p83, %s82, 0
      %s85 = smul.addr %s84, 2
      %s86 = smul.addr %s85, 4
      %s87 = scalar_lea.vmem %s1, %s86
      // Predicated region
      $region47: #{mixer_ts_forward.15} parent=45 // pred_check
        _
      $region48: #{mixer_ts_forward.15} parent=45 // pred_check_branch
        %89 = sbr.rel (0) target = $region50
      $region49: #{mixer_ts_forward.15} parent=45 // pred_region
        // Predicated region
        $region51: #{mixer_ts_forward.15} parent=49 // pred_check
          _
        $region52: #{mixer_ts_forward.15} parent=49 // pred_check_branch
          %91 = sbr.rel target = $region54
        $region53: #{mixer_ts_forward.15} parent=49 // pred_region
          // Predicated region
          $region66: #{mixer_ts_forward.15} parent=53 // pred_check
            _
          $region67: #{mixer_ts_forward.15} parent=53 // pred_check_branch
            %121 = sbr.rel (0) target = $region69
          $region68: #{mixer_ts_forward.15} parent=53 // pred_region
            loop: start=0, step=1, limit=1
            $region70: #{mixer_ts_forward.15} parent=68 // loop_pre_header
              _
            $region71: #{mixer_ts_forward.15} parent=68 // loop_header
              %s123 = sphi 0, %s127
              %p124 = scmp.ge.s32.totalorder %s123, 1
              %s128 = sphi %s87, %s87
              %s129 = sphi [#allocation3], [#allocation3]
            $region72: #{mixer_ts_forward.15} parent=68 // loop_header_branch
              %126 = sbr.rel (%p124) target = $region76
            $region73: #{mixer_ts_forward.15} parent=68 // loop_body
              _
            $region74: #{mixer_ts_forward.15} parent=68 // loop_footer
              %s127 = sadd.s32 1, %s123
            $region75: #{mixer_ts_forward.15} parent=68 // loop_footer_branch
              %122 = sbr.rel target = $region71
            $region76: #{mixer_ts_forward.15} parent=68 // loop_exit
              _
            %s131 = ssub.s32 16, 1
            loop: start=0, step=1, limit=1
            $region77: #{mixer_ts_forward.15} parent=68 // loop_pre_header
              _
            $region78: #{mixer_ts_forward.15} parent=68 // loop_header
              %s133 = sphi 0, %s137
              %p134 = scmp.ge.s32.totalorder %s133, 1
              %s138 = sphi %s87, %s87
              %s139 = sphi [#allocation3], [#allocation3]
            $region79: #{mixer_ts_forward.15} parent=68 // loop_header_branch
              %136 = sbr.rel (%p134) target = $region83
            $region80: #{mixer_ts_forward.15} parent=68 // loop_body
              %v140 = vld [vmem:[%s138] sm:%s131]
              %141 = vst [vmem:[%s139] sm:%s131] %v140
              %v142 = vld [vmem:[%s138 + $0x8] sm:%s131]
              %143 = vst [vmem:[%s139 + $0x4] sm:%s131] %v142
              %v144 = vld [vmem:[%s138 + $0x10] sm:%s131]
              %145 = vst [vmem:[%s139 + $0x8] sm:%s131] %v144
              %v146 = vld [vmem:[%s138 + $0x18] sm:%s131]
              %147 = vst [vmem:[%s139 + $0xc] sm:%s131] %v146
              %v148 = vld [vmem:[%s138 + $0x20] sm:%s131]
              %149 = vst [vmem:[%s139 + $0x10] sm:%s131] %v148
              %v150 = vld [vmem:[%s138 + $0x28] sm:%s131]
              %151 = vst [vmem:[%s139 + $0x14] sm:%s131] %v150
              %v152 = vld [vmem:[%s138 + $0x30] sm:%s131]
              %153 = vst [vmem:[%s139 + $0x18] sm:%s131] %v152
              %v154 = vld [vmem:[%s138 + $0x38] sm:%s131]
              %155 = vst [vmem:[%s139 + $0x1c] sm:%s131] %v154
            $region81: #{mixer_ts_forward.15} parent=68 // loop_footer
              %s137 = sadd.s32 1, %s133
            $region82: #{mixer_ts_forward.15} parent=68 // loop_footer_branch
              %132 = sbr.rel target = $region78
            $region83: #{mixer_ts_forward.15} parent=68 // loop_exit
              _
          $region69: #{mixer_ts_forward.15} parent=53 // pred_fallthru
            _
        $region54: #{mixer_ts_forward.15} parent=49 // pred_fallthru
          _
        // Predicated region
        $region55: #{mixer_ts_forward.15} parent=49 // pred_check
          _
        $region56: #{mixer_ts_forward.15} parent=49 // pred_check_branch
          %93 = sbr.rel (0) target = $region58
        $region57: #{mixer_ts_forward.15} parent=49 // pred_region
          %s95 = ssub.s32 16, 1
          loop: start=0, step=1, limit=1
          $region59: #{mixer_ts_forward.15} parent=57 // loop_pre_header
            _
          $region60: #{mixer_ts_forward.15} parent=57 // loop_header
            %s97 = sphi 0, %s101
            %p98 = scmp.ge.s32.totalorder %s97, 1
            %s102 = sphi %s87, %s87
            %s103 = sphi [#allocation3], [#allocation3]
          $region61: #{mixer_ts_forward.15} parent=57 // loop_header_branch
            %100 = sbr.rel (%p98) target = $region65
          $region62: #{mixer_ts_forward.15} parent=57 // loop_body
            %v104 = vld [vmem:[%s102] sm:%s95]
            %105 = vst [vmem:[%s103] sm:%s95] %v104
            %v106 = vld [vmem:[%s102 + $0x8] sm:%s95]
            %107 = vst [vmem:[%s103 + $0x4] sm:%s95] %v106
            %v108 = vld [vmem:[%s102 + $0x10] sm:%s95]
            %109 = vst [vmem:[%s103 + $0x8] sm:%s95] %v108
            %v110 = vld [vmem:[%s102 + $0x18] sm:%s95]
            %111 = vst [vmem:[%s103 + $0xc] sm:%s95] %v110
            %v112 = vld [vmem:[%s102 + $0x20] sm:%s95]
            %113 = vst [vmem:[%s103 + $0x10] sm:%s95] %v112
            %v114 = vld [vmem:[%s102 + $0x28] sm:%s95]
            %115 = vst [vmem:[%s103 + $0x14] sm:%s95] %v114
            %v116 = vld [vmem:[%s102 + $0x30] sm:%s95]
            %117 = vst [vmem:[%s103 + $0x18] sm:%s95] %v116
            %v118 = vld [vmem:[%s102 + $0x38] sm:%s95]
            %119 = vst [vmem:[%s103 + $0x1c] sm:%s95] %v118
          $region63: #{mixer_ts_forward.15} parent=57 // loop_footer
            %s101 = sadd.s32 1, %s97
          $region64: #{mixer_ts_forward.15} parent=57 // loop_footer_branch
            %96 = sbr.rel target = $region60
          $region65: #{mixer_ts_forward.15} parent=57 // loop_exit
            _
        $region58: #{mixer_ts_forward.15} parent=49 // pred_fallthru
          _
      $region50: #{mixer_ts_forward.15} parent=45 // pred_fallthru
        _
      %156 = vnop
    $region46: #{mixer_ts_forward.15} parent=1 // pred_fallthru
      _
    // Predicated region
    $region84: #{mixer_ts_forward.15} parent=1 // pred_check
      _
    $region85: #{mixer_ts_forward.15} parent=1 // pred_check_branch
      %158 = sbr.rel (0) target = $region87
    $region86: #{mixer_ts_forward.15} parent=1 // pred_region
      _
    $region87: #{mixer_ts_forward.15} parent=1 // pred_fallthru
      _
    // Predicated region
    $region88: #{mixer_ts_forward.15} parent=1 // pred_check
      _
    $region89: #{mixer_ts_forward.15} parent=1 // pred_check_branch
      %160 = sbr.rel (0) target = $region91
    $region90: #{mixer_ts_forward.15} parent=1 // pred_region
      _
    $region91: #{mixer_ts_forward.15} parent=1 // pred_fallthru
      _
    // Predicated region
    $region92: #{mixer_ts_forward.15} parent=1 // pred_check
      _
    $region93: #{mixer_ts_forward.15} parent=1 // pred_check_branch
      %162 = sbr.rel (0) target = $region95
    $region94: #{mixer_ts_forward.15} parent=1 // pred_region
      _
    $region95: #{mixer_ts_forward.15} parent=1 // pred_fallthru
      _
    // Predicated region
    $region96: #{mixer_ts_forward.15} parent=1 // pred_check
      _
    $region97: #{mixer_ts_forward.15} parent=1 // pred_check_branch
      %164 = sbr.rel (0) target = $region99
    $region98: #{mixer_ts_forward.15} parent=1 // pred_region
      _
    $region99: #{mixer_ts_forward.15} parent=1 // pred_fallthru
      _
    %s165 = ssub.s32 0, 1
    %p166 = scmp.gt.s32.totalorder %s165, 0
    %s167 = scalar_select %p166, %s165, 0
    %v168 = vld [vmem:[#allocation2] sm:$0xf]
    %v169 = vld [vmem:[#allocation2 + $0x4] sm:$0xf]
    %v170 = vld [vmem:[#allocation2 + $0x8] sm:$0xf]
    %v171 = vld [vmem:[#allocation2 + $0xc] sm:$0xf]
    %v172 = vld [vmem:[#allocation2 + $0x10] sm:$0xf]
    %v173 = vld [vmem:[#allocation2 + $0x14] sm:$0xf]
    %v174 = vld [vmem:[#allocation2 + $0x18] sm:$0xf]
    %v175 = vld [vmem:[#allocation2 + $0x1c] sm:$0xf]
    %v176 = vunpack.c.l.bf16 %v168
    %v177 = vunpack.c.l.bf16 %v169
    %v178 = vunpack.c.l.bf16 %v170
    %v179 = vunpack.c.l.bf16 %v171
    %v180 = vunpack.c.l.bf16 %v172
    %v181 = vunpack.c.l.bf16 %v173
    %v182 = vunpack.c.l.bf16 %v174
    %v183 = vunpack.c.l.bf16 %v175
    %v184 = vld [vmem:[%s2] sm:$0xf]
    %v185 = vld [vmem:[#allocation3] sm:$0xc]
    %v186 = vld [vmem:[#allocation3 + $0x4] sm:$0xc]
    %v187 = vld [vmem:[#allocation3 + $0x8] sm:$0xc]
    %v188 = vld [vmem:[#allocation3 + $0xc] sm:$0xc]
    %v189 = vld [vmem:[#allocation3 + $0x10] sm:$0xc]
    %v190 = vld [vmem:[#allocation3 + $0x14] sm:$0xc]
    %v191 = vld [vmem:[#allocation3 + $0x18] sm:$0xc]
    %v192 = vld [vmem:[#allocation3 + $0x1c] sm:$0xc]
    %v193 = vunpack.c.l.bf16 %v185
    %v194 = vunpack.c.l.bf16 %v186
    %v195 = vunpack.c.l.bf16 %v187
    %v196 = vunpack.c.l.bf16 %v188
    %v197 = vunpack.c.l.bf16 %v189
    %v198 = vunpack.c.l.bf16 %v190
    %v199 = vunpack.c.l.bf16 %v191
    %v200 = vunpack.c.l.bf16 %v192
    %p201 = scmp.eq.s32.totalorder 0, 0
    %s202 = scalar_select %p201, 1, 0
    %v203 = vstv %s202
    %vm204 = vcmp.eq.s32.totalorder %v203, 1
    %v205 = vsel %vm204, 0.0, %v193
    %v206 = vsel %vm204, 0.0, %v194
    %v207 = vsel %vm204, 0.0, %v195
    %v208 = vsel %vm204, 0.0, %v196
    %v209 = vsel %vm204, 0.0, %v197
    %v210 = vsel %vm204, 0.0, %v198
    %v211 = vsel %vm204, 0.0, %v199
    %v212 = vsel %vm204, 0.0, %v200
    %v221 = vrot.slane %v205, 5
    %v222 = vrot.slane %v206, 5
    %v223 = vrot.slane %v207, 5
    %v224 = vrot.slane %v208, 5
    %v225 = vrot.slane %v209, 5
    %v226 = vrot.slane %v210, 5
    %v227 = vrot.slane %v211, 5
    %v228 = vrot.slane %v212, 5
    %v245 = vrot.slane %v176, 5
    %v246 = vrot.slane %v177, 5
    %v247 = vrot.slane %v178, 5
    %v248 = vrot.slane %v179, 5
    %v249 = vrot.slane %v180, 5
    %v250 = vrot.slane %v181, 5
    %v251 = vrot.slane %v182, 5
    %v252 = vrot.slane %v183, 5
    %vm261 = vcmask 1042432
    %v262 = vsel %vm261, %v221, %v245
    %v263 = vsel %vm261, %v222, %v246
    %v264 = vsel %vm261, %v223, %v247
    %v265 = vsel %vm261, %v224, %v248
    %v266 = vsel %vm261, %v225, %v249
    %v267 = vsel %vm261, %v226, %v250
    %v268 = vsel %vm261, %v227, %v251
    %v269 = vsel %vm261, %v228, %v252
    %v270 = vperm.slane %v184, 0
    %v271 = vmul.f32 %v270, %v262
    %v272 = vmul.f32 %v270, %v263
    %v273 = vmul.f32 %v270, %v264
    %v274 = vmul.f32 %v270, %v265
    %v275 = vmul.f32 %v270, %v266
    %v276 = vmul.f32 %v270, %v267
    %v277 = vmul.f32 %v270, %v268
    %v278 = vmul.f32 %v270, %v269
    %v279 = vadd.f32 %v271, 0.0
    %v280 = vadd.f32 %v272, 0.0
    %v281 = vadd.f32 %v273, 0.0
    %v282 = vadd.f32 %v274, 0.0
    %v283 = vadd.f32 %v275, 0.0
    %v284 = vadd.f32 %v276, 0.0
    %v285 = vadd.f32 %v277, 0.0
    %v286 = vadd.f32 %v278, 0.0
    %v287 = vperm.slane %v184, 1
    %v288 = vmul.f32 %v287, %v262
    %v289 = vmul.f32 %v287, %v245
    %v290 = vmul.f32 %v287, %v263
    %v291 = vmul.f32 %v287, %v246
    %v292 = vmul.f32 %v287, %v264
    %v293 = vmul.f32 %v287, %v247
    %v294 = vmul.f32 %v287, %v265
    %v295 = vmul.f32 %v287, %v248
    %v296 = vmul.f32 %v287, %v266
    %v297 = vmul.f32 %v287, %v249
    %v298 = vmul.f32 %v287, %v267
    %v299 = vmul.f32 %v287, %v250
    %v300 = vmul.f32 %v287, %v268
    %v301 = vmul.f32 %v287, %v251
    %v302 = vmul.f32 %v287, %v269
    %v303 = vmul.f32 %v287, %v252
    %vm320 = vcmask 1046528
    %v321 = vrot.slane %v288, 1
    %v322 = vrot.slane %v289, 1
    %v323 = vsel %vm320, %v321, %v322
    %v324 = vrot.slane %v290, 1
    %v325 = vrot.slane %v291, 1
    %v326 = vsel %vm320, %v324, %v325
    %v327 = vrot.slane %v292, 1
    %v328 = vrot.slane %v293, 1
    %v329 = vsel %vm320, %v327, %v328
    %v330 = vrot.slane %v294, 1
    %v331 = vrot.slane %v295, 1
    %v332 = vsel %vm320, %v330, %v331
    %v333 = vrot.slane %v296, 1
    %v334 = vrot.slane %v297, 1
    %v335 = vsel %vm320, %v333, %v334
    %v336 = vrot.slane %v298, 1
    %v337 = vrot.slane %v299, 1
    %v338 = vsel %vm320, %v336, %v337
    %v339 = vrot.slane %v300, 1
    %v340 = vrot.slane %v301, 1
    %v341 = vsel %vm320, %v339, %v340
    %v342 = vrot.slane %v302, 1
    %v343 = vrot.slane %v303, 1
    %v344 = vsel %vm320, %v342, %v343
    %v353 = vadd.f32 %v279, %v323
    %v354 = vadd.f32 %v280, %v326
    %v355 = vadd.f32 %v281, %v329
    %v356 = vadd.f32 %v282, %v332
    %v357 = vadd.f32 %v283, %v335
    %v358 = vadd.f32 %v284, %v338
    %v359 = vadd.f32 %v285, %v341
    %v360 = vadd.f32 %v286, %v344
    %v361 = vperm.slane %v184, 2
    %v362 = vmul.f32 %v361, %v262
    %v363 = vmul.f32 %v361, %v245
    %v364 = vmul.f32 %v361, %v263
    %v365 = vmul.f32 %v361, %v246
    %v366 = vmul.f32 %v361, %v264
    %v367 = vmul.f32 %v361, %v247
    %v368 = vmul.f32 %v361, %v265
    %v369 = vmul.f32 %v361, %v248
    %v370 = vmul.f32 %v361, %v266
    %v371 = vmul.f32 %v361, %v249
    %v372 = vmul.f32 %v361, %v267
    %v373 = vmul.f32 %v361, %v250
    %v374 = vmul.f32 %v361, %v268
    %v375 = vmul.f32 %v361, %v251
    %v376 = vmul.f32 %v361, %v269
    %v377 = vmul.f32 %v361, %v252
    %vm394 = vcmask 1045504
    %v395 = vrot.slane %v362, 2
    %v396 = vrot.slane %v363, 2
    %v397 = vsel %vm394, %v395, %v396
    %v398 = vrot.slane %v364, 2
    %v399 = vrot.slane %v365, 2
    %v400 = vsel %vm394, %v398, %v399
    %v401 = vrot.slane %v366, 2
    %v402 = vrot.slane %v367, 2
    %v403 = vsel %vm394, %v401, %v402
    %v404 = vrot.slane %v368, 2
    %v405 = vrot.slane %v369, 2
    %v406 = vsel %vm394, %v404, %v405
    %v407 = vrot.slane %v370, 2
    %v408 = vrot.slane %v371, 2
    %v409 = vsel %vm394, %v407, %v408
    %v410 = vrot.slane %v372, 2
    %v411 = vrot.slane %v373, 2
    %v412 = vsel %vm394, %v410, %v411
    %v413 = vrot.slane %v374, 2
    %v414 = vrot.slane %v375, 2
    %v415 = vsel %vm394, %v413, %v414
    %v416 = vrot.slane %v376, 2
    %v417 = vrot.slane %v377, 2
    %v418 = vsel %vm394, %v416, %v417
    %v427 = vadd.f32 %v353, %v397
    %v428 = vadd.f32 %v354, %v400
    %v429 = vadd.f32 %v355, %v403
    %v430 = vadd.f32 %v356, %v406
    %v431 = vadd.f32 %v357, %v409
    %v432 = vadd.f32 %v358, %v412
    %v433 = vadd.f32 %v359, %v415
    %v434 = vadd.f32 %v360, %v418
    %v435 = vperm.slane %v184, 3
    %v436 = vmul.f32 %v435, %v262
    %v437 = vmul.f32 %v435, %v245
    %v438 = vmul.f32 %v435, %v263
    %v439 = vmul.f32 %v435, %v246
    %v440 = vmul.f32 %v435, %v264
    %v441 = vmul.f32 %v435, %v247
    %v442 = vmul.f32 %v435, %v265
    %v443 = vmul.f32 %v435, %v248
    %v444 = vmul.f32 %v435, %v266
    %v445 = vmul.f32 %v435, %v249
    %v446 = vmul.f32 %v435, %v267
    %v447 = vmul.f32 %v435, %v250
    %v448 = vmul.f32 %v435, %v268
    %v449 = vmul.f32 %v435, %v251
    %v450 = vmul.f32 %v435, %v269
    %v451 = vmul.f32 %v435, %v252
    %vm468 = vcmask 1044480
    %v469 = vrot.slane %v436, 3
    %v470 = vrot.slane %v437, 3
    %v471 = vsel %vm468, %v469, %v470
    %v472 = vrot.slane %v438, 3
    %v473 = vrot.slane %v439, 3
    %v474 = vsel %vm468, %v472, %v473
    %v475 = vrot.slane %v440, 3
    %v476 = vrot.slane %v441, 3
    %v477 = vsel %vm468, %v475, %v476
    %v478 = vrot.slane %v442, 3
    %v479 = vrot.slane %v443, 3
    %v480 = vsel %vm468, %v478, %v479
    %v481 = vrot.slane %v444, 3
    %v482 = vrot.slane %v445, 3
    %v483 = vsel %vm468, %v481, %v482
    %v484 = vrot.slane %v446, 3
    %v485 = vrot.slane %v447, 3
    %v486 = vsel %vm468, %v484, %v485
    %v487 = vrot.slane %v448, 3
    %v488 = vrot.slane %v449, 3
    %v489 = vsel %vm468, %v487, %v488
    %v490 = vrot.slane %v450, 3
    %v491 = vrot.slane %v451, 3
    %v492 = vsel %vm468, %v490, %v491
    %v501 = vadd.f32 %v427, %v471
    %v502 = vadd.f32 %v428, %v474
    %v503 = vadd.f32 %v429, %v477
    %v504 = vadd.f32 %v430, %v480
    %v505 = vadd.f32 %v431, %v483
    %v506 = vadd.f32 %v432, %v486
    %v507 = vadd.f32 %v433, %v489
    %v508 = vadd.f32 %v434, %v492
    %v509 = vld [vmem:[%s3] sm:$0x1]
    %v511 = vperm.slane %v509, 0
    %v513 = vadd.f32 %v501, %v511
    %v514 = vadd.f32 %v502, %v511
    %v515 = vadd.f32 %v503, %v511
    %v516 = vadd.f32 %v504, %v511
    %v517 = vadd.f32 %v505, %v511
    %v518 = vadd.f32 %v506, %v511
    %v519 = vadd.f32 %v507, %v511
    %v520 = vadd.f32 %v508, %v511
    %v521 = vsub.f32 0.0, %v513
    %v522 = vsub.f32 0.0, %v514
    %v523 = vsub.f32 0.0, %v515
    %v524 = vsub.f32 0.0, %v516
    %v525 = vsub.f32 0.0, %v517
    %v526 = vsub.f32 0.0, %v518
    %v527 = vsub.f32 0.0, %v519
    %v528 = vsub.f32 0.0, %v520
    %v529 = vmul.f32 %v521, 1.442695
    %v530 = vpow.pop %v529
    %v531 = vmul.f32 %v522, 1.442695
    %v532 = vpow.pop %v531
    %v533 = vmul.f32 %v523, 1.442695
    %v534 = vpow.pop %v533
    %v535 = vmul.f32 %v524, 1.442695
    %v536 = vpow.pop %v535
    %v537 = vmul.f32 %v525, 1.442695
    %v538 = vpow.pop %v537
    %v539 = vmul.f32 %v526, 1.442695
    %v540 = vpow.pop %v539
    %v541 = vmul.f32 %v527, 1.442695
    %v542 = vpow.pop %v541
    %v543 = vmul.f32 %v528, 1.442695
    %v544 = vpow.pop %v543
    %v545 = vadd.f32 %v530, 1.0
    %v546 = vadd.f32 %v532, 1.0
    %v547 = vadd.f32 %v534, 1.0
    %v548 = vadd.f32 %v536, 1.0
    %v549 = vadd.f32 %v538, 1.0
    %v550 = vadd.f32 %v540, 1.0
    %v551 = vadd.f32 %v542, 1.0
    %v552 = vadd.f32 %v544, 1.0
    %v553 = vrcp.pop %v545
    %v554 = vmul.f32 %v545, %v553
    %v555 = vsub.f32 1.0, %v554
    %v556 = vmul.f32 %v553, %v555
    %v557 = vadd.f32 %v553, %v556
    %vm558 = vweird.f32 %v545
    %vm559 = vweird.f32 %v553
    %vm560 = vmor %vm558, %vm559
    %v561 = vsel %vm560, %v553, %v557
    %v562 = vand.u32 2147483647, %v545
    %vm563 = vcmp.eq.f32.partialorder %v562, 8.507059e+37
    %v564 = vand.u32 %v545, 2147483648
    %v565 = vor.u32 1.1754944e-38, %v564
    %v566 = vsel %vm563, %v565, %v561
    %v567 = vmul.f32 1.0, %v566
    %v568 = vrcp.pop %v546
    %v569 = vmul.f32 %v546, %v568
    %v570 = vsub.f32 1.0, %v569
    %v571 = vmul.f32 %v568, %v570
    %v572 = vadd.f32 %v568, %v571
    %vm573 = vweird.f32 %v546
    %vm574 = vweird.f32 %v568
    %vm575 = vmor %vm573, %vm574
    %v576 = vsel %vm575, %v568, %v572
    %v577 = vand.u32 2147483647, %v546
    %vm578 = vcmp.eq.f32.partialorder %v577, 8.507059e+37
    %v579 = vand.u32 %v546, 2147483648
    %v580 = vor.u32 1.1754944e-38, %v579
    %v581 = vsel %vm578, %v580, %v576
    %v582 = vmul.f32 1.0, %v581
    %v583 = vrcp.pop %v547
    %v584 = vmul.f32 %v547, %v583
    %v585 = vsub.f32 1.0, %v584
    %v586 = vmul.f32 %v583, %v585
    %v587 = vadd.f32 %v583, %v586
    %vm588 = vweird.f32 %v547
    %vm589 = vweird.f32 %v583
    %vm590 = vmor %vm588, %vm589
    %v591 = vsel %vm590, %v583, %v587
    %v592 = vand.u32 2147483647, %v547
    %vm593 = vcmp.eq.f32.partialorder %v592, 8.507059e+37
    %v594 = vand.u32 %v547, 2147483648
    %v595 = vor.u32 1.1754944e-38, %v594
    %v596 = vsel %vm593, %v595, %v591
    %v597 = vmul.f32 1.0, %v596
    %v598 = vrcp.pop %v548
    %v599 = vmul.f32 %v548, %v598
    %v600 = vsub.f32 1.0, %v599
    %v601 = vmul.f32 %v598, %v600
    %v602 = vadd.f32 %v598, %v601
    %vm603 = vweird.f32 %v548
    %vm604 = vweird.f32 %v598
    %vm605 = vmor %vm603, %vm604
    %v606 = vsel %vm605, %v598, %v602
    %v607 = vand.u32 2147483647, %v548
    %vm608 = vcmp.eq.f32.partialorder %v607, 8.507059e+37
    %v609 = vand.u32 %v548, 2147483648
    %v610 = vor.u32 1.1754944e-38, %v609
    %v611 = vsel %vm608, %v610, %v606
    %v612 = vmul.f32 1.0, %v611
    %v613 = vrcp.pop %v549
    %v614 = vmul.f32 %v549, %v613
    %v615 = vsub.f32 1.0, %v614
    %v616 = vmul.f32 %v613, %v615
    %v617 = vadd.f32 %v613, %v616
    %vm618 = vweird.f32 %v549
    %vm619 = vweird.f32 %v613
    %vm620 = vmor %vm618, %vm619
    %v621 = vsel %vm620, %v613, %v617
    %v622 = vand.u32 2147483647, %v549
    %vm623 = vcmp.eq.f32.partialorder %v622, 8.507059e+37
    %v624 = vand.u32 %v549, 2147483648
    %v625 = vor.u32 1.1754944e-38, %v624
    %v626 = vsel %vm623, %v625, %v621
    %v627 = vmul.f32 1.0, %v626
    %v628 = vrcp.pop %v550
    %v629 = vmul.f32 %v550, %v628
    %v630 = vsub.f32 1.0, %v629
    %v631 = vmul.f32 %v628, %v630
    %v632 = vadd.f32 %v628, %v631
    %vm633 = vweird.f32 %v550
    %vm634 = vweird.f32 %v628
    %vm635 = vmor %vm633, %vm634
    %v636 = vsel %vm635, %v628, %v632
    %v637 = vand.u32 2147483647, %v550
    %vm638 = vcmp.eq.f32.partialorder %v637, 8.507059e+37
    %v639 = vand.u32 %v550, 2147483648
    %v640 = vor.u32 1.1754944e-38, %v639
    %v641 = vsel %vm638, %v640, %v636
    %v642 = vmul.f32 1.0, %v641
    %v643 = vrcp.pop %v551
    %v644 = vmul.f32 %v551, %v643
    %v645 = vsub.f32 1.0, %v644
    %v646 = vmul.f32 %v643, %v645
    %v647 = vadd.f32 %v643, %v646
    %vm648 = vweird.f32 %v551
    %vm649 = vweird.f32 %v643
    %vm650 = vmor %vm648, %vm649
    %v651 = vsel %vm650, %v643, %v647
    %v652 = vand.u32 2147483647, %v551
    %vm653 = vcmp.eq.f32.partialorder %v652, 8.507059e+37
    %v654 = vand.u32 %v551, 2147483648
    %v655 = vor.u32 1.1754944e-38, %v654
    %v656 = vsel %vm653, %v655, %v651
    %v657 = vmul.f32 1.0, %v656
    %v658 = vrcp.pop %v552
    %v659 = vmul.f32 %v552, %v658
    %v660 = vsub.f32 1.0, %v659
    %v661 = vmul.f32 %v658, %v660
    %v662 = vadd.f32 %v658, %v661
    %vm663 = vweird.f32 %v552
    %vm664 = vweird.f32 %v658
    %vm665 = vmor %vm663, %vm664
    %v666 = vsel %vm665, %v658, %v662
    %v667 = vand.u32 2147483647, %v552
    %vm668 = vcmp.eq.f32.partialorder %v667, 8.507059e+37
    %v669 = vand.u32 %v552, 2147483648
    %v670 = vor.u32 1.1754944e-38, %v669
    %v671 = vsel %vm668, %v670, %v666
    %v672 = vmul.f32 1.0, %v671
    %v673 = vmul.f32 %v513, %v567
    %v674 = vmul.f32 %v514, %v582
    %v675 = vmul.f32 %v515, %v597
    %v676 = vmul.f32 %v516, %v612
    %v677 = vmul.f32 %v517, %v627
    %v678 = vmul.f32 %v518, %v642
    %v679 = vmul.f32 %v519, %v657
    %v680 = vmul.f32 %v520, %v672
    %v681 = vpack.c.bf16 %v673, %v673
    %v682 = vpack.c.bf16 %v674, %v674
    %v683 = vpack.c.bf16 %v675, %v675
    %v684 = vpack.c.bf16 %v676, %v676
    %v685 = vpack.c.bf16 %v677, %v677
    %v686 = vpack.c.bf16 %v678, %v678
    %v687 = vpack.c.bf16 %v679, %v679
    %v688 = vpack.c.bf16 %v680, %v680
    %689 = vst [vmem:[%s4] sm:$0xf] %v681
    %690 = vst [vmem:[%s4 + $0x4] sm:$0xf] %v682
    %691 = vst [vmem:[%s4 + $0x8] sm:$0xf] %v683
    %692 = vst [vmem:[%s4 + $0xc] sm:$0xf] %v684
    %693 = vst [vmem:[%s4 + $0x10] sm:$0xf] %v685
    %694 = vst [vmem:[%s4 + $0x14] sm:$0xf] %v686
    %695 = vst [vmem:[%s4 + $0x18] sm:$0xf] %v687
    %696 = vst [vmem:[%s4 + $0x1c] sm:$0xf] %v688
    // Predicated region
    $region100: #{mixer_ts_forward.15} parent=1 // pred_check
      _
    $region101: #{mixer_ts_forward.15} parent=1 // pred_check_branch
      %698 = sbr.rel (0) target = $region103
    $region102: #{mixer_ts_forward.15} parent=1 // pred_region
      _
    $region103: #{mixer_ts_forward.15} parent=1 // pred_fallthru
      _
    // Predicated region
    $region104: #{mixer_ts_forward.15} parent=1 // pred_check
      _
    $region105: #{mixer_ts_forward.15} parent=1 // pred_check_branch
      %700 = sbr.rel (0) target = $region107
    $region106: #{mixer_ts_forward.15} parent=1 // pred_region
      _
    $region107: #{mixer_ts_forward.15} parent=1 // pred_fallthru
      _

// kernel: mixer_ts_forward.14
$region0: #{mixer_ts_forward.14}
  #allocation0 [shape = 'u32[]', space=smem, size = 0x4, offset = 0x4, fixed_abs, tag = 'smem constant byte address 0x4 - core index']
  #allocation1 [shape = 'u32[72,128]{1,0:T(1,128)}', space=vmem, size = 0x9000, scoped, tag = 'internal scratch']
  #allocation2 [shape = 'f32[64,256]{1,0:T(8,128)}', space=vmem, size = 0x10000, scoped, tag = 'scratch operand']
  %s0 = inlined_call_operand.vmem [shape: bf16[64,64], index: 0, kind: input, shape index: {}]
  %s1 = inlined_call_operand.hbm [shape: bf16[64,256], index: 1, kind: input, shape index: {}]
  %s2 = inlined_call_operand.vmem [shape: bf16[64,256], index: 2, kind: output, shape index: {}]
  %s3 = sld [smem:[#allocation0]]
  $region30: #{mixer_ts_forward.14} parent=0
    _
  %s5 = ssub.s32 1, %s3
  %s6 = scalar_select 0, %s5, %s3
  $region1: #{mixer_ts_forward.14} parent=0
    #allocation3 [shape = 'u8[32768]{0}', space=vmem, size = 0x8000, scoped, tag = 'input window, operand 1, single buffered']
    #allocation4 [shape = 's32[1]{0}', space=sflag, size = 0x4, scoped, tag = 'scoped memory for mixer_ts_forward.14']
    %7 = vsyncpa [#allocation4], 0
    // Predicated region
    $region2: #{mixer_ts_forward.14} parent=1 // pred_check
      _
    $region3: #{mixer_ts_forward.14} parent=1 // pred_check_branch
      %9 = sbr.rel (0) target = $region5
    $region4: #{mixer_ts_forward.14} parent=1 // pred_region
      _
    $region5: #{mixer_ts_forward.14} parent=1 // pred_fallthru
      _
    // Predicated region
    $region6: #{mixer_ts_forward.14} parent=1 // pred_check
      _
    $region7: #{mixer_ts_forward.14} parent=1 // pred_check_branch
      %11 = sbr.rel (0) target = $region9
    $region8: #{mixer_ts_forward.14} parent=1 // pred_region
      %13 = vsyncadd [#allocation4], 0
      %s14 = sshll.u32 %s1, 4
      %s15 = int_to_ptr.hbm [resolvable:$true] %s14
      %s16 = sshll.u32 [#allocation3], 4
      %s17 = int_to_ptr.vmem [resolvable:$true] %s16
      %22 = dma.hbm_to_vmem [thread:$0]  %s15, 1024, %s17, [#allocation4], 128, 128, 8
    $region9: #{mixer_ts_forward.14} parent=1 // pred_fallthru
      _
    // Predicated region
    $region10: #{mixer_ts_forward.14} parent=1 // pred_check
      _
    $region11: #{mixer_ts_forward.14} parent=1 // pred_check_branch
      %24 = sbr.rel (0) target = $region13
    $region12: #{mixer_ts_forward.14} parent=1 // pred_region
      %26 = dma.done [#allocation4], 1024
    $region13: #{mixer_ts_forward.14} parent=1 // pred_fallthru
      _
    %p28 = scmp.eq.s32.totalorder 0, 0
    // Predicated region
    $region14: #{mixer_ts_forward.14} parent=1 // pred_check
      %p29 = pneg %p28
    $region15: #{mixer_ts_forward.14} parent=1 // pred_check_branch
      %31 = sbr.rel (%p29) target = $region17
    $region16: #{mixer_ts_forward.14} parent=1 // pred_region
      %32 = vst [vmem:[#allocation2] sm:$0xff] 0.0
      %33 = vst [vmem:[#allocation2 + $0x8] sm:$0xff] 0.0
      %34 = vst [vmem:[#allocation2 + $0x10] sm:$0xff] 0.0
      %35 = vst [vmem:[#allocation2 + $0x18] sm:$0xff] 0.0
      %36 = vst [vmem:[#allocation2 + $0x20] sm:$0xff] 0.0
      %37 = vst [vmem:[#allocation2 + $0x28] sm:$0xff] 0.0
      %38 = vst [vmem:[#allocation2 + $0x30] sm:$0xff] 0.0
      %39 = vst [vmem:[#allocation2 + $0x38] sm:$0xff] 0.0
      %40 = vst [vmem:[#allocation2 + $0x40] sm:$0xff] 0.0
      %41 = vst [vmem:[#allocation2 + $0x48] sm:$0xff] 0.0
      %42 = vst [vmem:[#allocation2 + $0x50] sm:$0xff] 0.0
      %43 = vst [vmem:[#allocation2 + $0x58] sm:$0xff] 0.0
      %44 = vst [vmem:[#allocation2 + $0x60] sm:$0xff] 0.0
      %45 = vst [vmem:[#allocation2 + $0x68] sm:$0xff] 0.0
      %46 = vst [vmem:[#allocation2 + $0x70] sm:$0xff] 0.0
      %47 = vst [vmem:[#allocation2 + $0x78] sm:$0xff] 0.0
    $region17: #{mixer_ts_forward.14} parent=1 // pred_fallthru
      _
    %v48 = vld [vmem:[#allocation2] sm:$0xff]
    %v49 = vld [vmem:[#allocation2 + $0x8] sm:$0xff]
    %v50 = vld [vmem:[#allocation2 + $0x10] sm:$0xff]
    %v51 = vld [vmem:[#allocation2 + $0x18] sm:$0xff]
    %v52 = vld [vmem:[#allocation2 + $0x20] sm:$0xff]
    %v53 = vld [vmem:[#allocation2 + $0x28] sm:$0xff]
    %v54 = vld [vmem:[#allocation2 + $0x30] sm:$0xff]
    %v55 = vld [vmem:[#allocation2 + $0x38] sm:$0xff]
    %v56 = vld [vmem:[#allocation2 + $0x40] sm:$0xff]
    %v57 = vld [vmem:[#allocation2 + $0x48] sm:$0xff]
    %v58 = vld [vmem:[#allocation2 + $0x50] sm:$0xff]
    %v59 = vld [vmem:[#allocation2 + $0x58] sm:$0xff]
    %v60 = vld [vmem:[#allocation2 + $0x60] sm:$0xff]
    %v61 = vld [vmem:[#allocation2 + $0x68] sm:$0xff]
    %v62 = vld [vmem:[#allocation2 + $0x70] sm:$0xff]
    %v63 = vld [vmem:[#allocation2 + $0x78] sm:$0xff]
    %v64 = vld [vmem:[%s0] sm:$0xf]
    %v65 = vld [vmem:[%s0 + $0x4] sm:$0xf]
    %v66 = vld [vmem:[%s0 + $0x8] sm:$0xf]
    %v67 = vld [vmem:[%s0 + $0xc] sm:$0xf]
    %v68 = vld [vmem:[%s0 + $0x10] sm:$0xf]
    %v69 = vld [vmem:[%s0 + $0x14] sm:$0xf]
    %v70 = vld [vmem:[%s0 + $0x18] sm:$0xf]
    %v71 = vld [vmem:[%s0 + $0x1c] sm:$0xf]
    %v72 = vld [vmem:[#allocation3] sm:$0xff]
    %v73 = vld [vmem:[#allocation3 + $0x8] sm:$0xff]
    %v74 = vld [vmem:[#allocation3 + $0x10] sm:$0xff]
    %v75 = vld [vmem:[#allocation3 + $0x18] sm:$0xff]
    %v76 = vld [vmem:[#allocation3 + $0x20] sm:$0xff]
    %v77 = vld [vmem:[#allocation3 + $0x28] sm:$0xff]
    %v78 = vld [vmem:[#allocation3 + $0x30] sm:$0xff]
    %v79 = vld [vmem:[#allocation3 + $0x38] sm:$0xff]
    %v88 = vunpack.c.l.b16 %v64
    %v89 = vunpack.c.l.b16 %v65
    %v90 = vunpack.c.l.b16 %v66
    %v91 = vunpack.c.l.b16 %v67
    %v92 = vunpack.c.l.b16 %v68
    %v93 = vunpack.c.l.b16 %v69
    %v94 = vunpack.c.l.b16 %v70
    %v95 = vunpack.c.l.b16 %v71
    %v96 = vpack.c.b16 %v89, %v88
    %v97 = vpack.c.b16 %v91, %v90
    %v98 = vpack.c.b16 %v93, %v92
    %v99 = vpack.c.b16 %v95, %v94
    %v108 = vunpack.c.l.b16 %v72
    %v109 = vunpack.c.h.b16 %v72
    %v110 = vunpack.c.l.b16 %v73
    %v111 = vunpack.c.h.b16 %v73
    %v112 = vunpack.c.l.b16 %v74
    %v113 = vunpack.c.h.b16 %v74
    %v114 = vunpack.c.l.b16 %v75
    %v115 = vunpack.c.h.b16 %v75
    %v116 = vunpack.c.l.b16 %v76
    %v117 = vunpack.c.h.b16 %v76
    %v118 = vunpack.c.l.b16 %v77
    %v119 = vunpack.c.h.b16 %v77
    %v120 = vunpack.c.l.b16 %v78
    %v121 = vunpack.c.h.b16 %v78
    %v122 = vunpack.c.l.b16 %v79
    %v123 = vunpack.c.h.b16 %v79
    %v124 = vpack.c.b16 %v110, %v108
    %v125 = vpack.c.b16 %v111, %v109
    %v126 = vpack.c.b16 %v114, %v112
    %v127 = vpack.c.b16 %v115, %v113
    %v128 = vpack.c.b16 %v118, %v116
    %v129 = vpack.c.b16 %v119, %v117
    %v130 = vpack.c.b16 %v122, %v120
    %v131 = vpack.c.b16 %v123, %v121
    %vm140 = vcmask 523264
    %v142 = vsel %vm140, %v96, 0
    %v145 = vsel %vm140, %v97, 0
    %v148 = vsel %vm140, %v98, 0
    %v151 = vsel %vm140, %v99, 0
    %153 = vmatpush.bf16.msra.mxu0 0
    %154 = vmatpush.bf16.msra.mxu0 0
    %155 = vmatpush.bf16.msra.mxu0 0
    %156 = vmatpush.bf16.msra.mxu0 0
    %157 = vmatpush.bf16.msra.mxu0 %v130
    %158 = vmatpush.bf16.msra.mxu0 %v128
    %159 = vmatpush.bf16.msra.mxu0 %v126
    %160 = vmatpush.bf16.msra.mxu0 %v124
    %161 = vmatmul.bf16.gmra.mxu0 %v142
    %v162 = vpop.f32.mrf.mxu0
    %v163 = vadd.f32 0.0, %v162
    %v164 = vpop.f32.mrf.mxu0
    %v165 = vadd.f32 0.0, %v164
    %166 = vmatmul.bf16.gmra.mxu0 %v145
    %v167 = vpop.f32.mrf.mxu0
    %v168 = vadd.f32 0.0, %v167
    %v169 = vpop.f32.mrf.mxu0
    %v170 = vadd.f32 0.0, %v169
    %171 = vmatmul.bf16.gmra.mxu0 %v148
    %v172 = vpop.f32.mrf.mxu0
    %v173 = vadd.f32 0.0, %v172
    %v174 = vpop.f32.mrf.mxu0
    %v175 = vadd.f32 0.0, %v174
    %176 = vmatmul.bf16.gmra.mxu0 %v151
    %v177 = vpop.f32.mrf.mxu0
    %v178 = vadd.f32 0.0, %v177
    %v179 = vpop.f32.mrf.mxu0
    %v180 = vadd.f32 0.0, %v179
    %181 = vdwg.mxu0
    %182 = vmatpush.bf16.msra.mxu0 0
    %183 = vmatpush.bf16.msra.mxu0 0
    %184 = vmatpush.bf16.msra.mxu0 0
    %185 = vmatpush.bf16.msra.mxu0 0
    %186 = vmatpush.bf16.msra.mxu0 %v131
    %187 = vmatpush.bf16.msra.mxu0 %v129
    %188 = vmatpush.bf16.msra.mxu0 %v127
    %189 = vmatpush.bf16.msra.mxu0 %v125
    %190 = vmatmul.bf16.gmra.mxu0 %v142
    %v191 = vpop.f32.mrf.mxu0
    %v192 = vadd.f32 0.0, %v191
    %v193 = vpop.f32.mrf.mxu0
    %v194 = vadd.f32 0.0, %v193
    %195 = vmatmul.bf16.gmra.mxu0 %v145
    %v196 = vpop.f32.mrf.mxu0
    %v197 = vadd.f32 0.0, %v196
    %v198 = vpop.f32.mrf.mxu0
    %v199 = vadd.f32 0.0, %v198
    %200 = vmatmul.bf16.gmra.mxu0 %v148
    %v201 = vpop.f32.mrf.mxu0
    %v202 = vadd.f32 0.0, %v201
    %v203 = vpop.f32.mrf.mxu0
    %v204 = vadd.f32 0.0, %v203
    %205 = vmatmul.bf16.gmra.mxu0 %v151
    %v206 = vpop.f32.mrf.mxu0
    %v207 = vadd.f32 0.0, %v206
    %v208 = vpop.f32.mrf.mxu0
    %v209 = vadd.f32 0.0, %v208
    %210 = vdwg.mxu0
    %v211 = vadd.f32 %v48, %v163
    %v212 = vadd.f32 %v49, %v192
    %v213 = vadd.f32 %v50, %v165
    %v214 = vadd.f32 %v51, %v194
    %v215 = vadd.f32 %v52, %v168
    %v216 = vadd.f32 %v53, %v197
    %v217 = vadd.f32 %v54, %v170
    %v218 = vadd.f32 %v55, %v199
    %v219 = vadd.f32 %v56, %v173
    %v220 = vadd.f32 %v57, %v202
    %v221 = vadd.f32 %v58, %v175
    %v222 = vadd.f32 %v59, %v204
    %v223 = vadd.f32 %v60, %v178
    %v224 = vadd.f32 %v61, %v207
    %v225 = vadd.f32 %v62, %v180
    %v226 = vadd.f32 %v63, %v209
    %227 = vst [vmem:[#allocation2] sm:$0xff] %v211
    %228 = vst [vmem:[#allocation2 + $0x8] sm:$0xff] %v212
    %229 = vst [vmem:[#allocation2 + $0x10] sm:$0xff] %v213
    %230 = vst [vmem:[#allocation2 + $0x18] sm:$0xff] %v214
    %231 = vst [vmem:[#allocation2 + $0x20] sm:$0xff] %v215
    %232 = vst [vmem:[#allocation2 + $0x28] sm:$0xff] %v216
    %233 = vst [vmem:[#allocation2 + $0x30] sm:$0xff] %v217
    %234 = vst [vmem:[#allocation2 + $0x38] sm:$0xff] %v218
    %235 = vst [vmem:[#allocation2 + $0x40] sm:$0xff] %v219
    %236 = vst [vmem:[#allocation2 + $0x48] sm:$0xff] %v220
    %237 = vst [vmem:[#allocation2 + $0x50] sm:$0xff] %v221
    %238 = vst [vmem:[#allocation2 + $0x58] sm:$0xff] %v222
    %239 = vst [vmem:[#allocation2 + $0x60] sm:$0xff] %v223
    %240 = vst [vmem:[#allocation2 + $0x68] sm:$0xff] %v224
    %241 = vst [vmem:[#allocation2 + $0x70] sm:$0xff] %v225
    %242 = vst [vmem:[#allocation2 + $0x78] sm:$0xff] %v226
    // Predicated region
    $region18: #{mixer_ts_forward.14} parent=1 // pred_check
      %p243 = pneg %p28
    $region19: #{mixer_ts_forward.14} parent=1 // pred_check_branch
      %245 = sbr.rel (%p243) target = $region21
    $region20: #{mixer_ts_forward.14} parent=1 // pred_region
      %v246 = vld [vmem:[#allocation2] sm:$0xff]
      %v247 = vld [vmem:[#allocation2 + $0x8] sm:$0xff]
      %v248 = vld [vmem:[#allocation2 + $0x10] sm:$0xff]
      %v249 = vld [vmem:[#allocation2 + $0x18] sm:$0xff]
      %v250 = vld [vmem:[#allocation2 + $0x20] sm:$0xff]
      %v251 = vld [vmem:[#allocation2 + $0x28] sm:$0xff]
      %v252 = vld [vmem:[#allocation2 + $0x30] sm:$0xff]
      %v253 = vld [vmem:[#allocation2 + $0x38] sm:$0xff]
      %v254 = vld [vmem:[#allocation2 + $0x40] sm:$0xff]
      %v255 = vld [vmem:[#allocation2 + $0x48] sm:$0xff]
      %v256 = vld [vmem:[#allocation2 + $0x50] sm:$0xff]
      %v257 = vld [vmem:[#allocation2 + $0x58] sm:$0xff]
      %v258 = vld [vmem:[#allocation2 + $0x60] sm:$0xff]
      %v259 = vld [vmem:[#allocation2 + $0x68] sm:$0xff]
      %v260 = vld [vmem:[#allocation2 + $0x70] sm:$0xff]
      %v261 = vld [vmem:[#allocation2 + $0x78] sm:$0xff]
      %v262 = vpack.c.bf16 %v247, %v246
      %v263 = vpack.c.bf16 %v249, %v248
      %v264 = vpack.c.bf16 %v251, %v250
      %v265 = vpack.c.bf16 %v253, %v252
      %v266 = vpack.c.bf16 %v255, %v254
      %v267 = vpack.c.bf16 %v257, %v256
      %v268 = vpack.c.bf16 %v259, %v258
      %v269 = vpack.c.bf16 %v261, %v260
      %270 = vst [vmem:[%s2] sm:$0xff] %v262
      %271 = vst [vmem:[%s2 + $0x8] sm:$0xff] %v263
      %272 = vst [vmem:[%s2 + $0x10] sm:$0xff] %v264
      %273 = vst [vmem:[%s2 + $0x18] sm:$0xff] %v265
      %274 = vst [vmem:[%s2 + $0x20] sm:$0xff] %v266
      %275 = vst [vmem:[%s2 + $0x28] sm:$0xff] %v267
      %276 = vst [vmem:[%s2 + $0x30] sm:$0xff] %v268
      %277 = vst [vmem:[%s2 + $0x38] sm:$0xff] %v269
    $region21: #{mixer_ts_forward.14} parent=1 // pred_fallthru
      _
    // Predicated region
    $region22: #{mixer_ts_forward.14} parent=1 // pred_check
      _
    $region23: #{mixer_ts_forward.14} parent=1 // pred_check_branch
      %279 = sbr.rel (0) target = $region25
    $region24: #{mixer_ts_forward.14} parent=1 // pred_region
      _
    $region25: #{mixer_ts_forward.14} parent=1 // pred_fallthru
      _
    // Predicated region
    $region26: #{mixer_ts_forward.14} parent=1 // pred_check
      _
    $region27: #{mixer_ts_forward.14} parent=1 // pred_check_branch
      %281 = sbr.rel (0) target = $region29
    $region28: #{mixer_ts_forward.14} parent=1 // pred_region
      _
    $region29: #{mixer_ts_forward.14} parent=1 // pred_fallthru
      _
    %282 = vsyncpa [#allocation4], 1

// kernel: mixer_ts_forward.16
$region0: #{mixer_ts_forward.16}
  #allocation0 [shape = 'u32[]', space=smem, size = 0x4, offset = 0x4, fixed_abs, tag = 'smem constant byte address 0x4 - core index']
  #allocation1 [shape = 'u32[72,128]{1,0:T(1,128)}', space=vmem, size = 0x9000, scoped, tag = 'internal scratch']
  #allocation2 [shape = 'f32[64,160]{1,0:T(8,128)}', space=vmem, size = 0x10000, scoped, tag = 'scratch operand']
  %s0 = inlined_call_operand.vmem [shape: bf16[64,128], index: 0, kind: input, shape index: {}]
  %s1 = inlined_call_operand.vmem [shape: bf16[128,160], index: 1, kind: input, shape index: {}]
  %s2 = inlined_call_operand.vmem [shape: bf16[64,160], index: 2, kind: output, shape index: {}]
  %s3 = sld [smem:[#allocation0]]
  $region26: #{mixer_ts_forward.16} parent=0
    _
  %s5 = ssub.s32 1, %s3
  %s6 = scalar_select 0, %s5, %s3
  // Predicated region
  $region2: #{mixer_ts_forward.16} parent=0 // pred_check
    _
  $region3: #{mixer_ts_forward.16} parent=0 // pred_check_branch
    %8 = sbr.rel (0) target = $region5
  $region4: #{mixer_ts_forward.16} parent=0 // pred_region
    _
  $region5: #{mixer_ts_forward.16} parent=0 // pred_fallthru
    _
  // Predicated region
  $region6: #{mixer_ts_forward.16} parent=0 // pred_check
    _
  $region7: #{mixer_ts_forward.16} parent=0 // pred_check_branch
    %10 = sbr.rel (0) target = $region9
  $region8: #{mixer_ts_forward.16} parent=0 // pred_region
    _
  $region9: #{mixer_ts_forward.16} parent=0 // pred_fallthru
    _
  %p11 = scmp.eq.s32.totalorder 0, 0
  // Predicated region
  $region10: #{mixer_ts_forward.16} parent=0 // pred_check
    %p12 = pneg %p11
  $region11: #{mixer_ts_forward.16} parent=0 // pred_check_branch
    %14 = sbr.rel (%p12) target = $region13
  $region12: #{mixer_ts_forward.16} parent=0 // pred_region
    %15 = vst [vmem:[#allocation2] sm:$0xff] 0.0
    %vm16 = vcmask 261120
    %17 = vst.msk [vmem:[#allocation2 + $0x8] sm:$0xff] %vm16, 0.0
    %18 = vst [vmem:[#allocation2 + $0x10] sm:$0xff] 0.0
    %19 = vst.msk [vmem:[#allocation2 + $0x18] sm:$0xff] %vm16, 0.0
    %20 = vst [vmem:[#allocation2 + $0x20] sm:$0xff] 0.0
    %21 = vst.msk [vmem:[#allocation2 + $0x28] sm:$0xff] %vm16, 0.0
    %22 = vst [vmem:[#allocation2 + $0x30] sm:$0xff] 0.0
    %23 = vst.msk [vmem:[#allocation2 + $0x38] sm:$0xff] %vm16, 0.0
    %24 = vst [vmem:[#allocation2 + $0x40] sm:$0xff] 0.0
    %25 = vst.msk [vmem:[#allocation2 + $0x48] sm:$0xff] %vm16, 0.0
    %26 = vst [vmem:[#allocation2 + $0x50] sm:$0xff] 0.0
    %27 = vst.msk [vmem:[#allocation2 + $0x58] sm:$0xff] %vm16, 0.0
    %28 = vst [vmem:[#allocation2 + $0x60] sm:$0xff] 0.0
    %29 = vst.msk [vmem:[#allocation2 + $0x68] sm:$0xff] %vm16, 0.0
    %30 = vst [vmem:[#allocation2 + $0x70] sm:$0xff] 0.0
    %31 = vst.msk [vmem:[#allocation2 + $0x78] sm:$0xff] %vm16, 0.0
  $region13: #{mixer_ts_forward.16} parent=0 // pred_fallthru
    _
  %v32 = vld [vmem:[#allocation2] sm:$0xff]
  %v33 = vld [vmem:[#allocation2 + $0x8] sm:$0xff]
  %v34 = vld [vmem:[#allocation2 + $0x10] sm:$0xff]
  %v35 = vld [vmem:[#allocation2 + $0x18] sm:$0xff]
  %v36 = vld [vmem:[#allocation2 + $0x20] sm:$0xff]
  %v37 = vld [vmem:[#allocation2 + $0x28] sm:$0xff]
  %v38 = vld [vmem:[#allocation2 + $0x30] sm:$0xff]
  %v39 = vld [vmem:[#allocation2 + $0x38] sm:$0xff]
  %v40 = vld [vmem:[#allocation2 + $0x40] sm:$0xff]
  %v41 = vld [vmem:[#allocation2 + $0x48] sm:$0xff]
  %v42 = vld [vmem:[#allocation2 + $0x50] sm:$0xff]
  %v43 = vld [vmem:[#allocation2 + $0x58] sm:$0xff]
  %v44 = vld [vmem:[#allocation2 + $0x60] sm:$0xff]
  %v45 = vld [vmem:[#allocation2 + $0x68] sm:$0xff]
  %v46 = vld [vmem:[#allocation2 + $0x70] sm:$0xff]
  %v47 = vld [vmem:[#allocation2 + $0x78] sm:$0xff]
  %v48 = vld [vmem:[%s0] sm:$0xf]
  %v49 = vld [vmem:[%s0 + $0x4] sm:$0xf]
  %v50 = vld [vmem:[%s0 + $0x8] sm:$0xf]
  %v51 = vld [vmem:[%s0 + $0xc] sm:$0xf]
  %v52 = vld [vmem:[%s0 + $0x10] sm:$0xf]
  %v53 = vld [vmem:[%s0 + $0x14] sm:$0xf]
  %v54 = vld [vmem:[%s0 + $0x18] sm:$0xf]
  %v55 = vld [vmem:[%s0 + $0x1c] sm:$0xf]
  %v56 = vld [vmem:[%s1] sm:$0xff]
  %v57 = vld [vmem:[%s1 + $0x8] sm:$0xff]
  %v58 = vld [vmem:[%s1 + $0x10] sm:$0xff]
  %v59 = vld [vmem:[%s1 + $0x18] sm:$0xff]
  %v60 = vld [vmem:[%s1 + $0x20] sm:$0xff]
  %v61 = vld [vmem:[%s1 + $0x28] sm:$0xff]
  %v62 = vld [vmem:[%s1 + $0x30] sm:$0xff]
  %v63 = vld [vmem:[%s1 + $0x38] sm:$0xff]
  %v64 = vld [vmem:[%s1 + $0x40] sm:$0xff]
  %v65 = vld [vmem:[%s1 + $0x48] sm:$0xff]
  %v66 = vld [vmem:[%s1 + $0x50] sm:$0xff]
  %v67 = vld [vmem:[%s1 + $0x58] sm:$0xff]
  %v68 = vld [vmem:[%s1 + $0x60] sm:$0xff]
  %v69 = vld [vmem:[%s1 + $0x68] sm:$0xff]
  %v70 = vld [vmem:[%s1 + $0x70] sm:$0xff]
  %v71 = vld [vmem:[%s1 + $0x78] sm:$0xff]
  %v80 = vunpack.c.l.b16 %v48
  %v81 = vunpack.c.l.b16 %v49
  %v82 = vunpack.c.l.b16 %v50
  %v83 = vunpack.c.l.b16 %v51
  %v84 = vunpack.c.l.b16 %v52
  %v85 = vunpack.c.l.b16 %v53
  %v86 = vunpack.c.l.b16 %v54
  %v87 = vunpack.c.l.b16 %v55
  %v88 = vpack.c.b16 %v81, %v80
  %v89 = vpack.c.b16 %v83, %v82
  %v90 = vpack.c.b16 %v85, %v84
  %v91 = vpack.c.b16 %v87, %v86
  %v112 = vunpack.c.l.b16 %v56
  %v113 = vunpack.c.h.b16 %v56
  %v114 = vunpack.c.l.b16 %v57
  %v115 = vunpack.c.h.b16 %v57
  %v116 = vunpack.c.l.b16 %v58
  %v117 = vunpack.c.h.b16 %v58
  %v118 = vunpack.c.l.b16 %v59
  %v119 = vunpack.c.h.b16 %v59
  %v120 = vunpack.c.l.b16 %v60
  %v121 = vunpack.c.h.b16 %v60
  %v122 = vunpack.c.l.b16 %v61
  %v123 = vunpack.c.h.b16 %v61
  %v124 = vunpack.c.l.b16 %v62
  %v125 = vunpack.c.h.b16 %v62
  %v126 = vunpack.c.l.b16 %v63
  %v127 = vunpack.c.h.b16 %v63
  %v128 = vunpack.c.l.b16 %v64
  %v129 = vunpack.c.h.b16 %v64
  %v130 = vunpack.c.l.b16 %v65
  %v131 = vunpack.c.h.b16 %v65
  %v132 = vunpack.c.l.b16 %v66
  %v133 = vunpack.c.h.b16 %v66
  %v134 = vunpack.c.l.b16 %v67
  %v135 = vunpack.c.h.b16 %v67
  %v136 = vunpack.c.l.b16 %v68
  %v137 = vunpack.c.h.b16 %v68
  %v138 = vunpack.c.l.b16 %v69
  %v139 = vunpack.c.h.b16 %v69
  %v140 = vunpack.c.l.b16 %v70
  %v141 = vunpack.c.h.b16 %v70
  %v142 = vunpack.c.l.b16 %v71
  %v143 = vunpack.c.h.b16 %v71
  %v144 = vpack.c.b16 %v114, %v112
  %v145 = vpack.c.b16 %v115, %v113
  %v146 = vpack.c.b16 %v118, %v116
  %v147 = vpack.c.b16 %v119, %v117
  %v148 = vpack.c.b16 %v122, %v120
  %v149 = vpack.c.b16 %v123, %v121
  %v150 = vpack.c.b16 %v126, %v124
  %v151 = vpack.c.b16 %v127, %v125
  %v152 = vpack.c.b16 %v130, %v128
  %v153 = vpack.c.b16 %v131, %v129
  %v154 = vpack.c.b16 %v134, %v132
  %v155 = vpack.c.b16 %v135, %v133
  %v156 = vpack.c.b16 %v138, %v136
  %v157 = vpack.c.b16 %v139, %v137
  %v158 = vpack.c.b16 %v142, %v140
  %v159 = vpack.c.b16 %v143, %v141
  %176 = vmatpush.bf16.msra.mxu0 %v158
  %177 = vmatpush.bf16.msra.mxu0 %v156
  %178 = vmatpush.bf16.msra.mxu0 %v154
  %179 = vmatpush.bf16.msra.mxu0 %v152
  %180 = vmatpush.bf16.msra.mxu0 %v150
  %181 = vmatpush.bf16.msra.mxu0 %v148
  %182 = vmatpush.bf16.msra.mxu0 %v146
  %183 = vmatpush.bf16.msra.mxu0 %v144
  %184 = vmatmul.bf16.gmra.mxu0 %v88
  %v185 = vpop.f32.mrf.mxu0
  %v186 = vadd.f32 0.0, %v185
  %v187 = vpop.f32.mrf.mxu0
  %v188 = vadd.f32 0.0, %v187
  %189 = vmatmul.bf16.gmra.mxu0 %v89
  %v190 = vpop.f32.mrf.mxu0
  %v191 = vadd.f32 0.0, %v190
  %v192 = vpop.f32.mrf.mxu0
  %v193 = vadd.f32 0.0, %v192
  %194 = vmatmul.bf16.gmra.mxu0 %v90
  %v195 = vpop.f32.mrf.mxu0
  %v196 = vadd.f32 0.0, %v195
  %v197 = vpop.f32.mrf.mxu0
  %v198 = vadd.f32 0.0, %v197
  %199 = vmatmul.bf16.gmra.mxu0 %v91
  %v200 = vpop.f32.mrf.mxu0
  %v201 = vadd.f32 0.0, %v200
  %v202 = vpop.f32.mrf.mxu0
  %v203 = vadd.f32 0.0, %v202
  %204 = vdwg.mxu0
  %205 = vmatpush.bf16.msra.mxu0 %v159
  %206 = vmatpush.bf16.msra.mxu0 %v157
  %207 = vmatpush.bf16.msra.mxu0 %v155
  %208 = vmatpush.bf16.msra.mxu0 %v153
  %209 = vmatpush.bf16.msra.mxu0 %v151
  %210 = vmatpush.bf16.msra.mxu0 %v149
  %211 = vmatpush.bf16.msra.mxu0 %v147
  %212 = vmatpush.bf16.msra.mxu0 %v145
  %213 = vmatmul.bf16.gmra.mxu0 %v88
  %v214 = vpop.f32.mrf.mxu0
  %v215 = vadd.f32 0.0, %v214
  %v216 = vpop.f32.mrf.mxu0
  %v217 = vadd.f32 0.0, %v216
  %218 = vmatmul.bf16.gmra.mxu0 %v89
  %v219 = vpop.f32.mrf.mxu0
  %v220 = vadd.f32 0.0, %v219
  %v221 = vpop.f32.mrf.mxu0
  %v222 = vadd.f32 0.0, %v221
  %223 = vmatmul.bf16.gmra.mxu0 %v90
  %v224 = vpop.f32.mrf.mxu0
  %v225 = vadd.f32 0.0, %v224
  %v226 = vpop.f32.mrf.mxu0
  %v227 = vadd.f32 0.0, %v226
  %228 = vmatmul.bf16.gmra.mxu0 %v91
  %v229 = vpop.f32.mrf.mxu0
  %v230 = vadd.f32 0.0, %v229
  %v231 = vpop.f32.mrf.mxu0
  %v232 = vadd.f32 0.0, %v231
  %233 = vdwg.mxu0
  %v234 = vadd.f32 %v32, %v186
  %v235 = vadd.f32 %v33, %v215
  %v236 = vadd.f32 %v34, %v188
  %v237 = vadd.f32 %v35, %v217
  %v238 = vadd.f32 %v36, %v191
  %v239 = vadd.f32 %v37, %v220
  %v240 = vadd.f32 %v38, %v193
  %v241 = vadd.f32 %v39, %v222
  %v242 = vadd.f32 %v40, %v196
  %v243 = vadd.f32 %v41, %v225
  %v244 = vadd.f32 %v42, %v198
  %v245 = vadd.f32 %v43, %v227
  %v246 = vadd.f32 %v44, %v201
  %v247 = vadd.f32 %v45, %v230
  %v248 = vadd.f32 %v46, %v203
  %v249 = vadd.f32 %v47, %v232
  %250 = vst [vmem:[#allocation2] sm:$0xff] %v234
  %vm251 = vcmask 261120
  %252 = vst.msk [vmem:[#allocation2 + $0x8] sm:$0xff] %vm251, %v235
  %253 = vst [vmem:[#allocation2 + $0x10] sm:$0xff] %v236
  %254 = vst.msk [vmem:[#allocation2 + $0x18] sm:$0xff] %vm251, %v237
  %255 = vst [vmem:[#allocation2 + $0x20] sm:$0xff] %v238
  %256 = vst.msk [vmem:[#allocation2 + $0x28] sm:$0xff] %vm251, %v239
  %257 = vst [vmem:[#allocation2 + $0x30] sm:$0xff] %v240
  %258 = vst.msk [vmem:[#allocation2 + $0x38] sm:$0xff] %vm251, %v241
  %259 = vst [vmem:[#allocation2 + $0x40] sm:$0xff] %v242
  %260 = vst.msk [vmem:[#allocation2 + $0x48] sm:$0xff] %vm251, %v243
  %261 = vst [vmem:[#allocation2 + $0x50] sm:$0xff] %v244
  %262 = vst.msk [vmem:[#allocation2 + $0x58] sm:$0xff] %vm251, %v245
  %263 = vst [vmem:[#allocation2 + $0x60] sm:$0xff] %v246
  %264 = vst.msk [vmem:[#allocation2 + $0x68] sm:$0xff] %vm251, %v247
  %265 = vst [vmem:[#allocation2 + $0x70] sm:$0xff] %v248
  %266 = vst.msk [vmem:[#allocation2 + $0x78] sm:$0xff] %vm251, %v249
  // Predicated region
  $region14: #{mixer_ts_forward.16} parent=0 // pred_check
    %p267 = pneg %p11
  $region15: #{mixer_ts_forward.16} parent=0 // pred_check_branch
    %269 = sbr.rel (%p267) target = $region17
  $region16: #{mixer_ts_forward.16} parent=0 // pred_region
    %v270 = vld [vmem:[#allocation2] sm:$0xff]
    %v271 = vld [vmem:[#allocation2 + $0x8] sm:$0xff]
    %v272 = vld [vmem:[#allocation2 + $0x10] sm:$0xff]
    %v273 = vld [vmem:[#allocation2 + $0x18] sm:$0xff]
    %v274 = vld [vmem:[#allocation2 + $0x20] sm:$0xff]
    %v275 = vld [vmem:[#allocation2 + $0x28] sm:$0xff]
    %v276 = vld [vmem:[#allocation2 + $0x30] sm:$0xff]
    %v277 = vld [vmem:[#allocation2 + $0x38] sm:$0xff]
    %v278 = vld [vmem:[#allocation2 + $0x40] sm:$0xff]
    %v279 = vld [vmem:[#allocation2 + $0x48] sm:$0xff]
    %v280 = vld [vmem:[#allocation2 + $0x50] sm:$0xff]
    %v281 = vld [vmem:[#allocation2 + $0x58] sm:$0xff]
    %v282 = vld [vmem:[#allocation2 + $0x60] sm:$0xff]
    %v283 = vld [vmem:[#allocation2 + $0x68] sm:$0xff]
    %v284 = vld [vmem:[#allocation2 + $0x70] sm:$0xff]
    %v285 = vld [vmem:[#allocation2 + $0x78] sm:$0xff]
    %v286 = vpack.c.bf16 %v271, %v270
    %v287 = vpack.c.bf16 %v273, %v272
    %v288 = vpack.c.bf16 %v275, %v274
    %v289 = vpack.c.bf16 %v277, %v276
    %v290 = vpack.c.bf16 %v279, %v278
    %v291 = vpack.c.bf16 %v281, %v280
    %v292 = vpack.c.bf16 %v283, %v282
    %v293 = vpack.c.bf16 %v285, %v284
    %vm294 = vcmask 1043456
    %vm295 = vcmask 261124
    %vm296 = vmor %vm295, %vm294
    %297 = vst.msk [vmem:[%s2] sm:$0xff] %vm296, %v286
    %298 = vst.msk [vmem:[%s2 + $0x8] sm:$0xff] %vm296, %v287
    %299 = vst.msk [vmem:[%s2 + $0x10] sm:$0xff] %vm296, %v288
    %300 = vst.msk [vmem:[%s2 + $0x18] sm:$0xff] %vm296, %v289
    %301 = vst.msk [vmem:[%s2 + $0x20] sm:$0xff] %vm296, %v290
    %302 = vst.msk [vmem:[%s2 + $0x28] sm:$0xff] %vm296, %v291
    %303 = vst.msk [vmem:[%s2 + $0x30] sm:$0xff] %vm296, %v292
    %304 = vst.msk [vmem:[%s2 + $0x38] sm:$0xff] %vm296, %v293
  $region17: #{mixer_ts_forward.16} parent=0 // pred_fallthru
    _
  // Predicated region
  $region18: #{mixer_ts_forward.16} parent=0 // pred_check
    _
  $region19: #{mixer_ts_forward.16} parent=0 // pred_check_branch
    %306 = sbr.rel (0) target = $region21
  $region20: #{mixer_ts_forward.16} parent=0 // pred_region
    _
  $region21: #{mixer_ts_forward.16} parent=0 // pred_fallthru
    _
  // Predicated region
  $region22: #{mixer_ts_forward.16} parent=0 // pred_check
    _
  $region23: #{mixer_ts_forward.16} parent=0 // pred_check_branch
    %308 = sbr.rel (0) target = $region25
  $region24: #{mixer_ts_forward.16} parent=0 // pred_region
    _
  $region25: #{mixer_ts_forward.16} parent=0 // pred_fallthru
    _

// kernel: mixer_ts_forward.19
$region0: #{mixer_ts_forward.19}
  #allocation0 [shape = 'u32[]', space=smem, size = 0x4, offset = 0x4, fixed_abs, tag = 'smem constant byte address 0x4 - core index']
  #allocation1 [shape = 'u32[72,128]{1,0:T(1,128)}', space=vmem, size = 0x9000, scoped, tag = 'internal scratch']
  %s0 = inlined_call_operand.vmem [shape: f32[64,64], index: 0, kind: input, shape index: {}]
  %s1 = inlined_call_operand.vmem [shape: f32[64,64], index: 1, kind: input, shape index: {}]
  %s2 = inlined_call_operand.vmem [shape: f32[1,64], index: 2, kind: input, shape index: {}]
  %s3 = inlined_call_operand.vmem [shape: f32[1,64], index: 3, kind: input, shape index: {}]
  %s4 = inlined_call_operand.vmem [shape: bf16[64,64], index: 4, kind: output, shape index: {0}]
  %s5 = inlined_call_operand.vmem [shape: f32[64,64], index: 5, kind: output, shape index: {1}]
  %6 = xla_tuple %s4, %s5
  %s7 = sld [smem:[#allocation0]]
  $region34: #{mixer_ts_forward.19} parent=0
    _
  %s9 = ssub.s32 1, %s7
  %s10 = scalar_select 0, %s9, %s7
  // Predicated region
  $region2: #{mixer_ts_forward.19} parent=0 // pred_check
    _
  $region3: #{mixer_ts_forward.19} parent=0 // pred_check_branch
    %12 = sbr.rel (0) target = $region5
  $region4: #{mixer_ts_forward.19} parent=0 // pred_region
    _
  $region5: #{mixer_ts_forward.19} parent=0 // pred_fallthru
    _
  // Predicated region
  $region6: #{mixer_ts_forward.19} parent=0 // pred_check
    _
  $region7: #{mixer_ts_forward.19} parent=0 // pred_check_branch
    %14 = sbr.rel (0) target = $region9
  $region8: #{mixer_ts_forward.19} parent=0 // pred_region
    _
  $region9: #{mixer_ts_forward.19} parent=0 // pred_fallthru
    _
  // Predicated region
  $region10: #{mixer_ts_forward.19} parent=0 // pred_check
    _
  $region11: #{mixer_ts_forward.19} parent=0 // pred_check_branch
    %16 = sbr.rel (0) target = $region13
  $region12: #{mixer_ts_forward.19} parent=0 // pred_region
    _
  $region13: #{mixer_ts_forward.19} parent=0 // pred_fallthru
    _
  // Predicated region
  $region14: #{mixer_ts_forward.19} parent=0 // pred_check
    _
  $region15: #{mixer_ts_forward.19} parent=0 // pred_check_branch
    %18 = sbr.rel (0) target = $region17
  $region16: #{mixer_ts_forward.19} parent=0 // pred_region
    _
  $region17: #{mixer_ts_forward.19} parent=0 // pred_fallthru
    _
  %v19 = vld [vmem:[%s0] sm:$0xff]
  %v20 = vld [vmem:[%s0 + $0x8] sm:$0xff]
  %v21 = vld [vmem:[%s0 + $0x10] sm:$0xff]
  %v22 = vld [vmem:[%s0 + $0x18] sm:$0xff]
  %v23 = vld [vmem:[%s0 + $0x20] sm:$0xff]
  %v24 = vld [vmem:[%s0 + $0x28] sm:$0xff]
  %v25 = vld [vmem:[%s0 + $0x30] sm:$0xff]
  %v26 = vld [vmem:[%s0 + $0x38] sm:$0xff]
  %v27 = vld [vmem:[%s1] sm:$0xff]
  %v28 = vld [vmem:[%s1 + $0x8] sm:$0xff]
  %v29 = vld [vmem:[%s1 + $0x10] sm:$0xff]
  %v30 = vld [vmem:[%s1 + $0x18] sm:$0xff]
  %v31 = vld [vmem:[%s1 + $0x20] sm:$0xff]
  %v32 = vld [vmem:[%s1 + $0x28] sm:$0xff]
  %v33 = vld [vmem:[%s1 + $0x30] sm:$0xff]
  %v34 = vld [vmem:[%s1 + $0x38] sm:$0xff]
  %v35 = vadd.f32 %v19, %v27
  %v36 = vadd.f32 %v20, %v28
  %v37 = vadd.f32 %v21, %v29
  %v38 = vadd.f32 %v22, %v30
  %v39 = vadd.f32 %v23, %v31
  %v40 = vadd.f32 %v24, %v32
  %v41 = vadd.f32 %v25, %v33
  %v42 = vadd.f32 %v26, %v34
  %vm43 = vcmask 523264
  %44 = vst.msk [vmem:[%s5] sm:$0xff] %vm43, %v35
  %45 = vst.msk [vmem:[%s5 + $0x8] sm:$0xff] %vm43, %v36
  %46 = vst.msk [vmem:[%s5 + $0x10] sm:$0xff] %vm43, %v37
  %47 = vst.msk [vmem:[%s5 + $0x18] sm:$0xff] %vm43, %v38
  %48 = vst.msk [vmem:[%s5 + $0x20] sm:$0xff] %vm43, %v39
  %49 = vst.msk [vmem:[%s5 + $0x28] sm:$0xff] %vm43, %v40
  %50 = vst.msk [vmem:[%s5 + $0x30] sm:$0xff] %vm43, %v41
  %51 = vst.msk [vmem:[%s5 + $0x38] sm:$0xff] %vm43, %v42
  %v52 = vsel %vm43, %v35, 0.0
  %53 = vadd.xlane.f32.xlu0 %v52
  %v54 = vpop.xlane.xlu0 %53
  %v55 = vsel %vm43, %v36, 0.0
  %56 = vadd.xlane.f32.xlu0 %v55
  %v57 = vpop.xlane.xlu0 %56
  %v58 = vsel %vm43, %v37, 0.0
  %59 = vadd.xlane.f32.xlu0 %v58
  %v60 = vpop.xlane.xlu0 %59
  %v61 = vsel %vm43, %v38, 0.0
  %62 = vadd.xlane.f32.xlu0 %v61
  %v63 = vpop.xlane.xlu0 %62
  %v64 = vsel %vm43, %v39, 0.0
  %65 = vadd.xlane.f32.xlu0 %v64
  %v66 = vpop.xlane.xlu0 %65
  %v67 = vsel %vm43, %v40, 0.0
  %68 = vadd.xlane.f32.xlu0 %v67
  %v69 = vpop.xlane.xlu0 %68
  %v70 = vsel %vm43, %v41, 0.0
  %71 = vadd.xlane.f32.xlu0 %v70
  %v72 = vpop.xlane.xlu0 %71
  %v73 = vsel %vm43, %v42, 0.0
  %74 = vadd.xlane.f32.xlu0 %v73
  %v75 = vpop.xlane.xlu0 %74
  %v76 = vrcp.pop 64.0
  %v77 = vmul.f32 64.0, %v76
  %v78 = vsub.f32 1.0, %v77
  %v79 = vmul.f32 %v76, %v78
  %v80 = vadd.f32 %v76, %v79
  %vm81 = vweird.f32 %v76
  %v82 = vsel %vm81, %v76, %v80
  %v83 = vmul.f32 %v54, %v82
  %v84 = vmul.f32 %v57, %v82
  %v85 = vmul.f32 %v60, %v82
  %v86 = vmul.f32 %v63, %v82
  %v87 = vmul.f32 %v66, %v82
  %v88 = vmul.f32 %v69, %v82
  %v89 = vmul.f32 %v72, %v82
  %v90 = vmul.f32 %v75, %v82
  %v91 = vsub.f32 %v35, %v83
  %v92 = vsub.f32 %v36, %v84
  %v93 = vsub.f32 %v37, %v85
  %v94 = vsub.f32 %v38, %v86
  %v95 = vsub.f32 %v39, %v87
  %v96 = vsub.f32 %v40, %v88
  %v97 = vsub.f32 %v41, %v89
  %v98 = vsub.f32 %v42, %v90
  %v99 = vmul.f32 %v91, %v91
  %v100 = vmul.f32 %v92, %v92
  %v101 = vmul.f32 %v93, %v93
  %v102 = vmul.f32 %v94, %v94
  %v103 = vmul.f32 %v95, %v95
  %v104 = vmul.f32 %v96, %v96
  %v105 = vmul.f32 %v97, %v97
  %v106 = vmul.f32 %v98, %v98
  %v107 = vsel %vm43, %v99, 0.0
  %108 = vadd.xlane.f32.xlu0 %v107
  %v109 = vpop.xlane.xlu0 %108
  %v110 = vsel %vm43, %v100, 0.0
  %111 = vadd.xlane.f32.xlu0 %v110
  %v112 = vpop.xlane.xlu0 %111
  %v113 = vsel %vm43, %v101, 0.0
  %114 = vadd.xlane.f32.xlu0 %v113
  %v115 = vpop.xlane.xlu0 %114
  %v116 = vsel %vm43, %v102, 0.0
  %117 = vadd.xlane.f32.xlu0 %v116
  %v118 = vpop.xlane.xlu0 %117
  %v119 = vsel %vm43, %v103, 0.0
  %120 = vadd.xlane.f32.xlu0 %v119
  %v121 = vpop.xlane.xlu0 %120
  %v122 = vsel %vm43, %v104, 0.0
  %123 = vadd.xlane.f32.xlu0 %v122
  %v124 = vpop.xlane.xlu0 %123
  %v125 = vsel %vm43, %v105, 0.0
  %126 = vadd.xlane.f32.xlu0 %v125
  %v127 = vpop.xlane.xlu0 %126
  %v128 = vsel %vm43, %v106, 0.0
  %129 = vadd.xlane.f32.xlu0 %v128
  %v130 = vpop.xlane.xlu0 %129
  %v131 = vmul.f32 %v109, %v82
  %v132 = vmul.f32 %v112, %v82
  %v133 = vmul.f32 %v115, %v82
  %v134 = vmul.f32 %v118, %v82
  %v135 = vmul.f32 %v121, %v82
  %v136 = vmul.f32 %v124, %v82
  %v137 = vmul.f32 %v127, %v82
  %v138 = vmul.f32 %v130, %v82
  %v139 = vadd.f32 %v131, 1e-05
  %v140 = vadd.f32 %v132, 1e-05
  %v141 = vadd.f32 %v133, 1e-05
  %v142 = vadd.f32 %v134, 1e-05
  %v143 = vadd.f32 %v135, 1e-05
  %v144 = vadd.f32 %v136, 1e-05
  %v145 = vadd.f32 %v137, 1e-05
  %v146 = vadd.f32 %v138, 1e-05
  %v147 = vrsqrt.pop %v139
  %v148 = vmul.f32 %v147, %v139
  %v149 = vmul.f32 %v148, %v147
  %v150 = vmul.f32 0.5, %v149
  %v151 = vsub.f32 1.5, %v150
  %v152 = vmul.f32 %v147, %v151
  %vm153 = vweird.f32 %v139
  %vm154 = vweird.f32 %v147
  %vm155 = vmor %vm153, %vm154
  %v156 = vsel %vm155, %v147, %v152
  %v157 = vrsqrt.pop %v140
  %v158 = vmul.f32 %v157, %v140
  %v159 = vmul.f32 %v158, %v157
  %v160 = vmul.f32 0.5, %v159
  %v161 = vsub.f32 1.5, %v160
  %v162 = vmul.f32 %v157, %v161
  %vm163 = vweird.f32 %v140
  %vm164 = vweird.f32 %v157
  %vm165 = vmor %vm163, %vm164
  %v166 = vsel %vm165, %v157, %v162
  %v167 = vrsqrt.pop %v141
  %v168 = vmul.f32 %v167, %v141
  %v169 = vmul.f32 %v168, %v167
  %v170 = vmul.f32 0.5, %v169
  %v171 = vsub.f32 1.5, %v170
  %v172 = vmul.f32 %v167, %v171
  %vm173 = vweird.f32 %v141
  %vm174 = vweird.f32 %v167
  %vm175 = vmor %vm173, %vm174
  %v176 = vsel %vm175, %v167, %v172
  %v177 = vrsqrt.pop %v142
  %v178 = vmul.f32 %v177, %v142
  %v179 = vmul.f32 %v178, %v177
  %v180 = vmul.f32 0.5, %v179
  %v181 = vsub.f32 1.5, %v180
  %v182 = vmul.f32 %v177, %v181
  %vm183 = vweird.f32 %v142
  %vm184 = vweird.f32 %v177
  %vm185 = vmor %vm183, %vm184
  %v186 = vsel %vm185, %v177, %v182
  %v187 = vrsqrt.pop %v143
  %v188 = vmul.f32 %v187, %v143
  %v189 = vmul.f32 %v188, %v187
  %v190 = vmul.f32 0.5, %v189
  %v191 = vsub.f32 1.5, %v190
  %v192 = vmul.f32 %v187, %v191
  %vm193 = vweird.f32 %v143
  %vm194 = vweird.f32 %v187
  %vm195 = vmor %vm193, %vm194
  %v196 = vsel %vm195, %v187, %v192
  %v197 = vrsqrt.pop %v144
  %v198 = vmul.f32 %v197, %v144
  %v199 = vmul.f32 %v198, %v197
  %v200 = vmul.f32 0.5, %v199
  %v201 = vsub.f32 1.5, %v200
  %v202 = vmul.f32 %v197, %v201
  %vm203 = vweird.f32 %v144
  %vm204 = vweird.f32 %v197
  %vm205 = vmor %vm203, %vm204
  %v206 = vsel %vm205, %v197, %v202
  %v207 = vrsqrt.pop %v145
  %v208 = vmul.f32 %v207, %v145
  %v209 = vmul.f32 %v208, %v207
  %v210 = vmul.f32 0.5, %v209
  %v211 = vsub.f32 1.5, %v210
  %v212 = vmul.f32 %v207, %v211
  %vm213 = vweird.f32 %v145
  %vm214 = vweird.f32 %v207
  %vm215 = vmor %vm213, %vm214
  %v216 = vsel %vm215, %v207, %v212
  %v217 = vrsqrt.pop %v146
  %v218 = vmul.f32 %v217, %v146
  %v219 = vmul.f32 %v218, %v217
  %v220 = vmul.f32 0.5, %v219
  %v221 = vsub.f32 1.5, %v220
  %v222 = vmul.f32 %v217, %v221
  %vm223 = vweird.f32 %v146
  %vm224 = vweird.f32 %v217
  %vm225 = vmor %vm223, %vm224
  %v226 = vsel %vm225, %v217, %v222
  %v227 = vmul.f32 %v91, %v156
  %v228 = vmul.f32 %v92, %v166
  %v229 = vmul.f32 %v93, %v176
  %v230 = vmul.f32 %v94, %v186
  %v231 = vmul.f32 %v95, %v196
  %v232 = vmul.f32 %v96, %v206
  %v233 = vmul.f32 %v97, %v216
  %v234 = vmul.f32 %v98, %v226
  %v235 = vld [vmem:[%s2] sm:$0x1]
  %v237 = vperm.slane %v235, 0
  %v239 = vmul.f32 %v227, %v237
  %v240 = vmul.f32 %v228, %v237
  %v241 = vmul.f32 %v229, %v237
  %v242 = vmul.f32 %v230, %v237
  %v243 = vmul.f32 %v231, %v237
  %v244 = vmul.f32 %v232, %v237
  %v245 = vmul.f32 %v233, %v237
  %v246 = vmul.f32 %v234, %v237
  %v247 = vld [vmem:[%s3] sm:$0x1]
  %v249 = vperm.slane %v247, 0
  %v251 = vadd.f32 %v239, %v249
  %v252 = vadd.f32 %v240, %v249
  %v253 = vadd.f32 %v241, %v249
  %v254 = vadd.f32 %v242, %v249
  %v255 = vadd.f32 %v243, %v249
  %v256 = vadd.f32 %v244, %v249
  %v257 = vadd.f32 %v245, %v249
  %v258 = vadd.f32 %v246, %v249
  %v259 = vpack.c.bf16 %v251, %v251
  %v260 = vpack.c.bf16 %v252, %v252
  %v261 = vpack.c.bf16 %v253, %v253
  %v262 = vpack.c.bf16 %v254, %v254
  %v263 = vpack.c.bf16 %v255, %v255
  %v264 = vpack.c.bf16 %v256, %v256
  %v265 = vpack.c.bf16 %v257, %v257
  %v266 = vpack.c.bf16 %v258, %v258
  %vm267 = vcmask 519168
  %268 = vst.msk [vmem:[%s4] sm:$0xf] %vm267, %v259
  %269 = vst.msk [vmem:[%s4 + $0x4] sm:$0xf] %vm267, %v260
  %270 = vst.msk [vmem:[%s4 + $0x8] sm:$0xf] %vm267, %v261
  %271 = vst.msk [vmem:[%s4 + $0xc] sm:$0xf] %vm267, %v262
  %272 = vst.msk [vmem:[%s4 + $0x10] sm:$0xf] %vm267, %v263
  %273 = vst.msk [vmem:[%s4 + $0x14] sm:$0xf] %vm267, %v264
  %274 = vst.msk [vmem:[%s4 + $0x18] sm:$0xf] %vm267, %v265
  %275 = vst.msk [vmem:[%s4 + $0x1c] sm:$0xf] %vm267, %v266
  // Predicated region
  $region18: #{mixer_ts_forward.19} parent=0 // pred_check
    _
  $region19: #{mixer_ts_forward.19} parent=0 // pred_check_branch
    %277 = sbr.rel (0) target = $region21
  $region20: #{mixer_ts_forward.19} parent=0 // pred_region
    _
  $region21: #{mixer_ts_forward.19} parent=0 // pred_fallthru
    _
  // Predicated region
  $region22: #{mixer_ts_forward.19} parent=0 // pred_check
    _
  $region23: #{mixer_ts_forward.19} parent=0 // pred_check_branch
    %279 = sbr.rel (0) target = $region25
  $region24: #{mixer_ts_forward.19} parent=0 // pred_region
    _
  $region25: #{mixer_ts_forward.19} parent=0 // pred_fallthru
    _
  // Predicated region
  $region26: #{mixer_ts_forward.19} parent=0 // pred_check
    _
  $region27: #{mixer_ts_forward.19} parent=0 // pred_check_branch
    %281 = sbr.rel (0) target = $region29
  $region28: #{mixer_ts_forward.19} parent=0 // pred_region
    _
  $region29: #{mixer_ts_forward.19} parent=0 // pred_fallthru
    _
  // Predicated region
  $region30: #{mixer_ts_forward.19} parent=0 // pred_check
    _
  $region31: #{mixer_ts_forward.19} parent=0 // pred_check_branch
    %283 = sbr.rel (0) target = $region33
  $region32: #{mixer_ts_forward.19} parent=0 // pred_region
    _
  $region33: #{mixer_ts_forward.19} parent=0 // pred_fallthru
    _

// kernel: mixer_ts_forward.17
$region0: #{mixer_ts_forward.17}
  #allocation0 [shape = 'u32[]', space=smem, size = 0x4, offset = 0x4, fixed_abs, tag = 'smem constant byte address 0x4 - core index']
  #allocation1 [shape = 'u32[72,128]{1,0:T(1,128)}', space=vmem, size = 0x9000, scoped, tag = 'internal scratch']
  #allocation2 [shape = 'f32[8,16,128]{2,1,0:T(8,128)}', space=vmem, size = 0x10000, scoped, tag = 'scratch operand']
  #allocation3 [shape = 'f32[8,16,128]{2,1,0:T(8,128)}', space=vmem, size = 0x10000, scoped, tag = 'scratch operand']
  #allocation4 [shape = 'f32[1,16,128]{2,1,0:T(8,128)}', space=vmem, size = 0x2000, scoped, tag = 'scratch operand']
  %s0 = inlined_call_operand.vmem [shape: bf16[8,8,128], index: 0, kind: input, shape index: {}]
  %s1 = inlined_call_operand.vmem [shape: bf16[8,8,256], index: 1, kind: input, shape index: {}]
  %s2 = inlined_call_operand.vmem [shape: bf16[8,8,160], index: 2, kind: input, shape index: {}]
  %s3 = inlined_call_operand.vmem [shape: f32[16,128], index: 3, kind: input, shape index: {}]
  %s4 = inlined_call_operand.vmem [shape: f32[1,128], index: 4, kind: input, shape index: {}]
  %s5 = inlined_call_operand.vmem [shape: f32[1,128], index: 5, kind: input, shape index: {}]
  %s6 = inlined_call_operand.vmem [shape: bf16[8,8,128], index: 6, kind: output, shape index: {}]
  %s7 = sld [smem:[#allocation0]]
  $region68: #{mixer_ts_forward.17} parent=0
    _
  %s9 = ssub.s32 1, %s7
  %s10 = scalar_select 0, %s9, %s7
  loop: start=0, step=1, limit=10
  $region2: #{mixer_ts_forward.17} parent=0 // loop_pre_header
    _
  $region3: #{mixer_ts_forward.17} parent=0 // loop_header
    %s12 = sphi 0, %s16
    %p13 = scmp.ge.s32.totalorder %s12, 10
    %s19 = sphi 0, %s31
    %s20 = sphi 0, %s27
    %s21 = sphi 0, %s19
    %s22 = sphi 0, %s20
    %s23 = sphi 0, %s21
    %s24 = sphi 0, %s22
    %s36 = sphi 0, %s38
    %s39 = sphi 0, %s36
    %s40 = sphi 0, %s39
    %s56 = sphi 0, %s40
    %s64 = sphi 0, %s66
    %s67 = sphi 0, %s64
    %s68 = sphi 0, %s67
    %s84 = sphi 0, %s68
    %s92 = sphi 0, %s94
    %s95 = sphi 0, %s92
    %s96 = sphi 0, %s95
    %s112 = sphi 0, %s96
    %s116 = sphi 0, %s116
    %s118 = sphi 0, %s116
    %s119 = sphi 0, %s118
    %s133 = sphi 0, %s119
    %s137 = sphi 0, %s137
    %s139 = sphi 0, %s137
    %s140 = sphi 0, %s139
    %s154 = sphi 0, %s140
    %s158 = sphi 0, %s158
    %s160 = sphi 0, %s158
    %s161 = sphi 0, %s160
    %s175 = sphi 0, %s161
    %s183 = sphi 0, %s185
    %s186 = sphi 0, %s183
    %s187 = sphi 0, %s186
    %s203 = sphi 0, %s187
  $region4: #{mixer_ts_forward.17} parent=0 // loop_header_branch
    %15 = sbr.rel (%p13) target = $region8
  $region5: #{mixer_ts_forward.17} parent=0 // loop_body
    %s17 = ssub.s32 %s12, 1
    %s18 = ssub.s32 %s12, 2
    %s25 = sadd.s32 1, %s20
    %p26 = scmp.ge.s32.totalorder %s25, 1
    %s27 = scalar_select %p26, 0, %s25
    %s28 = sadd.s32 1, %s19
    %s29 = scalar_select %p26, %s28, %s19
    %p30 = scmp.ge.s32.totalorder %s29, 8
    %s31 = scalar_select %p30, 0, %s29
    %s32 = ssub.s32 %s19, %s31
    %s33 = ssub.s32 %s20, %s27
    %s34 = sor.u32 %s32, %s33
    %p35 = scmp.eq.s32.totalorder %s34, 0
    %s37 = sadd.s32 %s36, 1
    %s38 = scalar_select %p35, %s36, %s37
    %p41 = pneg %p35
    %p42 = scmp.eq.s32.totalorder %s12, 7
    %p43 = por %p41, %p42
    %p44 = scmp.ne.s32.totalorder %s36, %s39
    %p45 = scmp.eq.s32.totalorder %s12, 0
    %p46 = por %p44, %p45
    %p47 = scmp.ne.s32.totalorder %s36, %s39
    %p48 = scmp.eq.s32.totalorder %s17, 7
    %p49 = por %p47, %p48
    %p50 = scmp.ne.s32.totalorder %s39, %s40
    %p51 = scmp.eq.s32.totalorder %s17, 0
    %p52 = por %p50, %p51
    %p53 = scmp.ne.s32.totalorder %s39, %s40
    %p54 = scmp.eq.s32.totalorder %s18, 7
    %p55 = por %p53, %p54
    %p57 = scmp.ne.s32.totalorder %s40, %s56
    %p58 = scmp.eq.s32.totalorder %s18, 0
    %p59 = por %p57, %p58
    %s60 = ssub.s32 %s19, %s31
    %s61 = ssub.s32 %s20, %s27
    %s62 = sor.u32 %s60, %s61
    %p63 = scmp.eq.s32.totalorder %s62, 0
    %s65 = sadd.s32 %s64, 1
    %s66 = scalar_select %p63, %s64, %s65
    %p69 = pneg %p63
    %p70 = scmp.eq.s32.totalorder %s12, 7
    %p71 = por %p69, %p70
    %p72 = scmp.ne.s32.totalorder %s64, %s67
    %p73 = scmp.eq.s32.totalorder %s12, 0
    %p74 = por %p72, %p73
    %p75 = scmp.ne.s32.totalorder %s64, %s67
    %p76 = scmp.eq.s32.totalorder %s17, 7
    %p77 = por %p75, %p76
    %p78 = scmp.ne.s32.totalorder %s67, %s68
    %p79 = scmp.eq.s32.totalorder %s17, 0
    %p80 = por %p78, %p79
    %p81 = scmp.ne.s32.totalorder %s67, %s68
    %p82 = scmp.eq.s32.totalorder %s18, 7
    %p83 = por %p81, %p82
    %p85 = scmp.ne.s32.totalorder %s68, %s84
    %p86 = scmp.eq.s32.totalorder %s18, 0
    %p87 = por %p85, %p86
    %s88 = ssub.s32 %s19, %s31
    %s89 = ssub.s32 %s20, %s27
    %s90 = sor.u32 %s88, %s89
    %p91 = scmp.eq.s32.totalorder %s90, 0
    %s93 = sadd.s32 %s92, 1
    %s94 = scalar_select %p91, %s92, %s93
    %p97 = pneg %p91
    %p98 = scmp.eq.s32.totalorder %s12, 7
    %p99 = por %p97, %p98
    %p100 = scmp.ne.s32.totalorder %s92, %s95
    %p101 = scmp.eq.s32.totalorder %s12, 0
    %p102 = por %p100, %p101
    %p103 = scmp.ne.s32.totalorder %s92, %s95
    %p104 = scmp.eq.s32.totalorder %s17, 7
    %p105 = por %p103, %p104
    %p106 = scmp.ne.s32.totalorder %s95, %s96
    %p107 = scmp.eq.s32.totalorder %s17, 0
    %p108 = por %p106, %p107
    %p109 = scmp.ne.s32.totalorder %s95, %s96
    %p110 = scmp.eq.s32.totalorder %s18, 7
    %p111 = por %p109, %p110
    %p113 = scmp.ne.s32.totalorder %s96, %s112
    %p114 = scmp.eq.s32.totalorder %s18, 0
    %p115 = por %p113, %p114
    %s117 = sadd.s32 %s116, 1
    %p120 = scmp.eq.s32.totalorder %s12, 7
    %p121 = scmp.ne.s32.totalorder %s116, %s118
    %p122 = scmp.eq.s32.totalorder %s12, 0
    %p123 = por %p121, %p122
    %p124 = scmp.ne.s32.totalorder %s116, %s118
    %p125 = scmp.eq.s32.totalorder %s17, 7
    %p126 = por %p124, %p125
    %p127 = scmp.ne.s32.totalorder %s118, %s119
    %p128 = scmp.eq.s32.totalorder %s17, 0
    %p129 = por %p127, %p128
    %p130 = scmp.ne.s32.totalorder %s118, %s119
    %p131 = scmp.eq.s32.totalorder %s18, 7
    %p132 = por %p130, %p131
    %p134 = scmp.ne.s32.totalorder %s119, %s133
    %p135 = scmp.eq.s32.totalorder %s18, 0
    %p136 = por %p134, %p135
    %s138 = sadd.s32 %s137, 1
    %p141 = scmp.eq.s32.totalorder %s12, 7
    %p142 = scmp.ne.s32.totalorder %s137, %s139
    %p143 = scmp.eq.s32.totalorder %s12, 0
    %p144 = por %p142, %p143
    %p145 = scmp.ne.s32.totalorder %s137, %s139
    %p146 = scmp.eq.s32.totalorder %s17, 7
    %p147 = por %p145, %p146
    %p148 = scmp.ne.s32.totalorder %s139, %s140
    %p149 = scmp.eq.s32.totalorder %s17, 0
    %p150 = por %p148, %p149
    %p151 = scmp.ne.s32.totalorder %s139, %s140
    %p152 = scmp.eq.s32.totalorder %s18, 7
    %p153 = por %p151, %p152
    %p155 = scmp.ne.s32.totalorder %s140, %s154
    %p156 = scmp.eq.s32.totalorder %s18, 0
    %p157 = por %p155, %p156
    %s159 = sadd.s32 %s158, 1
    %p162 = scmp.eq.s32.totalorder %s12, 7
    %p163 = scmp.ne.s32.totalorder %s158, %s160
    %p164 = scmp.eq.s32.totalorder %s12, 0
    %p165 = por %p163, %p164
    %p166 = scmp.ne.s32.totalorder %s158, %s160
    %p167 = scmp.eq.s32.totalorder %s17, 7
    %p168 = por %p166, %p167
    %p169 = scmp.ne.s32.totalorder %s160, %s161
    %p170 = scmp.eq.s32.totalorder %s17, 0
    %p171 = por %p169, %p170
    %p172 = scmp.ne.s32.totalorder %s160, %s161
    %p173 = scmp.eq.s32.totalorder %s18, 7
    %p174 = por %p172, %p173
    %p176 = scmp.ne.s32.totalorder %s161, %s175
    %p177 = scmp.eq.s32.totalorder %s18, 0
    %p178 = por %p176, %p177
    %s179 = ssub.s32 %s19, %s31
    %s180 = ssub.s32 %s20, %s27
    %s181 = sor.u32 %s179, %s180
    %p182 = scmp.eq.s32.totalorder %s181, 0
    %s184 = sadd.s32 %s183, 1
    %s185 = scalar_select %p182, %s183, %s184
    %p188 = pneg %p182
    %p189 = scmp.eq.s32.totalorder %s12, 7
    %p190 = por %p188, %p189
    %p191 = scmp.ne.s32.totalorder %s183, %s186
    %p192 = scmp.eq.s32.totalorder %s12, 0
    %p193 = por %p191, %p192
    %p194 = scmp.ne.s32.totalorder %s183, %s186
    %p195 = scmp.eq.s32.totalorder %s17, 7
    %p196 = por %p194, %p195
    %p197 = scmp.ne.s32.totalorder %s186, %s187
    %p198 = scmp.eq.s32.totalorder %s17, 0
    %p199 = por %p197, %p198
    %p200 = scmp.ne.s32.totalorder %s186, %s187
    %p201 = scmp.eq.s32.totalorder %s18, 7
    %p202 = por %p200, %p201
    %p204 = scmp.ne.s32.totalorder %s187, %s203
    %p205 = scmp.eq.s32.totalorder %s18, 0
    %p206 = por %p204, %p205
    %p207 = scmp.le.s32.totalorder 1, %s12
    %p208 = scmp.lt.s32.totalorder %s12, 9
    %p209 = pnand %p207, %p208
    %p210 = pneg %p209
    // Predicated region
    $region9: #{mixer_ts_forward.17} parent=5 // pred_check
      _
    $region10: #{mixer_ts_forward.17} parent=5 // pred_check_branch
      %212 = sbr.rel (%p209) target = $region12
    $region11: #{mixer_ts_forward.17} parent=5 // pred_region
      %s213 = ssub.s32 %s12, 1
      // Predicated region
      $region13: #{mixer_ts_forward.17} parent=11 // pred_check
        %p214 = pneg %p129
      $region14: #{mixer_ts_forward.17} parent=11 // pred_check_branch
        %216 = sbr.rel (%p214) target = $region16
      $region15: #{mixer_ts_forward.17} parent=11 // pred_region
        _
      $region16: #{mixer_ts_forward.17} parent=11 // pred_fallthru
        _
      // Predicated region
      $region17: #{mixer_ts_forward.17} parent=11 // pred_check
        %p217 = pneg %p150
      $region18: #{mixer_ts_forward.17} parent=11 // pred_check_branch
        %219 = sbr.rel (%p217) target = $region20
      $region19: #{mixer_ts_forward.17} parent=11 // pred_region
        _
      $region20: #{mixer_ts_forward.17} parent=11 // pred_fallthru
        _
      // Predicated region
      $region21: #{mixer_ts_forward.17} parent=11 // pred_check
        %p220 = pneg %p171
      $region22: #{mixer_ts_forward.17} parent=11 // pred_check_branch
        %222 = sbr.rel (%p220) target = $region24
      $region23: #{mixer_ts_forward.17} parent=11 // pred_region
        _
      $region24: #{mixer_ts_forward.17} parent=11 // pred_fallthru
        _
    $region12: #{mixer_ts_forward.17} parent=5 // pred_fallthru
      _
    %p223 = scmp.lt.s32.totalorder %s12, 8
    // Predicated region
    $region25: #{mixer_ts_forward.17} parent=5 // pred_check
      %p224 = pneg %p223
    $region26: #{mixer_ts_forward.17} parent=5 // pred_check_branch
      %226 = sbr.rel (%p224) target = $region28
    $region27: #{mixer_ts_forward.17} parent=5 // pred_region
      // Predicated region
      $region29: #{mixer_ts_forward.17} parent=27 // pred_check
        %p227 = pneg %p46
      $region30: #{mixer_ts_forward.17} parent=27 // pred_check_branch
        %229 = sbr.rel (%p227) target = $region32
      $region31: #{mixer_ts_forward.17} parent=27 // pred_region
        %p230 = scmp.lt.s32.totalorder %s19, 7
        %s231 = scalar_select %p230, %s19, 7
        %p232 = scmp.lt.s32.totalorder %s20, 0
        %s233 = scalar_select %p232, %s20, 0
        %s234 = sadd.s32 %s233, %s231
        %s235 = smul.addr %s234, 4
        %s236 = scalar_lea.vmem %s0, %s235
      $region32: #{mixer_ts_forward.17} parent=27 // pred_fallthru
        _
      // Predicated region
      $region33: #{mixer_ts_forward.17} parent=27 // pred_check
        %p237 = pneg %p74
      $region34: #{mixer_ts_forward.17} parent=27 // pred_check_branch
        %239 = sbr.rel (%p237) target = $region36
      $region35: #{mixer_ts_forward.17} parent=27 // pred_region
        %p240 = scmp.lt.s32.totalorder %s19, 7
        %s241 = scalar_select %p240, %s19, 7
        %p242 = scmp.lt.s32.totalorder %s20, 0
        %s243 = scalar_select %p242, %s20, 0
        %s244 = smul.addr %s243, 2
        %s245 = sadd.s32 1, %s244
        %s246 = smul.addr %s241, 2
        %s247 = sadd.s32 %s245, %s246
        %s248 = smul.addr %s247, 4
        %s249 = scalar_lea.vmem %s1, %s248
      $region36: #{mixer_ts_forward.17} parent=27 // pred_fallthru
        _
      // Predicated region
      $region37: #{mixer_ts_forward.17} parent=27 // pred_check
        %p250 = pneg %p102
      $region38: #{mixer_ts_forward.17} parent=27 // pred_check_branch
        %252 = sbr.rel (%p250) target = $region40
      $region39: #{mixer_ts_forward.17} parent=27 // pred_region
        %p253 = scmp.lt.s32.totalorder %s19, 7
        %s254 = scalar_select %p253, %s19, 7
        %p255 = scmp.lt.s32.totalorder %s20, 0
        %s256 = scalar_select %p255, %s20, 0
        %s257 = smul.addr %s256, 2
        %s258 = smul.addr %s254, 2
        %s259 = sadd.s32 %s257, %s258
        %s260 = smul.addr %s259, 4
        %s261 = scalar_lea.vmem %s2, %s260
      $region40: #{mixer_ts_forward.17} parent=27 // pred_fallthru
        _
    $region28: #{mixer_ts_forward.17} parent=5 // pred_fallthru
      _
    %p262 = scmp.le.s32.totalorder 1, %s12
    %p263 = scmp.lt.s32.totalorder %s12, 9
    %p264 = pnand %p262, %p263
    %p265 = pneg %p264
    // Predicated region
    $region41: #{mixer_ts_forward.17} parent=5 // pred_check
      _
    $region42: #{mixer_ts_forward.17} parent=5 // pred_check_branch
      %267 = sbr.rel (%p264) target = $region44
    $region43: #{mixer_ts_forward.17} parent=5 // pred_region
      %s268 = ssub.s32 %s12, 1
      %p269 = scmp.lt.s32.totalorder %s21, 7
      %s270 = scalar_select %p269, %s21, 7
      %p271 = scmp.lt.s32.totalorder %s22, 0
      %s272 = scalar_select %p271, %s22, 0
      %s273 = sadd.s32 %s272, %s270
      %s274 = smul.addr %s273, 4
      %s275 = scalar_lea.vmem %s0, %s274
      %p276 = pneg %p52
      %p277 = pneg %p49
      %p278 = scmp.lt.s32.totalorder %s21, 7
      %s279 = scalar_select %p278, %s21, 7
      %p280 = scmp.lt.s32.totalorder %s22, 0
      %s281 = scalar_select %p280, %s22, 0
      %s282 = smul.addr %s281, 2
      %s283 = sadd.s32 1, %s282
      %s284 = smul.addr %s279, 2
      %s285 = sadd.s32 %s283, %s284
      %s286 = smul.addr %s285, 4
      %s287 = scalar_lea.vmem %s1, %s286
      %p288 = pneg %p80
      %p289 = pneg %p77
      %p290 = scmp.lt.s32.totalorder %s21, 7
      %s291 = scalar_select %p290, %s21, 7
      %p292 = scmp.lt.s32.totalorder %s22, 0
      %s293 = scalar_select %p292, %s22, 0
      %s294 = smul.addr %s293, 2
      %s295 = smul.addr %s291, 2
      %s296 = sadd.s32 %s294, %s295
      %s297 = smul.addr %s296, 4
      %s298 = scalar_lea.vmem %s2, %s297
      %p299 = pneg %p108
      %p300 = pneg %p105
      %p301 = pneg %p129
      %p302 = pneg %p126
      %p303 = pneg %p150
      %p304 = pneg %p147
      %p305 = pneg %p171
      %p306 = pneg %p168
      %p307 = pneg %p199
      %p308 = pneg %p196
      %p309 = scmp.lt.s32.totalorder %s21, 7
      %s310 = scalar_select %p309, %s21, 7
      %p311 = scmp.lt.s32.totalorder %s22, 0
      %s312 = scalar_select %p311, %s22, 0
      %s313 = sadd.s32 %s312, %s310
      %s314 = smul.addr %s313, 4
      %s315 = scalar_lea.vmem %s6, %s314
      %p316 = scmp.lt.s32.totalorder %s21, 7
      %s317 = scalar_select %p316, %s21, 7
      %p318 = scmp.lt.s32.totalorder %s22, 0
      %s319 = scalar_select %p318, %s22, 0
      %s320 = sadd.s32 %s319, %s317
      %s321 = smul.addr %s320, 4
      %s322 = scalar_lea.vmem %s0, %s321
      %p323 = scmp.lt.s32.totalorder %s21, 7
      %s324 = scalar_select %p323, %s21, 7
      %p325 = scmp.lt.s32.totalorder %s22, 0
      %s326 = scalar_select %p325, %s22, 0
      %s327 = smul.addr %s326, 2
      %s328 = sadd.s32 1, %s327
      %s329 = smul.addr %s324, 2
      %s330 = sadd.s32 %s328, %s329
      %s331 = smul.addr %s330, 4
      %s332 = scalar_lea.vmem %s1, %s331
      %p333 = scmp.lt.s32.totalorder %s21, 7
      %s334 = scalar_select %p333, %s21, 7
      %p335 = scmp.lt.s32.totalorder %s22, 0
      %s336 = scalar_select %p335, %s22, 0
      %s337 = smul.addr %s336, 2
      %s338 = smul.addr %s334, 2
      %s339 = sadd.s32 %s337, %s338
      %s340 = smul.addr %s339, 4
      %s341 = scalar_lea.vmem %s2, %s340
      %p342 = scmp.lt.s32.totalorder %s21, 7
      %s343 = scalar_select %p342, %s21, 7
      %p344 = scmp.lt.s32.totalorder %s22, 0
      %s345 = scalar_select %p344, %s22, 0
      %s346 = sadd.s32 %s345, %s343
      %s347 = smul.addr %s346, 4
      %s348 = scalar_lea.vmem %s6, %s347
      %p349 = scmp.eq.s32.totalorder %s22, 0
      // Predicated region
      $region45: #{mixer_ts_forward.17} parent=43 // pred_check
        %p350 = pneg %p349
      $region46: #{mixer_ts_forward.17} parent=43 // pred_check_branch
        %352 = sbr.rel (%p350) target = $region48
      $region47: #{mixer_ts_forward.17} parent=43 // pred_region
        %353 = vst [vmem:[#allocation4] sm:$0xff] 0.0
        %354 = vst [vmem:[#allocation4 + $0x8] sm:$0xff] 0.0
      $region48: #{mixer_ts_forward.17} parent=43 // pred_fallthru
        _
      %v355 = vld [vmem:[%s322] sm:$0xf]
      %v356 = vunpack.c.l.bf16 %v355
      %v357 = vld [vmem:[%s341] sm:$0xff]
      %v358 = vunpack.c.l.bf16 %v357
      %v359 = vunpack.c.h.bf16 %v357
      %v360 = vld [vmem:[%s5] sm:$0x1]
      %v362 = vperm.slane %v360, 0
      %v364 = vadd.f32 %v358, %v362
      %vm365 = vcmp.gt.f32.partialorder %v364, 20.0
      %v366 = vmin.f32 %v364, 20.0
      %v367 = vmul.f32 %v366, 1.442695
      %v368 = vpow.pop %v367
      %v369 = vadd.f32 %v368, 1.0
      %v370 = vlog2.pop %v369
      %v371 = vmul.f32 %v370, 0.6931472
      %v372 = vmul.f32 -0.5, %v368
      %v373 = vadd.f32 %v372, 1.0
      %v374 = vmul.f32 %v373, %v368
      %v375 = vand.u32 2147483647, %v368
      %vm376 = vcmp.lt.f32.partialorder %v375, 0.0004427343
      %v377 = vsel %vm376, %v374, %v371
      %v378 = vsel %vm365, %v364, %v377
      %v379 = vld [vmem:[%s3] sm:$0xff]
      %v380 = vld [vmem:[%s3 + $0x8] sm:$0xff]
      %v382 = vrot.slane %v378, 1
      %v383 = vrot.slane %v378, 2
      %v384 = vrot.slane %v378, 3
      %v385 = vrot.slane %v378, 4
      %v386 = vrot.slane %v378, 5
      %v387 = vrot.slane %v378, 6
      %v388 = vrot.slane %v378, 7
      %v389 = vperm.slane %v378, 0
      %v390 = vperm.slane %v382, 0
      %v391 = vperm.slane %v383, 0
      %v392 = vperm.slane %v384, 0
      %v393 = vperm.slane %v385, 0
      %v394 = vperm.slane %v386, 0
      %v395 = vperm.slane %v387, 0
      %v396 = vperm.slane %v388, 0
      %v405 = vmul.f32 %v389, %v379
      %v406 = vmul.f32 %v389, %v380
      %v407 = vmul.f32 %v390, %v379
      %v408 = vmul.f32 %v390, %v380
      %v409 = vmul.f32 %v391, %v379
      %v410 = vmul.f32 %v391, %v380
      %v411 = vmul.f32 %v392, %v379
      %v412 = vmul.f32 %v392, %v380
      %v413 = vmul.f32 %v393, %v379
      %v414 = vmul.f32 %v393, %v380
      %v415 = vmul.f32 %v394, %v379
      %v416 = vmul.f32 %v394, %v380
      %v417 = vmul.f32 %v395, %v379
      %v418 = vmul.f32 %v395, %v380
      %v419 = vmul.f32 %v396, %v379
      %v420 = vmul.f32 %v396, %v380
      %v421 = vmul.f32 %v405, 1.442695
      %v422 = vpow.pop %v421
      %v423 = vmul.f32 %v406, 1.442695
      %v424 = vpow.pop %v423
      %v425 = vmul.f32 %v407, 1.442695
      %v426 = vpow.pop %v425
      %v427 = vmul.f32 %v408, 1.442695
      %v428 = vpow.pop %v427
      %v429 = vmul.f32 %v409, 1.442695
      %v430 = vpow.pop %v429
      %v431 = vmul.f32 %v410, 1.442695
      %v432 = vpow.pop %v431
      %v433 = vmul.f32 %v411, 1.442695
      %v434 = vpow.pop %v433
      %v435 = vmul.f32 %v412, 1.442695
      %v436 = vpow.pop %v435
      %v437 = vmul.f32 %v413, 1.442695
      %v438 = vpow.pop %v437
      %v439 = vmul.f32 %v414, 1.442695
      %v440 = vpow.pop %v439
      %v441 = vmul.f32 %v415, 1.442695
      %v442 = vpow.pop %v441
      %v443 = vmul.f32 %v416, 1.442695
      %v444 = vpow.pop %v443
      %v445 = vmul.f32 %v417, 1.442695
      %v446 = vpow.pop %v445
      %v447 = vmul.f32 %v418, 1.442695
      %v448 = vpow.pop %v447
      %v449 = vmul.f32 %v419, 1.442695
      %v450 = vpow.pop %v449
      %v451 = vmul.f32 %v420, 1.442695
      %v452 = vpow.pop %v451
      %453 = vst [vmem:[#allocation2] sm:$0xff] %v422
      %454 = vst [vmem:[#allocation2 + $0x8] sm:$0xff] %v424
      %455 = vst [vmem:[#allocation2 + $0x10] sm:$0xff] %v426
      %456 = vst [vmem:[#allocation2 + $0x18] sm:$0xff] %v428
      %457 = vst [vmem:[#allocation2 + $0x20] sm:$0xff] %v430
      %458 = vst [vmem:[#allocation2 + $0x28] sm:$0xff] %v432
      %459 = vst [vmem:[#allocation2 + $0x30] sm:$0xff] %v434
      %460 = vst [vmem:[#allocation2 + $0x38] sm:$0xff] %v436
      %461 = vst [vmem:[#allocation2 + $0x40] sm:$0xff] %v438
      %462 = vst [vmem:[#allocation2 + $0x48] sm:$0xff] %v440
      %463 = vst [vmem:[#allocation2 + $0x50] sm:$0xff] %v442
      %464 = vst [vmem:[#allocation2 + $0x58] sm:$0xff] %v444
      %465 = vst [vmem:[#allocation2 + $0x60] sm:$0xff] %v446
      %466 = vst [vmem:[#allocation2 + $0x68] sm:$0xff] %v448
      %467 = vst [vmem:[#allocation2 + $0x70] sm:$0xff] %v450
      %468 = vst [vmem:[#allocation2 + $0x78] sm:$0xff] %v452
      %v469 = vperm.slane %v359, 0
      %v470 = vlaneseq
      %v471 = vshrl.u32 %v470, 7
      %473 = vset.pattern.permute.xlu0 %v471
      %474 = vperm.xlu0 %473, %v469
      %v475 = vpop.permute.xlu0 %474
      %v476 = vlaneseq
      %v477 = vshrl.u32 %v476, 7
      %v478 = vadd.s32 %v477, 8
      %479 = vset.pattern.permute.xlu0 %v478
      %480 = vperm.xlu0 %479, %v469
      %v481 = vpop.permute.xlu0 %480
      %v482 = vperm.slane %v359, 1
      %v483 = vlaneseq
      %v484 = vshrl.u32 %v483, 7
      %486 = vset.pattern.permute.xlu0 %v484
      %487 = vperm.xlu0 %486, %v482
      %v488 = vpop.permute.xlu0 %487
      %v489 = vlaneseq
      %v490 = vshrl.u32 %v489, 7
      %v491 = vadd.s32 %v490, 8
      %492 = vset.pattern.permute.xlu0 %v491
      %493 = vperm.xlu0 %492, %v482
      %v494 = vpop.permute.xlu0 %493
      %v495 = vperm.slane %v359, 2
      %v496 = vlaneseq
      %v497 = vshrl.u32 %v496, 7
      %499 = vset.pattern.permute.xlu0 %v497
      %500 = vperm.xlu0 %499, %v495
      %v501 = vpop.permute.xlu0 %500
      %v502 = vlaneseq
      %v503 = vshrl.u32 %v502, 7
      %v504 = vadd.s32 %v503, 8
      %505 = vset.pattern.permute.xlu0 %v504
      %506 = vperm.xlu0 %505, %v495
      %v507 = vpop.permute.xlu0 %506
      %v508 = vperm.slane %v359, 3
      %v509 = vlaneseq
      %v510 = vshrl.u32 %v509, 7
      %512 = vset.pattern.permute.xlu0 %v510
      %513 = vperm.xlu0 %512, %v508
      %v514 = vpop.permute.xlu0 %513
      %v515 = vlaneseq
      %v516 = vshrl.u32 %v515, 7
      %v517 = vadd.s32 %v516, 8
      %518 = vset.pattern.permute.xlu0 %v517
      %519 = vperm.xlu0 %518, %v508
      %v520 = vpop.permute.xlu0 %519
      %v521 = vperm.slane %v359, 4
      %v522 = vlaneseq
      %v523 = vshrl.u32 %v522, 7
      %525 = vset.pattern.permute.xlu0 %v523
      %526 = vperm.xlu0 %525, %v521
      %v527 = vpop.permute.xlu0 %526
      %v528 = vlaneseq
      %v529 = vshrl.u32 %v528, 7
      %v530 = vadd.s32 %v529, 8
      %531 = vset.pattern.permute.xlu0 %v530
      %532 = vperm.xlu0 %531, %v521
      %v533 = vpop.permute.xlu0 %532
      %v534 = vperm.slane %v359, 5
      %v535 = vlaneseq
      %v536 = vshrl.u32 %v535, 7
      %538 = vset.pattern.permute.xlu0 %v536
      %539 = vperm.xlu0 %538, %v534
      %v540 = vpop.permute.xlu0 %539
      %v541 = vlaneseq
      %v542 = vshrl.u32 %v541, 7
      %v543 = vadd.s32 %v542, 8
      %544 = vset.pattern.permute.xlu0 %v543
      %545 = vperm.xlu0 %544, %v534
      %v546 = vpop.permute.xlu0 %545
      %v547 = vperm.slane %v359, 6
      %v548 = vlaneseq
      %v549 = vshrl.u32 %v548, 7
      %551 = vset.pattern.permute.xlu0 %v549
      %552 = vperm.xlu0 %551, %v547
      %v553 = vpop.permute.xlu0 %552
      %v554 = vlaneseq
      %v555 = vshrl.u32 %v554, 7
      %v556 = vadd.s32 %v555, 8
      %557 = vset.pattern.permute.xlu0 %v556
      %558 = vperm.xlu0 %557, %v547
      %v559 = vpop.permute.xlu0 %558
      %v560 = vperm.slane %v359, 7
      %v561 = vlaneseq
      %v562 = vshrl.u32 %v561, 7
      %564 = vset.pattern.permute.xlu0 %v562
      %565 = vperm.xlu0 %564, %v560
      %v566 = vpop.permute.xlu0 %565
      %v567 = vlaneseq
      %v568 = vshrl.u32 %v567, 7
      %v569 = vadd.s32 %v568, 8
      %570 = vset.pattern.permute.xlu0 %v569
      %571 = vperm.xlu0 %570, %v560
      %v572 = vpop.permute.xlu0 %571
      %v573 = vmul.f32 %v378, %v356
      %v575 = vrot.slane %v573, 1
      %v576 = vrot.slane %v573, 2
      %v577 = vrot.slane %v573, 3
      %v578 = vrot.slane %v573, 4
      %v579 = vrot.slane %v573, 5
      %v580 = vrot.slane %v573, 6
      %v581 = vrot.slane %v573, 7
      %v582 = vperm.slane %v573, 0
      %v583 = vperm.slane %v575, 0
      %v584 = vperm.slane %v576, 0
      %v585 = vperm.slane %v577, 0
      %v586 = vperm.slane %v578, 0
      %v587 = vperm.slane %v579, 0
      %v588 = vperm.slane %v580, 0
      %v589 = vperm.slane %v581, 0
      %v598 = vmul.f32 %v475, %v582
      %v599 = vmul.f32 %v481, %v582
      %v600 = vmul.f32 %v488, %v583
      %v601 = vmul.f32 %v494, %v583
      %v602 = vmul.f32 %v501, %v584
      %v603 = vmul.f32 %v507, %v584
      %v604 = vmul.f32 %v514, %v585
      %v605 = vmul.f32 %v520, %v585
      %v606 = vmul.f32 %v527, %v586
      %v607 = vmul.f32 %v533, %v586
      %v608 = vmul.f32 %v540, %v587
      %v609 = vmul.f32 %v546, %v587
      %v610 = vmul.f32 %v553, %v588
      %v611 = vmul.f32 %v559, %v588
      %v612 = vmul.f32 %v566, %v589
      %v613 = vmul.f32 %v572, %v589
      %614 = vst [vmem:[#allocation3] sm:$0xff] %v598
      %615 = vst [vmem:[#allocation3 + $0x8] sm:$0xff] %v599
      %616 = vst [vmem:[#allocation3 + $0x10] sm:$0xff] %v600
      %617 = vst [vmem:[#allocation3 + $0x18] sm:$0xff] %v601
      %618 = vst [vmem:[#allocation3 + $0x20] sm:$0xff] %v602
      %619 = vst [vmem:[#allocation3 + $0x28] sm:$0xff] %v603
      %620 = vst [vmem:[#allocation3 + $0x30] sm:$0xff] %v604
      %621 = vst [vmem:[#allocation3 + $0x38] sm:$0xff] %v605
      %622 = vst [vmem:[#allocation3 + $0x40] sm:$0xff] %v606
      %623 = vst [vmem:[#allocation3 + $0x48] sm:$0xff] %v607
      %624 = vst [vmem:[#allocation3 + $0x50] sm:$0xff] %v608
      %625 = vst [vmem:[#allocation3 + $0x58] sm:$0xff] %v609
      %626 = vst [vmem:[#allocation3 + $0x60] sm:$0xff] %v610
      %627 = vst [vmem:[#allocation3 + $0x68] sm:$0xff] %v611
      %628 = vst [vmem:[#allocation3 + $0x70] sm:$0xff] %v612
      %629 = vst [vmem:[#allocation3 + $0x78] sm:$0xff] %v613
      %v630 = vld [vmem:[#allocation4] sm:$0xff]
      %v631 = vld [vmem:[#allocation4 + $0x8] sm:$0xff]
      loop: start=0, step=1, limit=8
      $region49: #{mixer_ts_forward.17} parent=43 // loop_pre_header
        _
      $region50: #{mixer_ts_forward.17} parent=43 // loop_header
        %s633 = sphi 0, %s637
        %p634 = scmp.ge.s32.totalorder %s633, 8
        %v638 = vphi %v630, %v649
        %v639 = vphi %v631, %v650
      $region51: #{mixer_ts_forward.17} parent=43 // loop_header_branch
        %636 = sbr.rel (%p634) target = $region55
      $region52: #{mixer_ts_forward.17} parent=43 // loop_body
        %s640 = smul.u32 %s633, 16
        %s641 = scalar_lea.vmem [#allocation2], %s640
        %v642 = vld [vmem:[%s641] sm:$0xff]
        %v643 = vld [vmem:[%s641 + $0x8] sm:$0xff]
        %v644 = vmul.f32 %v642, %v638
        %v645 = vmul.f32 %v643, %v639
        %s646 = scalar_lea.vmem [#allocation3], %s640
        %v647 = vld [vmem:[%s646] sm:$0xff]
        %v648 = vld [vmem:[%s646 + $0x8] sm:$0xff]
        %v649 = vadd.f32 %v644, %v647
        %v650 = vadd.f32 %v645, %v648
        %651 = vst [vmem:[%s646] sm:$0xff] %v649
        %652 = vst [vmem:[%s646 + $0x8] sm:$0xff] %v650
      $region53: #{mixer_ts_forward.17} parent=43 // loop_footer
        %s637 = sadd.s32 1, %s633
      $region54: #{mixer_ts_forward.17} parent=43 // loop_footer_branch
        %632 = sbr.rel target = $region50
      $region55: #{mixer_ts_forward.17} parent=43 // loop_exit
        _
      %653 = vst [vmem:[#allocation4] sm:$0xff] %v638
      %654 = vst [vmem:[#allocation4 + $0x8] sm:$0xff] %v639
      %v655 = vlaneseq
      %v656 = vshrl.u32 %v655, 7
      %v657 = vadd.s32 %v656, 16
      %658 = vset.pattern.permute.xlu0 %v657
      %659 = vperm.xlu0 %658, %v469
      %v660 = vpop.permute.xlu0 %659
      %v661 = vlaneseq
      %v662 = vshrl.u32 %v661, 7
      %v663 = vadd.s32 %v662, 24
      %664 = vset.pattern.permute.xlu0 %v663
      %665 = vperm.xlu0 %664, %v469
      %v666 = vpop.permute.xlu0 %665
      %v667 = vlaneseq
      %v668 = vshrl.u32 %v667, 7
      %v669 = vadd.s32 %v668, 16
      %670 = vset.pattern.permute.xlu0 %v669
      %671 = vperm.xlu0 %670, %v482
      %v672 = vpop.permute.xlu0 %671
      %v673 = vlaneseq
      %v674 = vshrl.u32 %v673, 7
      %v675 = vadd.s32 %v674, 24
      %676 = vset.pattern.permute.xlu0 %v675
      %677 = vperm.xlu0 %676, %v482
      %v678 = vpop.permute.xlu0 %677
      %v679 = vlaneseq
      %v680 = vshrl.u32 %v679, 7
      %v681 = vadd.s32 %v680, 16
      %682 = vset.pattern.permute.xlu0 %v681
      %683 = vperm.xlu0 %682, %v495
      %v684 = vpop.permute.xlu0 %683
      %v685 = vlaneseq
      %v686 = vshrl.u32 %v685, 7
      %v687 = vadd.s32 %v686, 24
      %688 = vset.pattern.permute.xlu0 %v687
      %689 = vperm.xlu0 %688, %v495
      %v690 = vpop.permute.xlu0 %689
      %v691 = vlaneseq
      %v692 = vshrl.u32 %v691, 7
      %v693 = vadd.s32 %v692, 16
      %694 = vset.pattern.permute.xlu0 %v693
      %695 = vperm.xlu0 %694, %v508
      %v696 = vpop.permute.xlu0 %695
      %v697 = vlaneseq
      %v698 = vshrl.u32 %v697, 7
      %v699 = vadd.s32 %v698, 24
      %700 = vset.pattern.permute.xlu0 %v699
      %701 = vperm.xlu0 %700, %v508
      %v702 = vpop.permute.xlu0 %701
      %v703 = vlaneseq
      %v704 = vshrl.u32 %v703, 7
      %v705 = vadd.s32 %v704, 16
      %706 = vset.pattern.permute.xlu0 %v705
      %707 = vperm.xlu0 %706, %v521
      %v708 = vpop.permute.xlu0 %707
      %v709 = vlaneseq
      %v710 = vshrl.u32 %v709, 7
      %v711 = vadd.s32 %v710, 24
      %712 = vset.pattern.permute.xlu0 %v711
      %713 = vperm.xlu0 %712, %v521
      %v714 = vpop.permute.xlu0 %713
      %v715 = vlaneseq
      %v716 = vshrl.u32 %v715, 7
      %v717 = vadd.s32 %v716, 16
      %718 = vset.pattern.permute.xlu0 %v717
      %719 = vperm.xlu0 %718, %v534
      %v720 = vpop.permute.xlu0 %719
      %v721 = vlaneseq
      %v722 = vshrl.u32 %v721, 7
      %v723 = vadd.s32 %v722, 24
      %724 = vset.pattern.permute.xlu0 %v723
      %725 = vperm.xlu0 %724, %v534
      %v726 = vpop.permute.xlu0 %725
      %v727 = vlaneseq
      %v728 = vshrl.u32 %v727, 7
      %v729 = vadd.s32 %v728, 16
      %730 = vset.pattern.permute.xlu0 %v729
      %731 = vperm.xlu0 %730, %v547
      %v732 = vpop.permute.xlu0 %731
      %v733 = vlaneseq
      %v734 = vshrl.u32 %v733, 7
      %v735 = vadd.s32 %v734, 24
      %736 = vset.pattern.permute.xlu0 %v735
      %737 = vperm.xlu0 %736, %v547
      %v738 = vpop.permute.xlu0 %737
      %v739 = vlaneseq
      %v740 = vshrl.u32 %v739, 7
      %v741 = vadd.s32 %v740, 16
      %742 = vset.pattern.permute.xlu0 %v741
      %743 = vperm.xlu0 %742, %v560
      %v744 = vpop.permute.xlu0 %743
      %v745 = vlaneseq
      %v746 = vshrl.u32 %v745, 7
      %v747 = vadd.s32 %v746, 24
      %748 = vset.pattern.permute.xlu0 %v747
      %749 = vperm.xlu0 %748, %v560
      %v750 = vpop.permute.xlu0 %749
      %v751 = vld [vmem:[#allocation3] sm:$0xff]
      %v752 = vld [vmem:[#allocation3 + $0x8] sm:$0xff]
      %v753 = vld [vmem:[#allocation3 + $0x10] sm:$0xff]
      %v754 = vld [vmem:[#allocation3 + $0x18] sm:$0xff]
      %v755 = vld [vmem:[#allocation3 + $0x20] sm:$0xff]
      %v756 = vld [vmem:[#allocation3 + $0x28] sm:$0xff]
      %v757 = vld [vmem:[#allocation3 + $0x30] sm:$0xff]
      %v758 = vld [vmem:[#allocation3 + $0x38] sm:$0xff]
      %v759 = vld [vmem:[#allocation3 + $0x40] sm:$0xff]
      %v760 = vld [vmem:[#allocation3 + $0x48] sm:$0xff]
      %v761 = vld [vmem:[#allocation3 + $0x50] sm:$0xff]
      %v762 = vld [vmem:[#allocation3 + $0x58] sm:$0xff]
      %v763 = vld [vmem:[#allocation3 + $0x60] sm:$0xff]
      %v764 = vld [vmem:[#allocation3 + $0x68] sm:$0xff]
      %v765 = vld [vmem:[#allocation3 + $0x70] sm:$0xff]
      %v766 = vld [vmem:[#allocation3 + $0x78] sm:$0xff]
      %v767 = vmul.f32 %v660, %v751
      %v768 = vmul.f32 %v666, %v752
      %v769 = vmul.f32 %v672, %v753
      %v770 = vmul.f32 %v678, %v754
      %v771 = vmul.f32 %v684, %v755
      %v772 = vmul.f32 %v690, %v756
      %v773 = vmul.f32 %v696, %v757
      %v774 = vmul.f32 %v702, %v758
      %v775 = vmul.f32 %v708, %v759
      %v776 = vmul.f32 %v714, %v760
      %v777 = vmul.f32 %v720, %v761
      %v778 = vmul.f32 %v726, %v762
      %v779 = vmul.f32 %v732, %v763
      %v780 = vmul.f32 %v738, %v764
      %v781 = vmul.f32 %v744, %v765
      %v782 = vmul.f32 %v750, %v766
      %v783 = vadd.f32 %v767, %v768
      %v784 = vrot.slane %v783, 4
      %v785 = vadd.f32 %v783, %v784
      %v786 = vrot.slane %v785, 2
      %v787 = vadd.f32 %v785, %v786
      %v788 = vrot.slane %v787, 1
      %v789 = vadd.f32 %v787, %v788
      %v790 = vadd.f32 %v769, %v770
      %v791 = vrot.slane %v790, 4
      %v792 = vadd.f32 %v790, %v791
      %v793 = vrot.slane %v792, 2
      %v794 = vadd.f32 %v792, %v793
      %v795 = vrot.slane %v794, 1
      %v796 = vadd.f32 %v794, %v795
      %v797 = vadd.f32 %v771, %v772
      %v798 = vrot.slane %v797, 4
      %v799 = vadd.f32 %v797, %v798
      %v800 = vrot.slane %v799, 2
      %v801 = vadd.f32 %v799, %v800
      %v802 = vrot.slane %v801, 1
      %v803 = vadd.f32 %v801, %v802
      %v804 = vadd.f32 %v773, %v774
      %v805 = vrot.slane %v804, 4
      %v806 = vadd.f32 %v804, %v805
      %v807 = vrot.slane %v806, 2
      %v808 = vadd.f32 %v806, %v807
      %v809 = vrot.slane %v808, 1
      %v810 = vadd.f32 %v808, %v809
      %v811 = vadd.f32 %v775, %v776
      %v812 = vrot.slane %v811, 4
      %v813 = vadd.f32 %v811, %v812
      %v814 = vrot.slane %v813, 2
      %v815 = vadd.f32 %v813, %v814
      %v816 = vrot.slane %v815, 1
      %v817 = vadd.f32 %v815, %v816
      %v818 = vadd.f32 %v777, %v778
      %v819 = vrot.slane %v818, 4
      %v820 = vadd.f32 %v818, %v819
      %v821 = vrot.slane %v820, 2
      %v822 = vadd.f32 %v820, %v821
      %v823 = vrot.slane %v822, 1
      %v824 = vadd.f32 %v822, %v823
      %v825 = vadd.f32 %v779, %v780
      %v826 = vrot.slane %v825, 4
      %v827 = vadd.f32 %v825, %v826
      %v828 = vrot.slane %v827, 2
      %v829 = vadd.f32 %v827, %v828
      %v830 = vrot.slane %v829, 1
      %v831 = vadd.f32 %v829, %v830
      %v832 = vadd.f32 %v781, %v782
      %v833 = vrot.slane %v832, 4
      %v834 = vadd.f32 %v832, %v833
      %v835 = vrot.slane %v834, 2
      %v836 = vadd.f32 %v834, %v835
      %v837 = vrot.slane %v836, 1
      %v838 = vadd.f32 %v836, %v837
      %v839 = vld [vmem:[%s332] sm:$0xf]
      %v840 = vunpack.c.l.bf16 %v839
      %v841 = vsub.f32 0.0, %v840
      %v842 = vmul.f32 %v841, 1.442695
      %v843 = vpow.pop %v842
      %v844 = vadd.f32 %v843, 1.0
      %v845 = vrcp.pop %v844
      %v846 = vmul.f32 %v844, %v845
      %v847 = vsub.f32 1.0, %v846
      %v848 = vmul.f32 %v845, %v847
      %v849 = vadd.f32 %v845, %v848
      %vm850 = vweird.f32 %v844
      %vm851 = vweird.f32 %v845
      %vm852 = vmor %vm850, %vm851
      %v853 = vsel %vm852, %v845, %v849
      %v854 = vand.u32 2147483647, %v844
      %vm855 = vcmp.eq.f32.partialorder %v854, 8.507059e+37
      %v856 = vand.u32 %v844, 2147483648
      %v857 = vor.u32 1.1754944e-38, %v856
      %v858 = vsel %vm855, %v857, %v853
      %v859 = vmul.f32 1.0, %v858
      %v860 = vmul.f32 %v840, %v859
      %v861 = vld [vmem:[%s4] sm:$0x1]
      %v863 = vperm.slane %v861, 0
      %v865 = vmul.f32 %v356, %v863
      %v867 = vrot.slane %v865, 1
      %v868 = vrot.slane %v865, 2
      %v869 = vrot.slane %v865, 3
      %v870 = vrot.slane %v865, 4
      %v871 = vrot.slane %v865, 5
      %v872 = vrot.slane %v865, 6
      %v873 = vrot.slane %v865, 7
      %v882 = vadd.f32 %v789, %v865
      %v883 = vadd.f32 %v796, %v867
      %v884 = vadd.f32 %v803, %v868
      %v885 = vadd.f32 %v810, %v869
      %v886 = vadd.f32 %v817, %v870
      %v887 = vadd.f32 %v824, %v871
      %v888 = vadd.f32 %v831, %v872
      %v889 = vadd.f32 %v838, %v873
      %v891 = vrot.slane %v860, 1
      %v892 = vrot.slane %v860, 2
      %v893 = vrot.slane %v860, 3
      %v894 = vrot.slane %v860, 4
      %v895 = vrot.slane %v860, 5
      %v896 = vrot.slane %v860, 6
      %v897 = vrot.slane %v860, 7
      %v906 = vmul.f32 %v882, %v860
      %v907 = vmul.f32 %v883, %v891
      %v908 = vmul.f32 %v884, %v892
      %v909 = vmul.f32 %v885, %v893
      %v910 = vmul.f32 %v886, %v894
      %v911 = vmul.f32 %v887, %v895
      %v912 = vmul.f32 %v888, %v896
      %v913 = vmul.f32 %v889, %v897
      %v914 = vpack.c.bf16 %v906, %v906
      %v915 = vpack.c.bf16 %v907, %v907
      %v916 = vpack.c.bf16 %v908, %v908
      %v917 = vpack.c.bf16 %v909, %v909
      %v918 = vpack.c.bf16 %v910, %v910
      %v919 = vpack.c.bf16 %v911, %v911
      %v920 = vpack.c.bf16 %v912, %v912
      %v921 = vpack.c.bf16 %v913, %v913
      %v930 = vunpack.c.l.b16 %v914
      %v931 = vunpack.c.l.b16 %v915
      %v932 = vunpack.c.l.b16 %v916
      %v933 = vunpack.c.l.b16 %v917
      %v934 = vunpack.c.l.b16 %v918
      %v935 = vunpack.c.l.b16 %v919
      %v936 = vunpack.c.l.b16 %v920
      %v937 = vunpack.c.l.b16 %v921
      %v938 = vrot.slane %v931, 7
      %vm939 = vcmask 1041409
      %v940 = vsel %vm939, %v938, %v930
      %v941 = vrot.slane %v932, 6
      %vm942 = vcmask 1042434
      %v943 = vsel %vm942, %v941, %v940
      %v944 = vrot.slane %v933, 5
      %vm945 = vcmask 1043459
      %v946 = vsel %vm945, %v944, %v943
      %v947 = vrot.slane %v934, 4
      %vm948 = vcmask 1044484
      %v949 = vsel %vm948, %v947, %v946
      %v950 = vrot.slane %v935, 3
      %vm951 = vcmask 1045509
      %v952 = vsel %vm951, %v950, %v949
      %v953 = vrot.slane %v936, 2
      %vm954 = vcmask 1046534
      %v955 = vsel %vm954, %v953, %v952
      %v956 = vrot.slane %v937, 1
      %vm957 = vcmask 1047559
      %v958 = vsel %vm957, %v956, %v955
      %v959 = vpack.c.b16 %v958, %v958
      %961 = vst [vmem:[%s348] sm:$0xf] %v959
      %p962 = scmp.lt.s32.totalorder %s21, 7
      %s963 = scalar_select %p962, %s21, 7
      %p964 = scmp.lt.s32.totalorder %s22, 0
      %s965 = scalar_select %p964, %s22, 0
      %s966 = sadd.s32 %s965, %s963
      %s967 = smul.addr %s966, 4
      %s968 = scalar_lea.vmem %s6, %s967
      // Predicated region
      $region56: #{mixer_ts_forward.17} parent=43 // pred_check
        %p969 = pneg %p196
      $region57: #{mixer_ts_forward.17} parent=43 // pred_check_branch
        %971 = sbr.rel (%p969) target = $region59
      $region58: #{mixer_ts_forward.17} parent=43 // pred_region
        _
      $region59: #{mixer_ts_forward.17} parent=43 // pred_fallthru
        _
    $region44: #{mixer_ts_forward.17} parent=5 // pred_fallthru
      _
    %p972 = scmp.le.s32.totalorder 2, %s12
    // Predicated region
    $region60: #{mixer_ts_forward.17} parent=5 // pred_check
      %p973 = pneg %p972
    $region61: #{mixer_ts_forward.17} parent=5 // pred_check_branch
      %975 = sbr.rel (%p973) target = $region63
    $region62: #{mixer_ts_forward.17} parent=5 // pred_region
      %s976 = ssub.s32 %s12, 2
      // Predicated region
      $region64: #{mixer_ts_forward.17} parent=62 // pred_check
        %p977 = pneg %p202
      $region65: #{mixer_ts_forward.17} parent=62 // pred_check_branch
        %979 = sbr.rel (%p977) target = $region67
      $region66: #{mixer_ts_forward.17} parent=62 // pred_region
        %p980 = scmp.lt.s32.totalorder %s23, 7
        %s981 = scalar_select %p980, %s23, 7
        %p982 = scmp.lt.s32.totalorder %s24, 0
        %s983 = scalar_select %p982, %s24, 0
        %s984 = sadd.s32 %s983, %s981
        %s985 = smul.addr %s984, 4
        %s986 = scalar_lea.vmem %s6, %s985
      $region67: #{mixer_ts_forward.17} parent=62 // pred_fallthru
        _
    $region63: #{mixer_ts_forward.17} parent=5 // pred_fallthru
      _
  $region6: #{mixer_ts_forward.17} parent=0 // loop_footer
    %s16 = sadd.s32 1, %s12
  $region7: #{mixer_ts_forward.17} parent=0 // loop_footer_branch
    %11 = sbr.rel target = $region3
  $region8: #{mixer_ts_forward.17} parent=0 // loop_exit
    _

// kernel: mixer_ts_forward.18
$region0: #{mixer_ts_forward.18}
  #allocation0 [shape = 'u32[]', space=smem, size = 0x4, offset = 0x4, fixed_abs, tag = 'smem constant byte address 0x4 - core index']
  #allocation1 [shape = 'u32[72,128]{1,0:T(1,128)}', space=vmem, size = 0x9000, scoped, tag = 'internal scratch']
  #allocation2 [shape = 'f32[64,64]{1,0:T(8,128)}', space=vmem, size = 0x8000, scoped, tag = 'scratch operand']
  %s0 = inlined_call_operand.vmem [shape: bf16[64,128], index: 0, kind: input, shape index: {}]
  %s1 = inlined_call_operand.vmem [shape: bf16[128,64], index: 1, kind: input, shape index: {}]
  %s2 = inlined_call_operand.vmem [shape: f32[64,64], index: 2, kind: output, shape index: {}]
  %s3 = sld [smem:[#allocation0]]
  $region26: #{mixer_ts_forward.18} parent=0
    _
  %s5 = ssub.s32 1, %s3
  %s6 = scalar_select 0, %s5, %s3
  // Predicated region
  $region2: #{mixer_ts_forward.18} parent=0 // pred_check
    _
  $region3: #{mixer_ts_forward.18} parent=0 // pred_check_branch
    %8 = sbr.rel (0) target = $region5
  $region4: #{mixer_ts_forward.18} parent=0 // pred_region
    _
  $region5: #{mixer_ts_forward.18} parent=0 // pred_fallthru
    _
  // Predicated region
  $region6: #{mixer_ts_forward.18} parent=0 // pred_check
    _
  $region7: #{mixer_ts_forward.18} parent=0 // pred_check_branch
    %10 = sbr.rel (0) target = $region9
  $region8: #{mixer_ts_forward.18} parent=0 // pred_region
    _
  $region9: #{mixer_ts_forward.18} parent=0 // pred_fallthru
    _
  %p11 = scmp.eq.s32.totalorder 0, 0
  // Predicated region
  $region10: #{mixer_ts_forward.18} parent=0 // pred_check
    %p12 = pneg %p11
  $region11: #{mixer_ts_forward.18} parent=0 // pred_check_branch
    %14 = sbr.rel (%p12) target = $region13
  $region12: #{mixer_ts_forward.18} parent=0 // pred_region
    %vm15 = vcmask 523264
    %16 = vst.msk [vmem:[#allocation2] sm:$0xff] %vm15, 0.0
    %17 = vst.msk [vmem:[#allocation2 + $0x8] sm:$0xff] %vm15, 0.0
    %18 = vst.msk [vmem:[#allocation2 + $0x10] sm:$0xff] %vm15, 0.0
    %19 = vst.msk [vmem:[#allocation2 + $0x18] sm:$0xff] %vm15, 0.0
    %20 = vst.msk [vmem:[#allocation2 + $0x20] sm:$0xff] %vm15, 0.0
    %21 = vst.msk [vmem:[#allocation2 + $0x28] sm:$0xff] %vm15, 0.0
    %22 = vst.msk [vmem:[#allocation2 + $0x30] sm:$0xff] %vm15, 0.0
    %23 = vst.msk [vmem:[#allocation2 + $0x38] sm:$0xff] %vm15, 0.0
  $region13: #{mixer_ts_forward.18} parent=0 // pred_fallthru
    _
  %v24 = vld [vmem:[#allocation2] sm:$0xff]
  %v25 = vld [vmem:[#allocation2 + $0x8] sm:$0xff]
  %v26 = vld [vmem:[#allocation2 + $0x10] sm:$0xff]
  %v27 = vld [vmem:[#allocation2 + $0x18] sm:$0xff]
  %v28 = vld [vmem:[#allocation2 + $0x20] sm:$0xff]
  %v29 = vld [vmem:[#allocation2 + $0x28] sm:$0xff]
  %v30 = vld [vmem:[#allocation2 + $0x30] sm:$0xff]
  %v31 = vld [vmem:[#allocation2 + $0x38] sm:$0xff]
  %v32 = vld [vmem:[%s0] sm:$0xf]
  %v33 = vld [vmem:[%s0 + $0x4] sm:$0xf]
  %v34 = vld [vmem:[%s0 + $0x8] sm:$0xf]
  %v35 = vld [vmem:[%s0 + $0xc] sm:$0xf]
  %v36 = vld [vmem:[%s0 + $0x10] sm:$0xf]
  %v37 = vld [vmem:[%s0 + $0x14] sm:$0xf]
  %v38 = vld [vmem:[%s0 + $0x18] sm:$0xf]
  %v39 = vld [vmem:[%s0 + $0x1c] sm:$0xf]
  %v40 = vld [vmem:[%s1] sm:$0xf]
  %v41 = vld [vmem:[%s1 + $0x4] sm:$0xf]
  %v42 = vld [vmem:[%s1 + $0x8] sm:$0xf]
  %v43 = vld [vmem:[%s1 + $0xc] sm:$0xf]
  %v44 = vld [vmem:[%s1 + $0x10] sm:$0xf]
  %v45 = vld [vmem:[%s1 + $0x14] sm:$0xf]
  %v46 = vld [vmem:[%s1 + $0x18] sm:$0xf]
  %v47 = vld [vmem:[%s1 + $0x1c] sm:$0xf]
  %v48 = vld [vmem:[%s1 + $0x20] sm:$0xf]
  %v49 = vld [vmem:[%s1 + $0x24] sm:$0xf]
  %v50 = vld [vmem:[%s1 + $0x28] sm:$0xf]
  %v51 = vld [vmem:[%s1 + $0x2c] sm:$0xf]
  %v52 = vld [vmem:[%s1 + $0x30] sm:$0xf]
  %v53 = vld [vmem:[%s1 + $0x34] sm:$0xf]
  %v54 = vld [vmem:[%s1 + $0x38] sm:$0xf]
  %v55 = vld [vmem:[%s1 + $0x3c] sm:$0xf]
  %v64 = vunpack.c.l.b16 %v32
  %v65 = vunpack.c.l.b16 %v33
  %v66 = vunpack.c.l.b16 %v34
  %v67 = vunpack.c.l.b16 %v35
  %v68 = vunpack.c.l.b16 %v36
  %v69 = vunpack.c.l.b16 %v37
  %v70 = vunpack.c.l.b16 %v38
  %v71 = vunpack.c.l.b16 %v39
  %v72 = vpack.c.b16 %v65, %v64
  %v73 = vpack.c.b16 %v67, %v66
  %v74 = vpack.c.b16 %v69, %v68
  %v75 = vpack.c.b16 %v71, %v70
  %v96 = vunpack.c.l.b16 %v40
  %v97 = vunpack.c.l.b16 %v41
  %v98 = vunpack.c.l.b16 %v42
  %v99 = vunpack.c.l.b16 %v43
  %v100 = vunpack.c.l.b16 %v44
  %v101 = vunpack.c.l.b16 %v45
  %v102 = vunpack.c.l.b16 %v46
  %v103 = vunpack.c.l.b16 %v47
  %v104 = vunpack.c.l.b16 %v48
  %v105 = vunpack.c.l.b16 %v49
  %v106 = vunpack.c.l.b16 %v50
  %v107 = vunpack.c.l.b16 %v51
  %v108 = vunpack.c.l.b16 %v52
  %v109 = vunpack.c.l.b16 %v53
  %v110 = vunpack.c.l.b16 %v54
  %v111 = vunpack.c.l.b16 %v55
  %v112 = vpack.c.b16 %v97, %v96
  %v113 = vpack.c.b16 %v99, %v98
  %v114 = vpack.c.b16 %v101, %v100
  %v115 = vpack.c.b16 %v103, %v102
  %v116 = vpack.c.b16 %v105, %v104
  %v117 = vpack.c.b16 %v107, %v106
  %v118 = vpack.c.b16 %v109, %v108
  %v119 = vpack.c.b16 %v111, %v110
  %128 = vmatpush.bf16.msra.mxu0 %v119
  %129 = vmatpush.bf16.msra.mxu0 %v118
  %130 = vmatpush.bf16.msra.mxu0 %v117
  %131 = vmatpush.bf16.msra.mxu0 %v116
  %132 = vmatpush.bf16.msra.mxu0 %v115
  %133 = vmatpush.bf16.msra.mxu0 %v114
  %134 = vmatpush.bf16.msra.mxu0 %v113
  %135 = vmatpush.bf16.msra.mxu0 %v112
  %136 = vmatmul.bf16.gmra.mxu0 %v72
  %v137 = vpop.f32.mrf.mxu0
  %v138 = vadd.f32 0.0, %v137
  %v139 = vpop.f32.mrf.mxu0
  %v140 = vadd.f32 0.0, %v139
  %141 = vmatmul.bf16.gmra.mxu0 %v73
  %v142 = vpop.f32.mrf.mxu0
  %v143 = vadd.f32 0.0, %v142
  %v144 = vpop.f32.mrf.mxu0
  %v145 = vadd.f32 0.0, %v144
  %146 = vmatmul.bf16.gmra.mxu0 %v74
  %v147 = vpop.f32.mrf.mxu0
  %v148 = vadd.f32 0.0, %v147
  %v149 = vpop.f32.mrf.mxu0
  %v150 = vadd.f32 0.0, %v149
  %151 = vmatmul.bf16.gmra.mxu0 %v75
  %v152 = vpop.f32.mrf.mxu0
  %v153 = vadd.f32 0.0, %v152
  %v154 = vpop.f32.mrf.mxu0
  %v155 = vadd.f32 0.0, %v154
  %156 = vdwg.mxu0
  %v157 = vadd.f32 %v24, %v138
  %v158 = vadd.f32 %v25, %v140
  %v159 = vadd.f32 %v26, %v143
  %v160 = vadd.f32 %v27, %v145
  %v161 = vadd.f32 %v28, %v148
  %v162 = vadd.f32 %v29, %v150
  %v163 = vadd.f32 %v30, %v153
  %v164 = vadd.f32 %v31, %v155
  %vm165 = vcmask 523264
  %166 = vst.msk [vmem:[#allocation2] sm:$0xff] %vm165, %v157
  %167 = vst.msk [vmem:[#allocation2 + $0x8] sm:$0xff] %vm165, %v158
  %168 = vst.msk [vmem:[#allocation2 + $0x10] sm:$0xff] %vm165, %v159
  %169 = vst.msk [vmem:[#allocation2 + $0x18] sm:$0xff] %vm165, %v160
  %170 = vst.msk [vmem:[#allocation2 + $0x20] sm:$0xff] %vm165, %v161
  %171 = vst.msk [vmem:[#allocation2 + $0x28] sm:$0xff] %vm165, %v162
  %172 = vst.msk [vmem:[#allocation2 + $0x30] sm:$0xff] %vm165, %v163
  %173 = vst.msk [vmem:[#allocation2 + $0x38] sm:$0xff] %vm165, %v164
  // Predicated region
  $region14: #{mixer_ts_forward.18} parent=0 // pred_check
    %p174 = pneg %p11
  $region15: #{mixer_ts_forward.18} parent=0 // pred_check_branch
    %176 = sbr.rel (%p174) target = $region17
  $region16: #{mixer_ts_forward.18} parent=0 // pred_region
    %v177 = vld [vmem:[#allocation2] sm:$0xff]
    %v178 = vld [vmem:[#allocation2 + $0x8] sm:$0xff]
    %v179 = vld [vmem:[#allocation2 + $0x10] sm:$0xff]
    %v180 = vld [vmem:[#allocation2 + $0x18] sm:$0xff]
    %v181 = vld [vmem:[#allocation2 + $0x20] sm:$0xff]
    %v182 = vld [vmem:[#allocation2 + $0x28] sm:$0xff]
    %v183 = vld [vmem:[#allocation2 + $0x30] sm:$0xff]
    %v184 = vld [vmem:[#allocation2 + $0x38] sm:$0xff]
    %185 = vst.msk [vmem:[%s2] sm:$0xff] %vm165, %v177
    %186 = vst.msk [vmem:[%s2 + $0x8] sm:$0xff] %vm165, %v178
    %187 = vst.msk [vmem:[%s2 + $0x10] sm:$0xff] %vm165, %v179
    %188 = vst.msk [vmem:[%s2 + $0x18] sm:$0xff] %vm165, %v180
    %189 = vst.msk [vmem:[%s2 + $0x20] sm:$0xff] %vm165, %v181
    %190 = vst.msk [vmem:[%s2 + $0x28] sm:$0xff] %vm165, %v182
    %191 = vst.msk [vmem:[%s2 + $0x30] sm:$0xff] %vm165, %v183
    %192 = vst.msk [vmem:[%s2 + $0x38] sm:$0xff] %vm165, %v184
  $region17: #{mixer_ts_forward.18} parent=0 // pred_fallthru
    _
  // Predicated region
  $region18: #{mixer_ts_forward.18} parent=0 // pred_check
    _
  $region19: #{mixer_ts_forward.18} parent=0 // pred_check_branch
    %194 = sbr.rel (0) target = $region21
  $region20: #{mixer_ts_forward.18} parent=0 // pred_region
    _
  $region21: #{mixer_ts_forward.18} parent=0 // pred_fallthru
    _
  // Predicated region
  $region22: #{mixer_ts_forward.18} parent=0 // pred_check
    _
  $region23: #{mixer_ts_forward.18} parent=0 // pred_check_branch
    %196 = sbr.rel (0) target = $region25
  $region24: #{mixer_ts_forward.18} parent=0 // pred_region
    _
  $region25: #{mixer_ts_forward.18} parent=0 // pred_fallthru
    _

// kernel: mixer_ts_forward.20
$region0: #{mixer_ts_forward.20}
  #allocation0 [shape = 'u32[]', space=smem, size = 0x4, offset = 0x4, fixed_abs, tag = 'smem constant byte address 0x4 - core index']
  #allocation1 [shape = 'u32[72,128]{1,0:T(1,128)}', space=vmem, size = 0x9000, scoped, tag = 'internal scratch']
  #allocation2 [shape = 'f32[64,256]{1,0:T(8,128)}', space=vmem, size = 0x10000, scoped, tag = 'scratch operand']
  %s0 = inlined_call_operand.vmem [shape: bf16[64,64], index: 0, kind: input, shape index: {}]
  %s1 = inlined_call_operand.vmem [shape: bf16[64,256], index: 1, kind: input, shape index: {}]
  %s2 = inlined_call_operand.vmem [shape: bf16[64,256], index: 2, kind: output, shape index: {}]
  %s3 = sld [smem:[#allocation0]]
  $region26: #{mixer_ts_forward.20} parent=0
    _
  %s5 = ssub.s32 1, %s3
  %s6 = scalar_select 0, %s5, %s3
  // Predicated region
  $region2: #{mixer_ts_forward.20} parent=0 // pred_check
    _
  $region3: #{mixer_ts_forward.20} parent=0 // pred_check_branch
    %8 = sbr.rel (0) target = $region5
  $region4: #{mixer_ts_forward.20} parent=0 // pred_region
    _
  $region5: #{mixer_ts_forward.20} parent=0 // pred_fallthru
    _
  // Predicated region
  $region6: #{mixer_ts_forward.20} parent=0 // pred_check
    _
  $region7: #{mixer_ts_forward.20} parent=0 // pred_check_branch
    %10 = sbr.rel (0) target = $region9
  $region8: #{mixer_ts_forward.20} parent=0 // pred_region
    _
  $region9: #{mixer_ts_forward.20} parent=0 // pred_fallthru
    _
  %p12 = scmp.eq.s32.totalorder 0, 0
  // Predicated region
  $region10: #{mixer_ts_forward.20} parent=0 // pred_check
    %p13 = pneg %p12
  $region11: #{mixer_ts_forward.20} parent=0 // pred_check_branch
    %15 = sbr.rel (%p13) target = $region13
  $region12: #{mixer_ts_forward.20} parent=0 // pred_region
    %16 = vst [vmem:[#allocation2] sm:$0xff] 0.0
    %17 = vst [vmem:[#allocation2 + $0x8] sm:$0xff] 0.0
    %18 = vst [vmem:[#allocation2 + $0x10] sm:$0xff] 0.0
    %19 = vst [vmem:[#allocation2 + $0x18] sm:$0xff] 0.0
    %20 = vst [vmem:[#allocation2 + $0x20] sm:$0xff] 0.0
    %21 = vst [vmem:[#allocation2 + $0x28] sm:$0xff] 0.0
    %22 = vst [vmem:[#allocation2 + $0x30] sm:$0xff] 0.0
    %23 = vst [vmem:[#allocation2 + $0x38] sm:$0xff] 0.0
    %24 = vst [vmem:[#allocation2 + $0x40] sm:$0xff] 0.0
    %25 = vst [vmem:[#allocation2 + $0x48] sm:$0xff] 0.0
    %26 = vst [vmem:[#allocation2 + $0x50] sm:$0xff] 0.0
    %27 = vst [vmem:[#allocation2 + $0x58] sm:$0xff] 0.0
    %28 = vst [vmem:[#allocation2 + $0x60] sm:$0xff] 0.0
    %29 = vst [vmem:[#allocation2 + $0x68] sm:$0xff] 0.0
    %30 = vst [vmem:[#allocation2 + $0x70] sm:$0xff] 0.0
    %31 = vst [vmem:[#allocation2 + $0x78] sm:$0xff] 0.0
  $region13: #{mixer_ts_forward.20} parent=0 // pred_fallthru
    _
  %v32 = vld [vmem:[#allocation2] sm:$0xff]
  %v33 = vld [vmem:[#allocation2 + $0x8] sm:$0xff]
  %v34 = vld [vmem:[#allocation2 + $0x10] sm:$0xff]
  %v35 = vld [vmem:[#allocation2 + $0x18] sm:$0xff]
  %v36 = vld [vmem:[#allocation2 + $0x20] sm:$0xff]
  %v37 = vld [vmem:[#allocation2 + $0x28] sm:$0xff]
  %v38 = vld [vmem:[#allocation2 + $0x30] sm:$0xff]
  %v39 = vld [vmem:[#allocation2 + $0x38] sm:$0xff]
  %v40 = vld [vmem:[#allocation2 + $0x40] sm:$0xff]
  %v41 = vld [vmem:[#allocation2 + $0x48] sm:$0xff]
  %v42 = vld [vmem:[#allocation2 + $0x50] sm:$0xff]
  %v43 = vld [vmem:[#allocation2 + $0x58] sm:$0xff]
  %v44 = vld [vmem:[#allocation2 + $0x60] sm:$0xff]
  %v45 = vld [vmem:[#allocation2 + $0x68] sm:$0xff]
  %v46 = vld [vmem:[#allocation2 + $0x70] sm:$0xff]
  %v47 = vld [vmem:[#allocation2 + $0x78] sm:$0xff]
  %v48 = vld [vmem:[%s0] sm:$0xf]
  %v49 = vld [vmem:[%s0 + $0x4] sm:$0xf]
  %v50 = vld [vmem:[%s0 + $0x8] sm:$0xf]
  %v51 = vld [vmem:[%s0 + $0xc] sm:$0xf]
  %v52 = vld [vmem:[%s0 + $0x10] sm:$0xf]
  %v53 = vld [vmem:[%s0 + $0x14] sm:$0xf]
  %v54 = vld [vmem:[%s0 + $0x18] sm:$0xf]
  %v55 = vld [vmem:[%s0 + $0x1c] sm:$0xf]
  %v56 = vld [vmem:[%s1] sm:$0xff]
  %v57 = vld [vmem:[%s1 + $0x8] sm:$0xff]
  %v58 = vld [vmem:[%s1 + $0x10] sm:$0xff]
  %v59 = vld [vmem:[%s1 + $0x18] sm:$0xff]
  %v60 = vld [vmem:[%s1 + $0x20] sm:$0xff]
  %v61 = vld [vmem:[%s1 + $0x28] sm:$0xff]
  %v62 = vld [vmem:[%s1 + $0x30] sm:$0xff]
  %v63 = vld [vmem:[%s1 + $0x38] sm:$0xff]
  %v72 = vunpack.c.l.b16 %v48
  %v73 = vunpack.c.l.b16 %v49
  %v74 = vunpack.c.l.b16 %v50
  %v75 = vunpack.c.l.b16 %v51
  %v76 = vunpack.c.l.b16 %v52
  %v77 = vunpack.c.l.b16 %v53
  %v78 = vunpack.c.l.b16 %v54
  %v79 = vunpack.c.l.b16 %v55
  %v80 = vpack.c.b16 %v73, %v72
  %v81 = vpack.c.b16 %v75, %v74
  %v82 = vpack.c.b16 %v77, %v76
  %v83 = vpack.c.b16 %v79, %v78
  %v92 = vunpack.c.l.b16 %v56
  %v93 = vunpack.c.h.b16 %v56
  %v94 = vunpack.c.l.b16 %v57
  %v95 = vunpack.c.h.b16 %v57
  %v96 = vunpack.c.l.b16 %v58
  %v97 = vunpack.c.h.b16 %v58
  %v98 = vunpack.c.l.b16 %v59
  %v99 = vunpack.c.h.b16 %v59
  %v100 = vunpack.c.l.b16 %v60
  %v101 = vunpack.c.h.b16 %v60
  %v102 = vunpack.c.l.b16 %v61
  %v103 = vunpack.c.h.b16 %v61
  %v104 = vunpack.c.l.b16 %v62
  %v105 = vunpack.c.h.b16 %v62
  %v106 = vunpack.c.l.b16 %v63
  %v107 = vunpack.c.h.b16 %v63
  %v108 = vpack.c.b16 %v94, %v92
  %v109 = vpack.c.b16 %v95, %v93
  %v110 = vpack.c.b16 %v98, %v96
  %v111 = vpack.c.b16 %v99, %v97
  %v112 = vpack.c.b16 %v102, %v100
  %v113 = vpack.c.b16 %v103, %v101
  %v114 = vpack.c.b16 %v106, %v104
  %v115 = vpack.c.b16 %v107, %v105
  %vm124 = vcmask 523264
  %v126 = vsel %vm124, %v80, 0
  %v129 = vsel %vm124, %v81, 0
  %v132 = vsel %vm124, %v82, 0
  %v135 = vsel %vm124, %v83, 0
  %137 = vmatpush.bf16.msra.mxu0 0
  %138 = vmatpush.bf16.msra.mxu0 0
  %139 = vmatpush.bf16.msra.mxu0 0
  %140 = vmatpush.bf16.msra.mxu0 0
  %141 = vmatpush.bf16.msra.mxu0 %v114
  %142 = vmatpush.bf16.msra.mxu0 %v112
  %143 = vmatpush.bf16.msra.mxu0 %v110
  %144 = vmatpush.bf16.msra.mxu0 %v108
  %145 = vmatmul.bf16.gmra.mxu0 %v126
  %v146 = vpop.f32.mrf.mxu0
  %v147 = vadd.f32 0.0, %v146
  %v148 = vpop.f32.mrf.mxu0
  %v149 = vadd.f32 0.0, %v148
  %150 = vmatmul.bf16.gmra.mxu0 %v129
  %v151 = vpop.f32.mrf.mxu0
  %v152 = vadd.f32 0.0, %v151
  %v153 = vpop.f32.mrf.mxu0
  %v154 = vadd.f32 0.0, %v153
  %155 = vmatmul.bf16.gmra.mxu0 %v132
  %v156 = vpop.f32.mrf.mxu0
  %v157 = vadd.f32 0.0, %v156
  %v158 = vpop.f32.mrf.mxu0
  %v159 = vadd.f32 0.0, %v158
  %160 = vmatmul.bf16.gmra.mxu0 %v135
  %v161 = vpop.f32.mrf.mxu0
  %v162 = vadd.f32 0.0, %v161
  %v163 = vpop.f32.mrf.mxu0
  %v164 = vadd.f32 0.0, %v163
  %165 = vdwg.mxu0
  %166 = vmatpush.bf16.msra.mxu0 0
  %167 = vmatpush.bf16.msra.mxu0 0
  %168 = vmatpush.bf16.msra.mxu0 0
  %169 = vmatpush.bf16.msra.mxu0 0
  %170 = vmatpush.bf16.msra.mxu0 %v115
  %171 = vmatpush.bf16.msra.mxu0 %v113
  %172 = vmatpush.bf16.msra.mxu0 %v111
  %173 = vmatpush.bf16.msra.mxu0 %v109
  %174 = vmatmul.bf16.gmra.mxu0 %v126
  %v175 = vpop.f32.mrf.mxu0
  %v176 = vadd.f32 0.0, %v175
  %v177 = vpop.f32.mrf.mxu0
  %v178 = vadd.f32 0.0, %v177
  %179 = vmatmul.bf16.gmra.mxu0 %v129
  %v180 = vpop.f32.mrf.mxu0
  %v181 = vadd.f32 0.0, %v180
  %v182 = vpop.f32.mrf.mxu0
  %v183 = vadd.f32 0.0, %v182
  %184 = vmatmul.bf16.gmra.mxu0 %v132
  %v185 = vpop.f32.mrf.mxu0
  %v186 = vadd.f32 0.0, %v185
  %v187 = vpop.f32.mrf.mxu0
  %v188 = vadd.f32 0.0, %v187
  %189 = vmatmul.bf16.gmra.mxu0 %v135
  %v190 = vpop.f32.mrf.mxu0
  %v191 = vadd.f32 0.0, %v190
  %v192 = vpop.f32.mrf.mxu0
  %v193 = vadd.f32 0.0, %v192
  %194 = vdwg.mxu0
  %v195 = vadd.f32 %v32, %v147
  %v196 = vadd.f32 %v33, %v176
  %v197 = vadd.f32 %v34, %v149
  %v198 = vadd.f32 %v35, %v178
  %v199 = vadd.f32 %v36, %v152
  %v200 = vadd.f32 %v37, %v181
  %v201 = vadd.f32 %v38, %v154
  %v202 = vadd.f32 %v39, %v183
  %v203 = vadd.f32 %v40, %v157
  %v204 = vadd.f32 %v41, %v186
  %v205 = vadd.f32 %v42, %v159
  %v206 = vadd.f32 %v43, %v188
  %v207 = vadd.f32 %v44, %v162
  %v208 = vadd.f32 %v45, %v191
  %v209 = vadd.f32 %v46, %v164
  %v210 = vadd.f32 %v47, %v193
  %211 = vst [vmem:[#allocation2] sm:$0xff] %v195
  %212 = vst [vmem:[#allocation2 + $0x8] sm:$0xff] %v196
  %213 = vst [vmem:[#allocation2 + $0x10] sm:$0xff] %v197
  %214 = vst [vmem:[#allocation2 + $0x18] sm:$0xff] %v198
  %215 = vst [vmem:[#allocation2 + $0x20] sm:$0xff] %v199
  %216 = vst [vmem:[#allocation2 + $0x28] sm:$0xff] %v200
  %217 = vst [vmem:[#allocation2 + $0x30] sm:$0xff] %v201
  %218 = vst [vmem:[#allocation2 + $0x38] sm:$0xff] %v202
  %219 = vst [vmem:[#allocation2 + $0x40] sm:$0xff] %v203
  %220 = vst [vmem:[#allocation2 + $0x48] sm:$0xff] %v204
  %221 = vst [vmem:[#allocation2 + $0x50] sm:$0xff] %v205
  %222 = vst [vmem:[#allocation2 + $0x58] sm:$0xff] %v206
  %223 = vst [vmem:[#allocation2 + $0x60] sm:$0xff] %v207
  %224 = vst [vmem:[#allocation2 + $0x68] sm:$0xff] %v208
  %225 = vst [vmem:[#allocation2 + $0x70] sm:$0xff] %v209
  %226 = vst [vmem:[#allocation2 + $0x78] sm:$0xff] %v210
  // Predicated region
  $region14: #{mixer_ts_forward.20} parent=0 // pred_check
    %p227 = pneg %p12
  $region15: #{mixer_ts_forward.20} parent=0 // pred_check_branch
    %229 = sbr.rel (%p227) target = $region17
  $region16: #{mixer_ts_forward.20} parent=0 // pred_region
    %v230 = vld [vmem:[#allocation2] sm:$0xff]
    %v231 = vld [vmem:[#allocation2 + $0x8] sm:$0xff]
    %v232 = vld [vmem:[#allocation2 + $0x10] sm:$0xff]
    %v233 = vld [vmem:[#allocation2 + $0x18] sm:$0xff]
    %v234 = vld [vmem:[#allocation2 + $0x20] sm:$0xff]
    %v235 = vld [vmem:[#allocation2 + $0x28] sm:$0xff]
    %v236 = vld [vmem:[#allocation2 + $0x30] sm:$0xff]
    %v237 = vld [vmem:[#allocation2 + $0x38] sm:$0xff]
    %v238 = vld [vmem:[#allocation2 + $0x40] sm:$0xff]
    %v239 = vld [vmem:[#allocation2 + $0x48] sm:$0xff]
    %v240 = vld [vmem:[#allocation2 + $0x50] sm:$0xff]
    %v241 = vld [vmem:[#allocation2 + $0x58] sm:$0xff]
    %v242 = vld [vmem:[#allocation2 + $0x60] sm:$0xff]
    %v243 = vld [vmem:[#allocation2 + $0x68] sm:$0xff]
    %v244 = vld [vmem:[#allocation2 + $0x70] sm:$0xff]
    %v245 = vld [vmem:[#allocation2 + $0x78] sm:$0xff]
    %v246 = vpack.c.bf16 %v231, %v230
    %v247 = vpack.c.bf16 %v233, %v232
    %v248 = vpack.c.bf16 %v235, %v234
    %v249 = vpack.c.bf16 %v237, %v236
    %v250 = vpack.c.bf16 %v239, %v238
    %v251 = vpack.c.bf16 %v241, %v240
    %v252 = vpack.c.bf16 %v243, %v242
    %v253 = vpack.c.bf16 %v245, %v244
    %254 = vst [vmem:[%s2] sm:$0xff] %v246
    %255 = vst [vmem:[%s2 + $0x8] sm:$0xff] %v247
    %256 = vst [vmem:[%s2 + $0x10] sm:$0xff] %v248
    %257 = vst [vmem:[%s2 + $0x18] sm:$0xff] %v249
    %258 = vst [vmem:[%s2 + $0x20] sm:$0xff] %v250
    %259 = vst [vmem:[%s2 + $0x28] sm:$0xff] %v251
    %260 = vst [vmem:[%s2 + $0x30] sm:$0xff] %v252
    %261 = vst [vmem:[%s2 + $0x38] sm:$0xff] %v253
  $region17: #{mixer_ts_forward.20} parent=0 // pred_fallthru
    _
  // Predicated region
  $region18: #{mixer_ts_forward.20} parent=0 // pred_check
    _
  $region19: #{mixer_ts_forward.20} parent=0 // pred_check_branch
    %263 = sbr.rel (0) target = $region21
  $region20: #{mixer_ts_forward.20} parent=0 // pred_region
    _
  $region21: #{mixer_ts_forward.20} parent=0 // pred_fallthru
    _
  // Predicated region
  $region22: #{mixer_ts_forward.20} parent=0 // pred_check
    _
  $region23: #{mixer_ts_forward.20} parent=0 // pred_check_branch
    %265 = sbr.rel (0) target = $region25
  $region24: #{mixer_ts_forward.20} parent=0 // pred_region
    _
  $region25: #{mixer_ts_forward.20} parent=0 // pred_fallthru
    _

// kernel: mixer_ts_forward.25
$region0: #{mixer_ts_forward.25}
  #allocation0 [shape = 'u32[]', space=smem, size = 0x4, offset = 0x4, fixed_abs, tag = 'smem constant byte address 0x4 - core index']
  #allocation1 [shape = 'u32[72,128]{1,0:T(1,128)}', space=vmem, size = 0x9000, scoped, tag = 'internal scratch']
  %s0 = inlined_call_operand.vmem [shape: f32[64,64], index: 0, kind: input, shape index: {}]
  %s1 = inlined_call_operand.vmem [shape: f32[64,64], index: 1, kind: input, shape index: {}]
  %s2 = inlined_call_operand.vmem [shape: f32[1,64], index: 2, kind: input, shape index: {}]
  %s3 = inlined_call_operand.vmem [shape: f32[1,64], index: 3, kind: input, shape index: {}]
  %s4 = inlined_call_operand.hbm [shape: f32[64,64], index: 4, kind: output, shape index: {0}]
  %s5 = inlined_call_operand.hbm [shape: f32[64,64], index: 5, kind: output, shape index: {1}]
  %6 = xla_tuple %s4, %s5
  %s7 = sld [smem:[#allocation0]]
  $region34: #{mixer_ts_forward.25} parent=0
    _
  %s9 = ssub.s32 1, %s7
  %s10 = scalar_select 0, %s9, %s7
  $region1: #{mixer_ts_forward.25} parent=0
    #allocation2 [shape = 'u8[32768]{0}', space=vmem, size = 0x8000, scoped, tag = 'output window, operand 0, single buffered']
    #allocation3 [shape = 's32[1]{0}', space=sflag, size = 0x4, scoped, tag = 'scoped memory for mixer_ts_forward.25']
    #allocation4 [shape = 'u8[32768]{0}', space=vmem, size = 0x8000, scoped, tag = 'output window, operand 1, single buffered']
    #allocation5 [shape = 's32[1]{0}', space=sflag, size = 0x4, scoped, tag = 'scoped memory for mixer_ts_forward.25']
    %11 = vsyncpa [#allocation3], 0
    %12 = vsyncpa [#allocation5], 0
    // Predicated region
    $region2: #{mixer_ts_forward.25} parent=1 // pred_check
      _
    $region3: #{mixer_ts_forward.25} parent=1 // pred_check_branch
      %14 = sbr.rel (0) target = $region5
    $region4: #{mixer_ts_forward.25} parent=1 // pred_region
      _
    $region5: #{mixer_ts_forward.25} parent=1 // pred_fallthru
      _
    // Predicated region
    $region6: #{mixer_ts_forward.25} parent=1 // pred_check
      _
    $region7: #{mixer_ts_forward.25} parent=1 // pred_check_branch
      %16 = sbr.rel (0) target = $region9
    $region8: #{mixer_ts_forward.25} parent=1 // pred_region
      _
    $region9: #{mixer_ts_forward.25} parent=1 // pred_fallthru
      _
    // Predicated region
    $region10: #{mixer_ts_forward.25} parent=1 // pred_check
      _
    $region11: #{mixer_ts_forward.25} parent=1 // pred_check_branch
      %18 = sbr.rel (0) target = $region13
    $region12: #{mixer_ts_forward.25} parent=1 // pred_region
      _
    $region13: #{mixer_ts_forward.25} parent=1 // pred_fallthru
      _
    // Predicated region
    $region14: #{mixer_ts_forward.25} parent=1 // pred_check
      _
    $region15: #{mixer_ts_forward.25} parent=1 // pred_check_branch
      %20 = sbr.rel (0) target = $region17
    $region16: #{mixer_ts_forward.25} parent=1 // pred_region
      _
    $region17: #{mixer_ts_forward.25} parent=1 // pred_fallthru
      _
    %v21 = vld [vmem:[%s0] sm:$0xff]
    %v22 = vld [vmem:[%s0 + $0x8] sm:$0xff]
    %v23 = vld [vmem:[%s0 + $0x10] sm:$0xff]
    %v24 = vld [vmem:[%s0 + $0x18] sm:$0xff]
    %v25 = vld [vmem:[%s0 + $0x20] sm:$0xff]
    %v26 = vld [vmem:[%s0 + $0x28] sm:$0xff]
    %v27 = vld [vmem:[%s0 + $0x30] sm:$0xff]
    %v28 = vld [vmem:[%s0 + $0x38] sm:$0xff]
    %v29 = vld [vmem:[%s1] sm:$0xff]
    %v30 = vld [vmem:[%s1 + $0x8] sm:$0xff]
    %v31 = vld [vmem:[%s1 + $0x10] sm:$0xff]
    %v32 = vld [vmem:[%s1 + $0x18] sm:$0xff]
    %v33 = vld [vmem:[%s1 + $0x20] sm:$0xff]
    %v34 = vld [vmem:[%s1 + $0x28] sm:$0xff]
    %v35 = vld [vmem:[%s1 + $0x30] sm:$0xff]
    %v36 = vld [vmem:[%s1 + $0x38] sm:$0xff]
    %v37 = vadd.f32 %v21, %v29
    %v38 = vadd.f32 %v22, %v30
    %v39 = vadd.f32 %v23, %v31
    %v40 = vadd.f32 %v24, %v32
    %v41 = vadd.f32 %v25, %v33
    %v42 = vadd.f32 %v26, %v34
    %v43 = vadd.f32 %v27, %v35
    %v44 = vadd.f32 %v28, %v36
    %vm45 = vcmask 523264
    %46 = vst.msk [vmem:[#allocation4] sm:$0xff] %vm45, %v37
    %47 = vst.msk [vmem:[#allocation4 + $0x8] sm:$0xff] %vm45, %v38
    %48 = vst.msk [vmem:[#allocation4 + $0x10] sm:$0xff] %vm45, %v39
    %49 = vst.msk [vmem:[#allocation4 + $0x18] sm:$0xff] %vm45, %v40
    %50 = vst.msk [vmem:[#allocation4 + $0x20] sm:$0xff] %vm45, %v41
    %51 = vst.msk [vmem:[#allocation4 + $0x28] sm:$0xff] %vm45, %v42
    %52 = vst.msk [vmem:[#allocation4 + $0x30] sm:$0xff] %vm45, %v43
    %53 = vst.msk [vmem:[#allocation4 + $0x38] sm:$0xff] %vm45, %v44
    %v54 = vsel %vm45, %v37, 0.0
    %55 = vadd.xlane.f32.xlu0 %v54
    %v56 = vpop.xlane.xlu0 %55
    %v57 = vsel %vm45, %v38, 0.0
    %58 = vadd.xlane.f32.xlu0 %v57
    %v59 = vpop.xlane.xlu0 %58
    %v60 = vsel %vm45, %v39, 0.0
    %61 = vadd.xlane.f32.xlu0 %v60
    %v62 = vpop.xlane.xlu0 %61
    %v63 = vsel %vm45, %v40, 0.0
    %64 = vadd.xlane.f32.xlu0 %v63
    %v65 = vpop.xlane.xlu0 %64
    %v66 = vsel %vm45, %v41, 0.0
    %67 = vadd.xlane.f32.xlu0 %v66
    %v68 = vpop.xlane.xlu0 %67
    %v69 = vsel %vm45, %v42, 0.0
    %70 = vadd.xlane.f32.xlu0 %v69
    %v71 = vpop.xlane.xlu0 %70
    %v72 = vsel %vm45, %v43, 0.0
    %73 = vadd.xlane.f32.xlu0 %v72
    %v74 = vpop.xlane.xlu0 %73
    %v75 = vsel %vm45, %v44, 0.0
    %76 = vadd.xlane.f32.xlu0 %v75
    %v77 = vpop.xlane.xlu0 %76
    %v78 = vrcp.pop 64.0
    %v79 = vmul.f32 64.0, %v78
    %v80 = vsub.f32 1.0, %v79
    %v81 = vmul.f32 %v78, %v80
    %v82 = vadd.f32 %v78, %v81
    %vm83 = vweird.f32 %v78
    %v84 = vsel %vm83, %v78, %v82
    %v85 = vmul.f32 %v56, %v84
    %v86 = vmul.f32 %v59, %v84
    %v87 = vmul.f32 %v62, %v84
    %v88 = vmul.f32 %v65, %v84
    %v89 = vmul.f32 %v68, %v84
    %v90 = vmul.f32 %v71, %v84
    %v91 = vmul.f32 %v74, %v84
    %v92 = vmul.f32 %v77, %v84
    %v93 = vsub.f32 %v37, %v85
    %v94 = vsub.f32 %v38, %v86
    %v95 = vsub.f32 %v39, %v87
    %v96 = vsub.f32 %v40, %v88
    %v97 = vsub.f32 %v41, %v89
    %v98 = vsub.f32 %v42, %v90
    %v99 = vsub.f32 %v43, %v91
    %v100 = vsub.f32 %v44, %v92
    %v101 = vmul.f32 %v93, %v93
    %v102 = vmul.f32 %v94, %v94
    %v103 = vmul.f32 %v95, %v95
    %v104 = vmul.f32 %v96, %v96
    %v105 = vmul.f32 %v97, %v97
    %v106 = vmul.f32 %v98, %v98
    %v107 = vmul.f32 %v99, %v99
    %v108 = vmul.f32 %v100, %v100
    %v109 = vsel %vm45, %v101, 0.0
    %110 = vadd.xlane.f32.xlu0 %v109
    %v111 = vpop.xlane.xlu0 %110
    %v112 = vsel %vm45, %v102, 0.0
    %113 = vadd.xlane.f32.xlu0 %v112
    %v114 = vpop.xlane.xlu0 %113
    %v115 = vsel %vm45, %v103, 0.0
    %116 = vadd.xlane.f32.xlu0 %v115
    %v117 = vpop.xlane.xlu0 %116
    %v118 = vsel %vm45, %v104, 0.0
    %119 = vadd.xlane.f32.xlu0 %v118
    %v120 = vpop.xlane.xlu0 %119
    %v121 = vsel %vm45, %v105, 0.0
    %122 = vadd.xlane.f32.xlu0 %v121
    %v123 = vpop.xlane.xlu0 %122
    %v124 = vsel %vm45, %v106, 0.0
    %125 = vadd.xlane.f32.xlu0 %v124
    %v126 = vpop.xlane.xlu0 %125
    %v127 = vsel %vm45, %v107, 0.0
    %128 = vadd.xlane.f32.xlu0 %v127
    %v129 = vpop.xlane.xlu0 %128
    %v130 = vsel %vm45, %v108, 0.0
    %131 = vadd.xlane.f32.xlu0 %v130
    %v132 = vpop.xlane.xlu0 %131
    %v133 = vmul.f32 %v111, %v84
    %v134 = vmul.f32 %v114, %v84
    %v135 = vmul.f32 %v117, %v84
    %v136 = vmul.f32 %v120, %v84
    %v137 = vmul.f32 %v123, %v84
    %v138 = vmul.f32 %v126, %v84
    %v139 = vmul.f32 %v129, %v84
    %v140 = vmul.f32 %v132, %v84
    %v141 = vadd.f32 %v133, 1e-05
    %v142 = vadd.f32 %v134, 1e-05
    %v143 = vadd.f32 %v135, 1e-05
    %v144 = vadd.f32 %v136, 1e-05
    %v145 = vadd.f32 %v137, 1e-05
    %v146 = vadd.f32 %v138, 1e-05
    %v147 = vadd.f32 %v139, 1e-05
    %v148 = vadd.f32 %v140, 1e-05
    %v149 = vrsqrt.pop %v141
    %v150 = vmul.f32 %v149, %v141
    %v151 = vmul.f32 %v150, %v149
    %v152 = vmul.f32 0.5, %v151
    %v153 = vsub.f32 1.5, %v152
    %v154 = vmul.f32 %v149, %v153
    %vm155 = vweird.f32 %v141
    %vm156 = vweird.f32 %v149
    %vm157 = vmor %vm155, %vm156
    %v158 = vsel %vm157, %v149, %v154
    %v159 = vrsqrt.pop %v142
    %v160 = vmul.f32 %v159, %v142
    %v161 = vmul.f32 %v160, %v159
    %v162 = vmul.f32 0.5, %v161
    %v163 = vsub.f32 1.5, %v162
    %v164 = vmul.f32 %v159, %v163
    %vm165 = vweird.f32 %v142
    %vm166 = vweird.f32 %v159
    %vm167 = vmor %vm165, %vm166
    %v168 = vsel %vm167, %v159, %v164
    %v169 = vrsqrt.pop %v143
    %v170 = vmul.f32 %v169, %v143
    %v171 = vmul.f32 %v170, %v169
    %v172 = vmul.f32 0.5, %v171
    %v173 = vsub.f32 1.5, %v172
    %v174 = vmul.f32 %v169, %v173
    %vm175 = vweird.f32 %v143
    %vm176 = vweird.f32 %v169
    %vm177 = vmor %vm175, %vm176
    %v178 = vsel %vm177, %v169, %v174
    %v179 = vrsqrt.pop %v144
    %v180 = vmul.f32 %v179, %v144
    %v181 = vmul.f32 %v180, %v179
    %v182 = vmul.f32 0.5, %v181
    %v183 = vsub.f32 1.5, %v182
    %v184 = vmul.f32 %v179, %v183
    %vm185 = vweird.f32 %v144
    %vm186 = vweird.f32 %v179
    %vm187 = vmor %vm185, %vm186
    %v188 = vsel %vm187, %v179, %v184
    %v189 = vrsqrt.pop %v145
    %v190 = vmul.f32 %v189, %v145
    %v191 = vmul.f32 %v190, %v189
    %v192 = vmul.f32 0.5, %v191
    %v193 = vsub.f32 1.5, %v192
    %v194 = vmul.f32 %v189, %v193
    %vm195 = vweird.f32 %v145
    %vm196 = vweird.f32 %v189
    %vm197 = vmor %vm195, %vm196
    %v198 = vsel %vm197, %v189, %v194
    %v199 = vrsqrt.pop %v146
    %v200 = vmul.f32 %v199, %v146
    %v201 = vmul.f32 %v200, %v199
    %v202 = vmul.f32 0.5, %v201
    %v203 = vsub.f32 1.5, %v202
    %v204 = vmul.f32 %v199, %v203
    %vm205 = vweird.f32 %v146
    %vm206 = vweird.f32 %v199
    %vm207 = vmor %vm205, %vm206
    %v208 = vsel %vm207, %v199, %v204
    %v209 = vrsqrt.pop %v147
    %v210 = vmul.f32 %v209, %v147
    %v211 = vmul.f32 %v210, %v209
    %v212 = vmul.f32 0.5, %v211
    %v213 = vsub.f32 1.5, %v212
    %v214 = vmul.f32 %v209, %v213
    %vm215 = vweird.f32 %v147
    %vm216 = vweird.f32 %v209
    %vm217 = vmor %vm215, %vm216
    %v218 = vsel %vm217, %v209, %v214
    %v219 = vrsqrt.pop %v148
    %v220 = vmul.f32 %v219, %v148
    %v221 = vmul.f32 %v220, %v219
    %v222 = vmul.f32 0.5, %v221
    %v223 = vsub.f32 1.5, %v222
    %v224 = vmul.f32 %v219, %v223
    %vm225 = vweird.f32 %v148
    %vm226 = vweird.f32 %v219
    %vm227 = vmor %vm225, %vm226
    %v228 = vsel %vm227, %v219, %v224
    %v229 = vmul.f32 %v93, %v158
    %v230 = vmul.f32 %v94, %v168
    %v231 = vmul.f32 %v95, %v178
    %v232 = vmul.f32 %v96, %v188
    %v233 = vmul.f32 %v97, %v198
    %v234 = vmul.f32 %v98, %v208
    %v235 = vmul.f32 %v99, %v218
    %v236 = vmul.f32 %v100, %v228
    %v237 = vld [vmem:[%s2] sm:$0x1]
    %v239 = vperm.slane %v237, 0
    %v241 = vmul.f32 %v229, %v239
    %v242 = vmul.f32 %v230, %v239
    %v243 = vmul.f32 %v231, %v239
    %v244 = vmul.f32 %v232, %v239
    %v245 = vmul.f32 %v233, %v239
    %v246 = vmul.f32 %v234, %v239
    %v247 = vmul.f32 %v235, %v239
    %v248 = vmul.f32 %v236, %v239
    %v249 = vld [vmem:[%s3] sm:$0x1]
    %v251 = vperm.slane %v249, 0
    %v253 = vadd.f32 %v241, %v251
    %v254 = vadd.f32 %v242, %v251
    %v255 = vadd.f32 %v243, %v251
    %v256 = vadd.f32 %v244, %v251
    %v257 = vadd.f32 %v245, %v251
    %v258 = vadd.f32 %v246, %v251
    %v259 = vadd.f32 %v247, %v251
    %v260 = vadd.f32 %v248, %v251
    %261 = vst.msk [vmem:[#allocation2] sm:$0xff] %vm45, %v253
    %262 = vst.msk [vmem:[#allocation2 + $0x8] sm:$0xff] %vm45, %v254
    %263 = vst.msk [vmem:[#allocation2 + $0x10] sm:$0xff] %vm45, %v255
    %264 = vst.msk [vmem:[#allocation2 + $0x18] sm:$0xff] %vm45, %v256
    %265 = vst.msk [vmem:[#allocation2 + $0x20] sm:$0xff] %vm45, %v257
    %266 = vst.msk [vmem:[#allocation2 + $0x28] sm:$0xff] %vm45, %v258
    %267 = vst.msk [vmem:[#allocation2 + $0x30] sm:$0xff] %vm45, %v259
    %268 = vst.msk [vmem:[#allocation2 + $0x38] sm:$0xff] %vm45, %v260
    // Predicated region
    $region18: #{mixer_ts_forward.25} parent=1 // pred_check
      _
    $region19: #{mixer_ts_forward.25} parent=1 // pred_check_branch
      %270 = sbr.rel (0) target = $region21
    $region20: #{mixer_ts_forward.25} parent=1 // pred_region
      %272 = vsyncadd [#allocation3], 0
      %s273 = sshll.u32 [#allocation2], 4
      %s274 = int_to_ptr.vmem [resolvable:$true] %s273
      %s275 = sshll.u32 %s4, 4
      %s276 = int_to_ptr.hbm [resolvable:$true] %s275
      %281 = dma.vmem_to_hbm [thread:$0]  %s274, 1024, %s276, [#allocation3], 128, 128, 8
    $region21: #{mixer_ts_forward.25} parent=1 // pred_fallthru
      _
    // Predicated region
    $region22: #{mixer_ts_forward.25} parent=1 // pred_check
      _
    $region23: #{mixer_ts_forward.25} parent=1 // pred_check_branch
      %283 = sbr.rel (0) target = $region25
    $region24: #{mixer_ts_forward.25} parent=1 // pred_region
      %285 = vsyncadd [#allocation5], 0
      %s286 = sshll.u32 [#allocation4], 4
      %s287 = int_to_ptr.vmem [resolvable:$true] %s286
      %s288 = sshll.u32 %s5, 4
      %s289 = int_to_ptr.hbm [resolvable:$true] %s288
      %294 = dma.vmem_to_hbm [thread:$0]  %s287, 1024, %s289, [#allocation5], 128, 128, 8
    $region25: #{mixer_ts_forward.25} parent=1 // pred_fallthru
      _
    // Predicated region
    $region26: #{mixer_ts_forward.25} parent=1 // pred_check
      _
    $region27: #{mixer_ts_forward.25} parent=1 // pred_check_branch
      %296 = sbr.rel (0) target = $region29
    $region28: #{mixer_ts_forward.25} parent=1 // pred_region
      %298 = dma.done [#allocation3], 1024
    $region29: #{mixer_ts_forward.25} parent=1 // pred_fallthru
      _
    // Predicated region
    $region30: #{mixer_ts_forward.25} parent=1 // pred_check
      _
    $region31: #{mixer_ts_forward.25} parent=1 // pred_check_branch
      %300 = sbr.rel (0) target = $region33
    $region32: #{mixer_ts_forward.25} parent=1 // pred_region
      %302 = dma.done [#allocation5], 1024
    $region33: #{mixer_ts_forward.25} parent=1 // pred_fallthru
      _
    %303 = vsyncpa [#allocation3], 1
    %304 = vsyncpa [#allocation5], 1

</llo_original>
